<compile_context>
chip_gen: v5e
topology: v5e:2x2
jax: 0.10.0
libtpu: 0.0.40
codegen_flags: <defaults>
</compile_context>

<pallas_src>
import functools

import jax
import jax.numpy as jnp
from jax.experimental import pallas as pl
from jax.experimental.pallas import tpu as pltpu


# ----------------------------------------------------------------------------
# Fused Pallas kernel: one grid step == one ensemble *model* (all its passes)
# ----------------------------------------------------------------------------
def _fused_forward_kernel(*refs, T, B, P, H, n_mlp1, n_gru, n_mlp2):
    """Ref layout (inputs, then outputs):

      x_ref       : (T, B, in0)                 shared network input
      h0_ref      : (P, L, B, H)                this model's initial hidden
      mlp1 params : n_mlp1 * (w:(M,Din,Dout), b:(M,1,Dout))     full arrays
      gru  params : n_gru  * (wih:(M,Din,3H), whh:(M,H,3H),
                              bih:(M,1,3H),   bhh:(M,1,3H))     full arrays
      mlp2 params : n_mlp2 * (w, b)                              full arrays
      preds_ref   : (P, T, B, Fout)
      hid_ref     : (P, L, B, H)
    """
    idx = 0
    x_ref = refs[idx]; idx += 1
    h0_ref = refs[idx]; idx += 1
    mlp1_refs = refs[idx:idx + 2 * n_mlp1]; idx += 2 * n_mlp1
    gru_refs = refs[idx:idx + 4 * n_gru]; idx += 4 * n_gru
    mlp2_refs = refs[idx:idx + 2 * n_mlp2]; idx += 2 * n_mlp2
    preds_ref = refs[idx]; idx += 1
    hid_ref = refs[idx]

    f32 = jnp.float32
    PB = P * B
    m = pl.program_id(0)                 # which ensemble model this step handles

    def leaky(v):                        # LeakyReLU, PyTorch default slope 0.01
        return jnp.where(v >= 0.0, v, 0.01 * v)

    # ---- mlp1: shared input, identical across passes of this model ----------
    # Single collapsed 2D matmul per layer.
    h = x_ref[...].astype(f32).reshape(T * B, -1)                  # (T*B, in0)
    for li in range(n_mlp1):
        w = mlp1_refs[2 * li][m]                                   # (Din, Dout)
        b = mlp1_refs[2 * li + 1][m]                               # (1, Dout)
        h = jnp.dot(h, w, preferred_element_type=f32) + b
        if li < n_mlp1 - 1:
            h = leaky(h)
    # h: (T*B, Dg)  with Dg == GRU input size

    # ---- GRU layer-0 input projection: one matmul, broadcast across passes --
    wih0 = gru_refs[0][m]                                          # (Dg, 3H)
    bih0 = gru_refs[2][m]                                          # (1, 3H)
    gx = jnp.dot(h, wih0, preferred_element_type=f32) + bih0       # (T*B, 3H)
    gx = gx.reshape(T, B, 3 * H)
    gx = jnp.concatenate([gx] * P, axis=1)                         # (T, PB, 3H)
    gx_rz = gx[:, :, : 2 * H]                                      # (T, PB, 2H)
    gx_n = gx[:, :, 2 * H:]                                        # (T, PB, H)

    h0 = h0_ref[...].astype(f32)                                   # (P, L, B, H)

    # ---- GRU recurrence: passes stacked into the batch rows -----------------
    finals = []                                                    # per-layer final hidden
    seq = None                                                     # (T, PB, H) layer output
    for l in range(n_gru):
        whh = gru_refs[4 * l + 1][m]                               # (H, 3H)
        bhh = gru_refs[4 * l + 3][m]                               # (1, 3H)
        whh_rz = whh[:, : 2 * H]                                   # split once per layer
        whh_n = whh[:, 2 * H:]
        bhh_rz = bhh[:, : 2 * H]
        bhh_n = bhh[:, 2 * H:]
        if l > 0:
            # Hoisted input projection for this layer: one (T*PB, H) matmul.
            wih = gru_refs[4 * l][m]                               # (H, 3H)
            bih = gru_refs[4 * l + 2][m]                           # (1, 3H)
            gxl = jnp.dot(seq.reshape(T * PB, H), wih,
                          preferred_element_type=f32) + bih
            gxl = gxl.reshape(T, PB, 3 * H)
            gx_rz = gxl[:, :, : 2 * H]
            gx_n = gxl[:, :, 2 * H:]

        hstate = h0[:, l].reshape(PB, H)                           # (PB, H), pass-major
        ys = []
        for t in range(T):
            # Only the W_hh recurrence lives inside the t loop.
            gh_rz = jnp.dot(hstate, whh_rz, preferred_element_type=f32) + bhh_rz
            gh_n = jnp.dot(hstate, whh_n, preferred_element_type=f32) + bhh_n
            rz = jax.nn.sigmoid(gx_rz[t] + gh_rz)                  # one EUP push (2H lanes)
            r = rz[:, :H]
            z = rz[:, H:]
            # PyTorch GRU gate order (r, z, n); b_hh folded into gh so
            # n = tanh(gx_n + r * (W_hn h + b_hn)).
            n = jnp.tanh(gx_n[t] + r * gh_n)
            hstate = (1.0 - z) * n + z * hstate
            ys.append(hstate)
        finals.append(hstate.reshape(P, B, H))
        seq = jnp.stack(ys, axis=0)                                # (T, PB, H)

    # One dense store for this model's final hidden state.
    hid_ref[...] = jnp.stack(finals, axis=1).astype(hid_ref.dtype)  # (P, L, B, H)

    # ---- mlp2 head batched over (passes x timesteps) -------------------------
    v = seq.reshape(T * PB, H)
    for li in range(n_mlp2):
        w = mlp2_refs[2 * li][m]
        b = mlp2_refs[2 * li + 1][m]
        v = jnp.dot(v, w, preferred_element_type=f32) + b
        if li < n_mlp2 - 1:
            v = leaky(v)
    fout = v.shape[-1]
    preds_tp = v.reshape(T, P, B, fout)
    for p in range(P):                                             # P dense stores
        preds_ref[p] = preds_tp[:, p].astype(preds_ref.dtype)


# ----------------------------------------------------------------------------
# Wrapper: one pallas_call for the whole forward pass
# ----------------------------------------------------------------------------
def uncertainty_network_forward(inp, hidden, mlp1_p, gru_p, mlp2_p, *, num_passes):
    """inp: (T, B, in0); hidden: (E, L, B, H). Returns (preds, hidden_out)."""
    T, B, in0 = inp.shape
    E, L, Bh, H = hidden.shape
    assert Bh == B
    M = mlp1_p[0][0].shape[0]          # num_models
    P = num_passes
    assert E == M * P
    assert L == len(gru_p)
    Fout = mlp2_p[-1][0].shape[-1]

    def full_spec(arr):
        # Whole array resident in VMEM with a constant index_map: Pallas DMAs
        # it once for the whole grid (block index never changes) instead of
        # re-fetching tiny per-model blocks every step.  The kernel selects
        # its model's slice with pl.program_id(0).
        nd = arr.ndim
        return pl.BlockSpec(tuple(arr.shape), lambda m, _nd=nd: (0,) * _nd)

    flat_inputs = [inp, hidden]
    in_specs = [
        pl.BlockSpec((T, B, in0), lambda m: (0, 0, 0)),            # shared input
        pl.BlockSpec((P, L, B, H), lambda m: (m, 0, 0, 0)),        # this model's passes
    ]
    for w, b in mlp1_p:
        flat_inputs += [w, b]
        in_specs += [full_spec(w), full_spec(b)]
    for wih, whh, bih, bhh in gru_p:
        flat_inputs += [wih, whh, bih, bhh]
        in_specs += [full_spec(wih), full_spec(whh),
                     full_spec(bih), full_spec(bhh)]
    for w, b in mlp2_p:
        flat_inputs += [w, b]
        in_specs += [full_spec(w), full_spec(b)]

    kernel = functools.partial(
        _fused_forward_kernel, T=T, B=B, P=P, H=H,
        n_mlp1=len(mlp1_p), n_gru=len(gru_p), n_mlp2=len(mlp2_p))

    preds, hidden_out = pl.pallas_call(
        kernel,
        out_shape=(
            jax.ShapeDtypeStruct((E, T, B, Fout), jnp.float32),
            jax.ShapeDtypeStruct((E, L, B, H), jnp.float32),
        ),
        grid_spec=pltpu.PrefetchScalarGridSpec(
            num_scalar_prefetch=0,
            grid=(M,),                       # one step per ensemble model
            in_specs=in_specs,
            out_specs=(
                pl.BlockSpec((P, T, B, Fout), lambda m: (m, 0, 0, 0)),
                pl.BlockSpec((P, L, B, H), lambda m: (m, 0, 0, 0)),
            ),
        ),
        compiler_params=pltpu.CompilerParams(
            dimension_semantics=("parallel",)),   # v7x: shard models over 2 TCs
    )(*flat_inputs)
    return preds, hidden_out


# ----------------------------------------------------------------------------
# Pure-JAX reference (for correctness check only)
# ----------------------------------------------------------------------------
def _ref_forward(inp, hidden, mlp1_p, gru_p, mlp2_p, num_passes):
    E, L, B, H = hidden.shape
    T = inp.shape[0]

    def run_mlp(xin, params, m):
        h = xin
        for li, (w, b) in enumerate(params):
            h = h @ w[m] + b[m, 0]
            if li < len(params) - 1:
                h = jnp.where(h >= 0.0, h, 0.01 * h)
        return h

    preds, houts = [], []
    for e in range(E):
        m = e // num_passes
        layer_in = run_mlp(inp, mlp1_p, m)          # (T, B, out0)
        hs = []
        for l in range(L):
            wih, whh, bih, bhh = gru_p[l]
            wih_m, whh_m = wih[m], whh[m]
            bih_m, bhh_m = bih[m, 0], bhh[m, 0]
            h = hidden[e, l]
            ys = []
            for t in range(T):
                gx = layer_in[t] @ wih_m + bih_m
                gh = h @ whh_m + bhh_m
                r = jax.nn.sigmoid(gx[:, :H] + gh[:, :H])
                z = jax.nn.sigmoid(gx[:, H:2 * H] + gh[:, H:2 * H])
                n = jnp.tanh(gx[:, 2 * H:] + r * gh[:, 2 * H:])
                h = (1.0 - z) * n + z * h
                ys.append(h)
            layer_in = jnp.stack(ys)
            hs.append(h)
        houts.append(jnp.stack(hs))
        preds.append(run_mlp(layer_in, mlp2_p, m))
    return jnp.stack(preds), jnp.stack(houts)


# ----------------------------------------------------------------------------
# Main
# ----------------------------------------------------------------------------
if __name__ == "__main__":
    # Module hyper-parameters (small, consistent with UncertaintyNetwork.__init__)
    INPUT_SIZE = (6, 16, 32)       # (mlp1 in, gru in, mlp2 in)
    HIDDEN_SIZE = ([24, 24], 32, [24])
    OUTPUT_SIZE = (16, 8)          # mlp1 out must equal gru in
    NUM_LAYERS = 2
    DROPOUT_PROB = 0.0             # deterministic forward (see TODO above)
    NUM_PASSES = 2
    NUM_MODELS = 3
    E = NUM_MODELS * NUM_PASSES
    H = HIDDEN_SIZE[1]
    T, B = 5, 4                    # seq len, batch

    key = jax.random.PRNGKey(0)
    keys = list(jax.random.split(key, 64))
    kidx = [0]

    def nrm(shape, scale=0.2):
        k = keys[kidx[0]]
        kidx[0] += 1
        return scale * jax.random.normal(k, shape, dtype=jnp.float32)

    # Deterministic synthetic parameters ('rl'-style shapes; values synthetic).
    mlp1_dims = [INPUT_SIZE[0]] + list(HIDDEN_SIZE[0]) + [OUTPUT_SIZE[0]]
    mlp1_params = [(nrm((NUM_MODELS, a, b)), nrm((NUM_MODELS, 1, b), 0.05))
                   for a, b in zip(mlp1_dims[:-1], mlp1_dims[1:])]

    gru_params = []
    for l in range(NUM_LAYERS):
        din = INPUT_SIZE[1] if l == 0 else H
        gru_params.append((
            nrm((NUM_MODELS, din, 3 * H)),      # W_ih^T  (gate order r,z,n)
            nrm((NUM_MODELS, H, 3 * H)),        # W_hh^T
            nrm((NUM_MODELS, 1, 3 * H), 0.05),  # b_ih
            nrm((NUM_MODELS, 1, 3 * H), 0.05),  # b_hh
        ))

    mlp2_dims = [INPUT_SIZE[2]] + list(HIDDEN_SIZE[2]) + [OUTPUT_SIZE[1]]
    mlp2_params = [(nrm((NUM_MODELS, a, b)), nrm((NUM_MODELS, 1, b), 0.05))
                   for a, b in zip(mlp2_dims[:-1], mlp2_dims[1:])]

    # Inputs. init_hidden() would give zeros; a carried hidden state can be
    # arbitrary and differ per pass, so use a random one to exercise that path.
    x = jax.random.normal(keys[60], (T, B, INPUT_SIZE[0]), dtype=jnp.float32)
    hidden0 = 0.1 * jax.random.normal(keys[61], (E, NUM_LAYERS, B, H),
                                      dtype=jnp.float32)

    fwd = jax.jit(functools.partial(uncertainty_network_forward,
                                    num_passes=NUM_PASSES))
    preds, hidden_out = fwd(x, hidden0, mlp1_params, gru_params, mlp2_params)
    preds = jax.block_until_ready(preds)
    hidden_out = jax.block_until_ready(hidden_out)

    # Shape contract from the PyTorch module
    assert preds.shape == (E, T, B, OUTPUT_SIZE[1]), preds.shape
    assert hidden_out.shape == hidden0.shape, hidden_out.shape

    # Correctness check against a pure-JAX reference
    ref_preds, ref_hidden = _ref_forward(x, hidden0, mlp1_params, gru_params,
                                         mlp2_params, NUM_PASSES)
    assert jnp.allclose(preds, ref_preds, atol=1e-4, rtol=1e-4)
    assert jnp.allclose(hidden_out, ref_hidden, atol=1e-4, rtol=1e-4)

    print("KERNEL_OK")
</pallas_src>

<mosaic_0001>
module attributes {stable_mosaic.version = 11 : i64} {
  func.func @_fused_forward_kernel(%arg0: i32, %arg1: memref<5x4x6xf32, #tpu.memory_space<vmem>>, %arg2: memref<2x2x4x32xf32, #tpu.memory_space<vmem>>, %arg3: memref<3x6x24xf32, #tpu.memory_space<vmem>>, %arg4: memref<3x1x24xf32, #tpu.memory_space<vmem>>, %arg5: memref<3x24x24xf32, #tpu.memory_space<vmem>>, %arg6: memref<3x1x24xf32, #tpu.memory_space<vmem>>, %arg7: memref<3x24x16xf32, #tpu.memory_space<vmem>>, %arg8: memref<3x1x16xf32, #tpu.memory_space<vmem>>, %arg9: memref<3x16x96xf32, #tpu.memory_space<vmem>>, %arg10: memref<3x32x96xf32, #tpu.memory_space<vmem>>, %arg11: memref<3x1x96xf32, #tpu.memory_space<vmem>>, %arg12: memref<3x1x96xf32, #tpu.memory_space<vmem>>, %arg13: memref<3x32x96xf32, #tpu.memory_space<vmem>>, %arg14: memref<3x32x96xf32, #tpu.memory_space<vmem>>, %arg15: memref<3x1x96xf32, #tpu.memory_space<vmem>>, %arg16: memref<3x1x96xf32, #tpu.memory_space<vmem>>, %arg17: memref<3x32x24xf32, #tpu.memory_space<vmem>>, %arg18: memref<3x1x24xf32, #tpu.memory_space<vmem>>, %arg19: memref<3x24x8xf32, #tpu.memory_space<vmem>>, %arg20: memref<3x1x8xf32, #tpu.memory_space<vmem>>, %arg21: memref<2x5x4x8xf32, #tpu.memory_space<vmem>>, %arg22: memref<2x2x4x32xf32, #tpu.memory_space<vmem>>) attributes {dimension_semantics = [#tpu.dimension_semantics<parallel>], iteration_bounds = array<i64: 3>, scalar_prefetch = 0 : i64, scratch_operands = 0 : i64, tpu.core_type = #tpu.core_type<tc>, window_params = [{pipeline_mode = #tpu.pipeline_mode<synchronous>, transform_indices = @transform_0, window_bounds = array<i64: 5, 4, 6>}, {transform_indices = @transform_1, window_bounds = array<i64: 2, 2, 4, 32>}, {pipeline_mode = #tpu.pipeline_mode<synchronous>, transform_indices = @transform_2, window_bounds = array<i64: 3, 6, 24>}, {pipeline_mode = #tpu.pipeline_mode<synchronous>, transform_indices = @transform_3, window_bounds = array<i64: 3, 1, 24>}, {pipeline_mode = #tpu.pipeline_mode<synchronous>, transform_indices = @transform_4, window_bounds = array<i64: 3, 24, 24>}, {pipeline_mode = #tpu.pipeline_mode<synchronous>, transform_indices = @transform_5, window_bounds = array<i64: 3, 1, 24>}, {pipeline_mode = #tpu.pipeline_mode<synchronous>, transform_indices = @transform_6, window_bounds = array<i64: 3, 24, 16>}, {pipeline_mode = #tpu.pipeline_mode<synchronous>, transform_indices = @transform_7, window_bounds = array<i64: 3, 1, 16>}, {pipeline_mode = #tpu.pipeline_mode<synchronous>, transform_indices = @transform_8, window_bounds = array<i64: 3, 16, 96>}, {pipeline_mode = #tpu.pipeline_mode<synchronous>, transform_indices = @transform_9, window_bounds = array<i64: 3, 32, 96>}, {pipeline_mode = #tpu.pipeline_mode<synchronous>, transform_indices = @transform_10, window_bounds = array<i64: 3, 1, 96>}, {pipeline_mode = #tpu.pipeline_mode<synchronous>, transform_indices = @transform_11, window_bounds = array<i64: 3, 1, 96>}, {pipeline_mode = #tpu.pipeline_mode<synchronous>, transform_indices = @transform_12, window_bounds = array<i64: 3, 32, 96>}, {pipeline_mode = #tpu.pipeline_mode<synchronous>, transform_indices = @transform_13, window_bounds = array<i64: 3, 32, 96>}, {pipeline_mode = #tpu.pipeline_mode<synchronous>, transform_indices = @transform_14, window_bounds = array<i64: 3, 1, 96>}, {pipeline_mode = #tpu.pipeline_mode<synchronous>, transform_indices = @transform_15, window_bounds = array<i64: 3, 1, 96>}, {pipeline_mode = #tpu.pipeline_mode<synchronous>, transform_indices = @transform_16, window_bounds = array<i64: 3, 32, 24>}, {pipeline_mode = #tpu.pipeline_mode<synchronous>, transform_indices = @transform_17, window_bounds = array<i64: 3, 1, 24>}, {pipeline_mode = #tpu.pipeline_mode<synchronous>, transform_indices = @transform_18, window_bounds = array<i64: 3, 24, 8>}, {pipeline_mode = #tpu.pipeline_mode<synchronous>, transform_indices = @transform_19, window_bounds = array<i64: 3, 1, 8>}, {transform_indices = @transform_20, window_bounds = array<i64: 2, 5, 4, 8>}, {transform_indices = @transform_21, window_bounds = array<i64: 2, 2, 4, 32>}]} {
    %c0 = arith.constant 0 : index
    %c0_0 = arith.constant 0 : index
    %c0_1 = arith.constant 0 : index
    %0 = vector.load %arg1[%c0, %c0_0, %c0_1] : memref<5x4x6xf32, #tpu.memory_space<vmem>>, vector<5x4x6xf32>
    %1 = vector.shape_cast %0 : vector<5x4x6xf32> to vector<20x6xf32>
    %2 = arith.index_cast %arg0 : i32 to index
    %c0_2 = arith.constant 0 : index
    %c0_3 = arith.constant 0 : index
    %3 = vector.load %arg3[%2, %c0_2, %c0_3] : memref<3x6x24xf32, #tpu.memory_space<vmem>>, vector<1x6x24xf32>
    %4 = vector.shape_cast %3 : vector<1x6x24xf32> to vector<6x24xf32>
    %5 = arith.index_cast %arg0 : i32 to index
    %c0_4 = arith.constant 0 : index
    %c0_5 = arith.constant 0 : index
    %6 = vector.load %arg4[%5, %c0_4, %c0_5] : memref<3x1x24xf32, #tpu.memory_space<vmem>>, vector<1x1x24xf32>
    %7 = vector.shape_cast %6 : vector<1x1x24xf32> to vector<1x24xf32>
    %cst = arith.constant dense<0.000000e+00> : vector<20x24xf32>
    %8 = tpu.matmul %1, %4, %cst {dimension_numbers = #tpu.dot_dimension_numbers<[1], [0], [0], [1], [0, 0, 1, 1], [], []>} : vector<20x6xf32>, vector<6x24xf32>, vector<20x24xf32> -> vector<20x24xf32>
    %9 = vector.broadcast %7 : vector<1x24xf32> to vector<20x24xf32>
    %10 = arith.addf %8, %9 : vector<20x24xf32>
    %cst_6 = arith.constant 0.000000e+00 : f32
    %11 = vector.broadcast %cst_6 : f32 to vector<20x24xf32>
    %12 = arith.cmpf oge, %10, %11 : vector<20x24xf32>
    %cst_7 = arith.constant 0.00999999977 : f32
    %13 = vector.broadcast %cst_7 : f32 to vector<20x24xf32>
    %14 = arith.mulf %13, %10 : vector<20x24xf32>
    %15 = arith.select %12, %10, %14 : vector<20x24xi1>, vector<20x24xf32>
    %16 = arith.index_cast %arg0 : i32 to index
    %c0_8 = arith.constant 0 : index
    %c0_9 = arith.constant 0 : index
    %17 = vector.load %arg5[%16, %c0_8, %c0_9] : memref<3x24x24xf32, #tpu.memory_space<vmem>>, vector<1x24x24xf32>
    %18 = vector.shape_cast %17 : vector<1x24x24xf32> to vector<24x24xf32>
    %19 = arith.index_cast %arg0 : i32 to index
    %c0_10 = arith.constant 0 : index
    %c0_11 = arith.constant 0 : index
    %20 = vector.load %arg6[%19, %c0_10, %c0_11] : memref<3x1x24xf32, #tpu.memory_space<vmem>>, vector<1x1x24xf32>
    %21 = vector.shape_cast %20 : vector<1x1x24xf32> to vector<1x24xf32>
    %cst_12 = arith.constant dense<0.000000e+00> : vector<20x24xf32>
    %22 = tpu.matmul %15, %18, %cst_12 {dimension_numbers = #tpu.dot_dimension_numbers<[1], [0], [0], [1], [0, 0, 1, 1], [], []>} : vector<20x24xf32>, vector<24x24xf32>, vector<20x24xf32> -> vector<20x24xf32>
    %23 = vector.broadcast %21 : vector<1x24xf32> to vector<20x24xf32>
    %24 = arith.addf %22, %23 : vector<20x24xf32>
    %cst_13 = arith.constant 0.000000e+00 : f32
    %25 = vector.broadcast %cst_13 : f32 to vector<20x24xf32>
    %26 = arith.cmpf oge, %24, %25 : vector<20x24xf32>
    %cst_14 = arith.constant 0.00999999977 : f32
    %27 = vector.broadcast %cst_14 : f32 to vector<20x24xf32>
    %28 = arith.mulf %27, %24 : vector<20x24xf32>
    %29 = arith.select %26, %24, %28 : vector<20x24xi1>, vector<20x24xf32>
    %30 = arith.index_cast %arg0 : i32 to index
    %c0_15 = arith.constant 0 : index
    %c0_16 = arith.constant 0 : index
    %31 = vector.load %arg7[%30, %c0_15, %c0_16] : memref<3x24x16xf32, #tpu.memory_space<vmem>>, vector<1x24x16xf32>
    %32 = vector.shape_cast %31 : vector<1x24x16xf32> to vector<24x16xf32>
    %33 = arith.index_cast %arg0 : i32 to index
    %c0_17 = arith.constant 0 : index
    %c0_18 = arith.constant 0 : index
    %34 = vector.load %arg8[%33, %c0_17, %c0_18] : memref<3x1x16xf32, #tpu.memory_space<vmem>>, vector<1x1x16xf32>
    %35 = vector.shape_cast %34 : vector<1x1x16xf32> to vector<1x16xf32>
    %cst_19 = arith.constant dense<0.000000e+00> : vector<20x16xf32>
    %36 = tpu.matmul %29, %32, %cst_19 {dimension_numbers = #tpu.dot_dimension_numbers<[1], [0], [0], [1], [0, 0, 1, 1], [], []>} : vector<20x24xf32>, vector<24x16xf32>, vector<20x16xf32> -> vector<20x16xf32>
    %37 = vector.broadcast %35 : vector<1x16xf32> to vector<20x16xf32>
    %38 = arith.addf %36, %37 : vector<20x16xf32>
    %39 = arith.index_cast %arg0 : i32 to index
    %c0_20 = arith.constant 0 : index
    %c0_21 = arith.constant 0 : index
    %40 = vector.load %arg9[%39, %c0_20, %c0_21] : memref<3x16x96xf32, #tpu.memory_space<vmem>>, vector<1x16x96xf32>
    %41 = vector.shape_cast %40 : vector<1x16x96xf32> to vector<16x96xf32>
    %42 = arith.index_cast %arg0 : i32 to index
    %c0_22 = arith.constant 0 : index
    %c0_23 = arith.constant 0 : index
    %43 = vector.load %arg11[%42, %c0_22, %c0_23] : memref<3x1x96xf32, #tpu.memory_space<vmem>>, vector<1x1x96xf32>
    %44 = vector.shape_cast %43 : vector<1x1x96xf32> to vector<1x96xf32>
    %cst_24 = arith.constant dense<0.000000e+00> : vector<20x96xf32>
    %45 = tpu.matmul %38, %41, %cst_24 {dimension_numbers = #tpu.dot_dimension_numbers<[1], [0], [0], [1], [0, 0, 1, 1], [], []>} : vector<20x16xf32>, vector<16x96xf32>, vector<20x96xf32> -> vector<20x96xf32>
    %46 = vector.broadcast %44 : vector<1x96xf32> to vector<20x96xf32>
    %47 = arith.addf %45, %46 : vector<20x96xf32>
    %48 = vector.shape_cast %47 : vector<20x96xf32> to vector<5x4x96xf32>
    %49 = tpu.concatenate %48, %48 in 1 : vector<5x4x96xf32>, vector<5x4x96xf32> -> vector<5x8x96xf32>
    %50 = vector.extract_strided_slice %49 {offsets = [0, 0, 0], sizes = [5, 8, 64], strides = [1, 1, 1]} : vector<5x8x96xf32> to vector<5x8x64xf32>
    %51 = vector.extract_strided_slice %49 {offsets = [0, 0, 64], sizes = [5, 8, 32], strides = [1, 1, 1]} : vector<5x8x96xf32> to vector<5x8x32xf32>
    %c0_25 = arith.constant 0 : index
    %c0_26 = arith.constant 0 : index
    %c0_27 = arith.constant 0 : index
    %c0_28 = arith.constant 0 : index
    %52 = vector.load %arg2[%c0_25, %c0_26, %c0_27, %c0_28] : memref<2x2x4x32xf32, #tpu.memory_space<vmem>>, vector<2x2x4x32xf32>
    %53 = arith.index_cast %arg0 : i32 to index
    %c0_29 = arith.constant 0 : index
    %c0_30 = arith.constant 0 : index
    %54 = vector.load %arg10[%53, %c0_29, %c0_30] : memref<3x32x96xf32, #tpu.memory_space<vmem>>, vector<1x32x96xf32>
    %55 = vector.shape_cast %54 : vector<1x32x96xf32> to vector<32x96xf32>
    %56 = arith.index_cast %arg0 : i32 to index
    %c0_31 = arith.constant 0 : index
    %c0_32 = arith.constant 0 : index
    %57 = vector.load %arg12[%56, %c0_31, %c0_32] : memref<3x1x96xf32, #tpu.memory_space<vmem>>, vector<1x1x96xf32>
    %58 = vector.shape_cast %57 : vector<1x1x96xf32> to vector<1x96xf32>
    %59 = vector.extract_strided_slice %55 {offsets = [0, 0], sizes = [32, 64], strides = [1, 1]} : vector<32x96xf32> to vector<32x64xf32>
    %60 = vector.extract_strided_slice %55 {offsets = [0, 64], sizes = [32, 32], strides = [1, 1]} : vector<32x96xf32> to vector<32x32xf32>
    %61 = vector.extract_strided_slice %58 {offsets = [0, 0], sizes = [1, 64], strides = [1, 1]} : vector<1x96xf32> to vector<1x64xf32>
    %62 = vector.extract_strided_slice %58 {offsets = [0, 64], sizes = [1, 32], strides = [1, 1]} : vector<1x96xf32> to vector<1x32xf32>
    %63 = vector.extract_strided_slice %52 {offsets = [0, 0, 0, 0], sizes = [2, 1, 4, 32], strides = [1, 1, 1, 1]} : vector<2x2x4x32xf32> to vector<2x1x4x32xf32>
    %64 = vector.shape_cast %63 : vector<2x1x4x32xf32> to vector<2x4x32xf32>
    %65 = vector.shape_cast %64 : vector<2x4x32xf32> to vector<8x32xf32>
    %cst_33 = arith.constant dense<0.000000e+00> : vector<8x64xf32>
    %66 = tpu.matmul %65, %59, %cst_33 {dimension_numbers = #tpu.dot_dimension_numbers<[1], [0], [0], [1], [0, 0, 1, 1], [], []>} : vector<8x32xf32>, vector<32x64xf32>, vector<8x64xf32> -> vector<8x64xf32>
    %67 = vector.broadcast %61 : vector<1x64xf32> to vector<8x64xf32>
    %68 = arith.addf %66, %67 : vector<8x64xf32>
    %cst_34 = arith.constant dense<0.000000e+00> : vector<8x32xf32>
    %69 = tpu.matmul %65, %60, %cst_34 {dimension_numbers = #tpu.dot_dimension_numbers<[1], [0], [0], [1], [0, 0, 1, 1], [], []>} : vector<8x32xf32>, vector<32x32xf32>, vector<8x32xf32> -> vector<8x32xf32>
    %70 = vector.broadcast %62 : vector<1x32xf32> to vector<8x32xf32>
    %71 = arith.addf %69, %70 : vector<8x32xf32>
    %72 = vector.extract_strided_slice %50 {offsets = [0, 0, 0], sizes = [1, 8, 64], strides = [1, 1, 1]} : vector<5x8x64xf32> to vector<1x8x64xf32>
    %73 = vector.shape_cast %72 : vector<1x8x64xf32> to vector<8x64xf32>
    %74 = arith.addf %73, %68 : vector<8x64xf32>
    %75 = arith.negf %74 : vector<8x64xf32>
    %76 = math.exp %75 : vector<8x64xf32>
    %cst_35 = arith.constant 1.000000e+00 : f32
    %77 = vector.broadcast %cst_35 : f32 to vector<8x64xf32>
    %78 = arith.addf %77, %76 : vector<8x64xf32>
    %79 = arith.divf %77, %78 : vector<8x64xf32>
    %80 = vector.extract_strided_slice %79 {offsets = [0, 0], sizes = [8, 32], strides = [1, 1]} : vector<8x64xf32> to vector<8x32xf32>
    %81 = vector.extract_strided_slice %79 {offsets = [0, 32], sizes = [8, 32], strides = [1, 1]} : vector<8x64xf32> to vector<8x32xf32>
    %82 = vector.extract_strided_slice %51 {offsets = [0, 0, 0], sizes = [1, 8, 32], strides = [1, 1, 1]} : vector<5x8x32xf32> to vector<1x8x32xf32>
    %83 = vector.shape_cast %82 : vector<1x8x32xf32> to vector<8x32xf32>
    %84 = arith.mulf %80, %71 : vector<8x32xf32>
    %85 = arith.addf %83, %84 : vector<8x32xf32>
    %86 = math.tanh %85 : vector<8x32xf32>
    %cst_36 = arith.constant 1.000000e+00 : f32
    %87 = vector.broadcast %cst_36 : f32 to vector<8x32xf32>
    %88 = arith.subf %87, %81 : vector<8x32xf32>
    %89 = arith.mulf %88, %86 : vector<8x32xf32>
    %90 = arith.mulf %81, %65 : vector<8x32xf32>
    %91 = arith.addf %89, %90 : vector<8x32xf32>
    %cst_37 = arith.constant dense<0.000000e+00> : vector<8x64xf32>
    %92 = tpu.matmul %91, %59, %cst_37 {dimension_numbers = #tpu.dot_dimension_numbers<[1], [0], [0], [1], [0, 0, 1, 1], [], []>} : vector<8x32xf32>, vector<32x64xf32>, vector<8x64xf32> -> vector<8x64xf32>
    %93 = vector.broadcast %61 : vector<1x64xf32> to vector<8x64xf32>
    %94 = arith.addf %92, %93 : vector<8x64xf32>
    %cst_38 = arith.constant dense<0.000000e+00> : vector<8x32xf32>
    %95 = tpu.matmul %91, %60, %cst_38 {dimension_numbers = #tpu.dot_dimension_numbers<[1], [0], [0], [1], [0, 0, 1, 1], [], []>} : vector<8x32xf32>, vector<32x32xf32>, vector<8x32xf32> -> vector<8x32xf32>
    %96 = vector.broadcast %62 : vector<1x32xf32> to vector<8x32xf32>
    %97 = arith.addf %95, %96 : vector<8x32xf32>
    %98 = vector.extract_strided_slice %50 {offsets = [1, 0, 0], sizes = [1, 8, 64], strides = [1, 1, 1]} : vector<5x8x64xf32> to vector<1x8x64xf32>
    %99 = vector.shape_cast %98 : vector<1x8x64xf32> to vector<8x64xf32>
    %100 = arith.addf %99, %94 : vector<8x64xf32>
    %101 = arith.negf %100 : vector<8x64xf32>
    %102 = math.exp %101 : vector<8x64xf32>
    %cst_39 = arith.constant 1.000000e+00 : f32
    %103 = vector.broadcast %cst_39 : f32 to vector<8x64xf32>
    %104 = arith.addf %103, %102 : vector<8x64xf32>
    %105 = arith.divf %103, %104 : vector<8x64xf32>
    %106 = vector.extract_strided_slice %105 {offsets = [0, 0], sizes = [8, 32], strides = [1, 1]} : vector<8x64xf32> to vector<8x32xf32>
    %107 = vector.extract_strided_slice %105 {offsets = [0, 32], sizes = [8, 32], strides = [1, 1]} : vector<8x64xf32> to vector<8x32xf32>
    %108 = vector.extract_strided_slice %51 {offsets = [1, 0, 0], sizes = [1, 8, 32], strides = [1, 1, 1]} : vector<5x8x32xf32> to vector<1x8x32xf32>
    %109 = vector.shape_cast %108 : vector<1x8x32xf32> to vector<8x32xf32>
    %110 = arith.mulf %106, %97 : vector<8x32xf32>
    %111 = arith.addf %109, %110 : vector<8x32xf32>
    %112 = math.tanh %111 : vector<8x32xf32>
    %cst_40 = arith.constant 1.000000e+00 : f32
    %113 = vector.broadcast %cst_40 : f32 to vector<8x32xf32>
    %114 = arith.subf %113, %107 : vector<8x32xf32>
    %115 = arith.mulf %114, %112 : vector<8x32xf32>
    %116 = arith.mulf %107, %91 : vector<8x32xf32>
    %117 = arith.addf %115, %116 : vector<8x32xf32>
    %cst_41 = arith.constant dense<0.000000e+00> : vector<8x64xf32>
    %118 = tpu.matmul %117, %59, %cst_41 {dimension_numbers = #tpu.dot_dimension_numbers<[1], [0], [0], [1], [0, 0, 1, 1], [], []>} : vector<8x32xf32>, vector<32x64xf32>, vector<8x64xf32> -> vector<8x64xf32>
    %119 = vector.broadcast %61 : vector<1x64xf32> to vector<8x64xf32>
    %120 = arith.addf %118, %119 : vector<8x64xf32>
    %cst_42 = arith.constant dense<0.000000e+00> : vector<8x32xf32>
    %121 = tpu.matmul %117, %60, %cst_42 {dimension_numbers = #tpu.dot_dimension_numbers<[1], [0], [0], [1], [0, 0, 1, 1], [], []>} : vector<8x32xf32>, vector<32x32xf32>, vector<8x32xf32> -> vector<8x32xf32>
    %122 = vector.broadcast %62 : vector<1x32xf32> to vector<8x32xf32>
    %123 = arith.addf %121, %122 : vector<8x32xf32>
    %124 = vector.extract_strided_slice %50 {offsets = [2, 0, 0], sizes = [1, 8, 64], strides = [1, 1, 1]} : vector<5x8x64xf32> to vector<1x8x64xf32>
    %125 = vector.shape_cast %124 : vector<1x8x64xf32> to vector<8x64xf32>
    %126 = arith.addf %125, %120 : vector<8x64xf32>
    %127 = arith.negf %126 : vector<8x64xf32>
    %128 = math.exp %127 : vector<8x64xf32>
    %cst_43 = arith.constant 1.000000e+00 : f32
    %129 = vector.broadcast %cst_43 : f32 to vector<8x64xf32>
    %130 = arith.addf %129, %128 : vector<8x64xf32>
    %131 = arith.divf %129, %130 : vector<8x64xf32>
    %132 = vector.extract_strided_slice %131 {offsets = [0, 0], sizes = [8, 32], strides = [1, 1]} : vector<8x64xf32> to vector<8x32xf32>
    %133 = vector.extract_strided_slice %131 {offsets = [0, 32], sizes = [8, 32], strides = [1, 1]} : vector<8x64xf32> to vector<8x32xf32>
    %134 = vector.extract_strided_slice %51 {offsets = [2, 0, 0], sizes = [1, 8, 32], strides = [1, 1, 1]} : vector<5x8x32xf32> to vector<1x8x32xf32>
    %135 = vector.shape_cast %134 : vector<1x8x32xf32> to vector<8x32xf32>
    %136 = arith.mulf %132, %123 : vector<8x32xf32>
    %137 = arith.addf %135, %136 : vector<8x32xf32>
    %138 = math.tanh %137 : vector<8x32xf32>
    %cst_44 = arith.constant 1.000000e+00 : f32
    %139 = vector.broadcast %cst_44 : f32 to vector<8x32xf32>
    %140 = arith.subf %139, %133 : vector<8x32xf32>
    %141 = arith.mulf %140, %138 : vector<8x32xf32>
    %142 = arith.mulf %133, %117 : vector<8x32xf32>
    %143 = arith.addf %141, %142 : vector<8x32xf32>
    %cst_45 = arith.constant dense<0.000000e+00> : vector<8x64xf32>
    %144 = tpu.matmul %143, %59, %cst_45 {dimension_numbers = #tpu.dot_dimension_numbers<[1], [0], [0], [1], [0, 0, 1, 1], [], []>} : vector<8x32xf32>, vector<32x64xf32>, vector<8x64xf32> -> vector<8x64xf32>
    %145 = vector.broadcast %61 : vector<1x64xf32> to vector<8x64xf32>
    %146 = arith.addf %144, %145 : vector<8x64xf32>
    %cst_46 = arith.constant dense<0.000000e+00> : vector<8x32xf32>
    %147 = tpu.matmul %143, %60, %cst_46 {dimension_numbers = #tpu.dot_dimension_numbers<[1], [0], [0], [1], [0, 0, 1, 1], [], []>} : vector<8x32xf32>, vector<32x32xf32>, vector<8x32xf32> -> vector<8x32xf32>
    %148 = vector.broadcast %62 : vector<1x32xf32> to vector<8x32xf32>
    %149 = arith.addf %147, %148 : vector<8x32xf32>
    %150 = vector.extract_strided_slice %50 {offsets = [3, 0, 0], sizes = [1, 8, 64], strides = [1, 1, 1]} : vector<5x8x64xf32> to vector<1x8x64xf32>
    %151 = vector.shape_cast %150 : vector<1x8x64xf32> to vector<8x64xf32>
    %152 = arith.addf %151, %146 : vector<8x64xf32>
    %153 = arith.negf %152 : vector<8x64xf32>
    %154 = math.exp %153 : vector<8x64xf32>
    %cst_47 = arith.constant 1.000000e+00 : f32
    %155 = vector.broadcast %cst_47 : f32 to vector<8x64xf32>
    %156 = arith.addf %155, %154 : vector<8x64xf32>
    %157 = arith.divf %155, %156 : vector<8x64xf32>
    %158 = vector.extract_strided_slice %157 {offsets = [0, 0], sizes = [8, 32], strides = [1, 1]} : vector<8x64xf32> to vector<8x32xf32>
    %159 = vector.extract_strided_slice %157 {offsets = [0, 32], sizes = [8, 32], strides = [1, 1]} : vector<8x64xf32> to vector<8x32xf32>
    %160 = vector.extract_strided_slice %51 {offsets = [3, 0, 0], sizes = [1, 8, 32], strides = [1, 1, 1]} : vector<5x8x32xf32> to vector<1x8x32xf32>
    %161 = vector.shape_cast %160 : vector<1x8x32xf32> to vector<8x32xf32>
    %162 = arith.mulf %158, %149 : vector<8x32xf32>
    %163 = arith.addf %161, %162 : vector<8x32xf32>
    %164 = math.tanh %163 : vector<8x32xf32>
    %cst_48 = arith.constant 1.000000e+00 : f32
    %165 = vector.broadcast %cst_48 : f32 to vector<8x32xf32>
    %166 = arith.subf %165, %159 : vector<8x32xf32>
    %167 = arith.mulf %166, %164 : vector<8x32xf32>
    %168 = arith.mulf %159, %143 : vector<8x32xf32>
    %169 = arith.addf %167, %168 : vector<8x32xf32>
    %cst_49 = arith.constant dense<0.000000e+00> : vector<8x64xf32>
    %170 = tpu.matmul %169, %59, %cst_49 {dimension_numbers = #tpu.dot_dimension_numbers<[1], [0], [0], [1], [0, 0, 1, 1], [], []>} : vector<8x32xf32>, vector<32x64xf32>, vector<8x64xf32> -> vector<8x64xf32>
    %171 = vector.broadcast %61 : vector<1x64xf32> to vector<8x64xf32>
    %172 = arith.addf %170, %171 : vector<8x64xf32>
    %cst_50 = arith.constant dense<0.000000e+00> : vector<8x32xf32>
    %173 = tpu.matmul %169, %60, %cst_50 {dimension_numbers = #tpu.dot_dimension_numbers<[1], [0], [0], [1], [0, 0, 1, 1], [], []>} : vector<8x32xf32>, vector<32x32xf32>, vector<8x32xf32> -> vector<8x32xf32>
    %174 = vector.broadcast %62 : vector<1x32xf32> to vector<8x32xf32>
    %175 = arith.addf %173, %174 : vector<8x32xf32>
    %176 = vector.extract_strided_slice %50 {offsets = [4, 0, 0], sizes = [1, 8, 64], strides = [1, 1, 1]} : vector<5x8x64xf32> to vector<1x8x64xf32>
    %177 = vector.shape_cast %176 : vector<1x8x64xf32> to vector<8x64xf32>
    %178 = arith.addf %177, %172 : vector<8x64xf32>
    %179 = arith.negf %178 : vector<8x64xf32>
    %180 = math.exp %179 : vector<8x64xf32>
    %cst_51 = arith.constant 1.000000e+00 : f32
    %181 = vector.broadcast %cst_51 : f32 to vector<8x64xf32>
    %182 = arith.addf %181, %180 : vector<8x64xf32>
    %183 = arith.divf %181, %182 : vector<8x64xf32>
    %184 = vector.extract_strided_slice %183 {offsets = [0, 0], sizes = [8, 32], strides = [1, 1]} : vector<8x64xf32> to vector<8x32xf32>
    %185 = vector.extract_strided_slice %183 {offsets = [0, 32], sizes = [8, 32], strides = [1, 1]} : vector<8x64xf32> to vector<8x32xf32>
    %186 = vector.extract_strided_slice %51 {offsets = [4, 0, 0], sizes = [1, 8, 32], strides = [1, 1, 1]} : vector<5x8x32xf32> to vector<1x8x32xf32>
    %187 = vector.shape_cast %186 : vector<1x8x32xf32> to vector<8x32xf32>
    %188 = arith.mulf %184, %175 : vector<8x32xf32>
    %189 = arith.addf %187, %188 : vector<8x32xf32>
    %190 = math.tanh %189 : vector<8x32xf32>
    %cst_52 = arith.constant 1.000000e+00 : f32
    %191 = vector.broadcast %cst_52 : f32 to vector<8x32xf32>
    %192 = arith.subf %191, %185 : vector<8x32xf32>
    %193 = arith.mulf %192, %190 : vector<8x32xf32>
    %194 = arith.mulf %185, %169 : vector<8x32xf32>
    %195 = arith.addf %193, %194 : vector<8x32xf32>
    %196 = vector.shape_cast %195 : vector<8x32xf32> to vector<2x4x32xf32>
    %197 = vector.shape_cast %91 : vector<8x32xf32> to vector<1x8x32xf32>
    %198 = vector.shape_cast %117 : vector<8x32xf32> to vector<1x8x32xf32>
    %199 = vector.shape_cast %143 : vector<8x32xf32> to vector<1x8x32xf32>
    %200 = vector.shape_cast %169 : vector<8x32xf32> to vector<1x8x32xf32>
    %201 = vector.shape_cast %195 : vector<8x32xf32> to vector<1x8x32xf32>
    %202 = tpu.concatenate %197, %198, %199, %200, %201 in 0 : vector<1x8x32xf32>, vector<1x8x32xf32>, vector<1x8x32xf32>, vector<1x8x32xf32>, vector<1x8x32xf32> -> vector<5x8x32xf32>
    %203 = arith.index_cast %arg0 : i32 to index
    %c0_53 = arith.constant 0 : index
    %c0_54 = arith.constant 0 : index
    %204 = vector.load %arg14[%203, %c0_53, %c0_54] : memref<3x32x96xf32, #tpu.memory_space<vmem>>, vector<1x32x96xf32>
    %205 = vector.shape_cast %204 : vector<1x32x96xf32> to vector<32x96xf32>
    %206 = arith.index_cast %arg0 : i32 to index
    %c0_55 = arith.constant 0 : index
    %c0_56 = arith.constant 0 : index
    %207 = vector.load %arg16[%206, %c0_55, %c0_56] : memref<3x1x96xf32, #tpu.memory_space<vmem>>, vector<1x1x96xf32>
    %208 = vector.shape_cast %207 : vector<1x1x96xf32> to vector<1x96xf32>
    %209 = vector.extract_strided_slice %205 {offsets = [0, 0], sizes = [32, 64], strides = [1, 1]} : vector<32x96xf32> to vector<32x64xf32>
    %210 = vector.extract_strided_slice %205 {offsets = [0, 64], sizes = [32, 32], strides = [1, 1]} : vector<32x96xf32> to vector<32x32xf32>
    %211 = vector.extract_strided_slice %208 {offsets = [0, 0], sizes = [1, 64], strides = [1, 1]} : vector<1x96xf32> to vector<1x64xf32>
    %212 = vector.extract_strided_slice %208 {offsets = [0, 64], sizes = [1, 32], strides = [1, 1]} : vector<1x96xf32> to vector<1x32xf32>
    %213 = arith.index_cast %arg0 : i32 to index
    %c0_57 = arith.constant 0 : index
    %c0_58 = arith.constant 0 : index
    %214 = vector.load %arg13[%213, %c0_57, %c0_58] : memref<3x32x96xf32, #tpu.memory_space<vmem>>, vector<1x32x96xf32>
    %215 = vector.shape_cast %214 : vector<1x32x96xf32> to vector<32x96xf32>
    %216 = arith.index_cast %arg0 : i32 to index
    %c0_59 = arith.constant 0 : index
    %c0_60 = arith.constant 0 : index
    %217 = vector.load %arg15[%216, %c0_59, %c0_60] : memref<3x1x96xf32, #tpu.memory_space<vmem>>, vector<1x1x96xf32>
    %218 = vector.shape_cast %217 : vector<1x1x96xf32> to vector<1x96xf32>
    %219 = vector.shape_cast %202 : vector<5x8x32xf32> to vector<40x32xf32>
    %cst_61 = arith.constant dense<0.000000e+00> : vector<40x96xf32>
    %220 = tpu.matmul %219, %215, %cst_61 {dimension_numbers = #tpu.dot_dimension_numbers<[1], [0], [0], [1], [0, 0, 1, 1], [], []>} : vector<40x32xf32>, vector<32x96xf32>, vector<40x96xf32> -> vector<40x96xf32>
    %221 = vector.broadcast %218 : vector<1x96xf32> to vector<40x96xf32>
    %222 = arith.addf %220, %221 : vector<40x96xf32>
    %223 = vector.shape_cast %222 : vector<40x96xf32> to vector<5x8x96xf32>
    %224 = vector.extract_strided_slice %223 {offsets = [0, 0, 0], sizes = [5, 8, 64], strides = [1, 1, 1]} : vector<5x8x96xf32> to vector<5x8x64xf32>
    %225 = vector.extract_strided_slice %223 {offsets = [0, 0, 64], sizes = [5, 8, 32], strides = [1, 1, 1]} : vector<5x8x96xf32> to vector<5x8x32xf32>
    %226 = vector.extract_strided_slice %52 {offsets = [0, 1, 0, 0], sizes = [2, 1, 4, 32], strides = [1, 1, 1, 1]} : vector<2x2x4x32xf32> to vector<2x1x4x32xf32>
    %227 = vector.shape_cast %226 : vector<2x1x4x32xf32> to vector<2x4x32xf32>
    %228 = vector.shape_cast %227 : vector<2x4x32xf32> to vector<8x32xf32>
    %cst_62 = arith.constant dense<0.000000e+00> : vector<8x64xf32>
    %229 = tpu.matmul %228, %209, %cst_62 {dimension_numbers = #tpu.dot_dimension_numbers<[1], [0], [0], [1], [0, 0, 1, 1], [], []>} : vector<8x32xf32>, vector<32x64xf32>, vector<8x64xf32> -> vector<8x64xf32>
    %230 = vector.broadcast %211 : vector<1x64xf32> to vector<8x64xf32>
    %231 = arith.addf %229, %230 : vector<8x64xf32>
    %cst_63 = arith.constant dense<0.000000e+00> : vector<8x32xf32>
    %232 = tpu.matmul %228, %210, %cst_63 {dimension_numbers = #tpu.dot_dimension_numbers<[1], [0], [0], [1], [0, 0, 1, 1], [], []>} : vector<8x32xf32>, vector<32x32xf32>, vector<8x32xf32> -> vector<8x32xf32>
    %233 = vector.broadcast %212 : vector<1x32xf32> to vector<8x32xf32>
    %234 = arith.addf %232, %233 : vector<8x32xf32>
    %235 = vector.extract_strided_slice %224 {offsets = [0, 0, 0], sizes = [1, 8, 64], strides = [1, 1, 1]} : vector<5x8x64xf32> to vector<1x8x64xf32>
    %236 = vector.shape_cast %235 : vector<1x8x64xf32> to vector<8x64xf32>
    %237 = arith.addf %236, %231 : vector<8x64xf32>
    %238 = arith.negf %237 : vector<8x64xf32>
    %239 = math.exp %238 : vector<8x64xf32>
    %cst_64 = arith.constant 1.000000e+00 : f32
    %240 = vector.broadcast %cst_64 : f32 to vector<8x64xf32>
    %241 = arith.addf %240, %239 : vector<8x64xf32>
    %242 = arith.divf %240, %241 : vector<8x64xf32>
    %243 = vector.extract_strided_slice %242 {offsets = [0, 0], sizes = [8, 32], strides = [1, 1]} : vector<8x64xf32> to vector<8x32xf32>
    %244 = vector.extract_strided_slice %242 {offsets = [0, 32], sizes = [8, 32], strides = [1, 1]} : vector<8x64xf32> to vector<8x32xf32>
    %245 = vector.extract_strided_slice %225 {offsets = [0, 0, 0], sizes = [1, 8, 32], strides = [1, 1, 1]} : vector<5x8x32xf32> to vector<1x8x32xf32>
    %246 = vector.shape_cast %245 : vector<1x8x32xf32> to vector<8x32xf32>
    %247 = arith.mulf %243, %234 : vector<8x32xf32>
    %248 = arith.addf %246, %247 : vector<8x32xf32>
    %249 = math.tanh %248 : vector<8x32xf32>
    %cst_65 = arith.constant 1.000000e+00 : f32
    %250 = vector.broadcast %cst_65 : f32 to vector<8x32xf32>
    %251 = arith.subf %250, %244 : vector<8x32xf32>
    %252 = arith.mulf %251, %249 : vector<8x32xf32>
    %253 = arith.mulf %244, %228 : vector<8x32xf32>
    %254 = arith.addf %252, %253 : vector<8x32xf32>
    %cst_66 = arith.constant dense<0.000000e+00> : vector<8x64xf32>
    %255 = tpu.matmul %254, %209, %cst_66 {dimension_numbers = #tpu.dot_dimension_numbers<[1], [0], [0], [1], [0, 0, 1, 1], [], []>} : vector<8x32xf32>, vector<32x64xf32>, vector<8x64xf32> -> vector<8x64xf32>
    %256 = vector.broadcast %211 : vector<1x64xf32> to vector<8x64xf32>
    %257 = arith.addf %255, %256 : vector<8x64xf32>
    %cst_67 = arith.constant dense<0.000000e+00> : vector<8x32xf32>
    %258 = tpu.matmul %254, %210, %cst_67 {dimension_numbers = #tpu.dot_dimension_numbers<[1], [0], [0], [1], [0, 0, 1, 1], [], []>} : vector<8x32xf32>, vector<32x32xf32>, vector<8x32xf32> -> vector<8x32xf32>
    %259 = vector.broadcast %212 : vector<1x32xf32> to vector<8x32xf32>
    %260 = arith.addf %258, %259 : vector<8x32xf32>
    %261 = vector.extract_strided_slice %224 {offsets = [1, 0, 0], sizes = [1, 8, 64], strides = [1, 1, 1]} : vector<5x8x64xf32> to vector<1x8x64xf32>
    %262 = vector.shape_cast %261 : vector<1x8x64xf32> to vector<8x64xf32>
    %263 = arith.addf %262, %257 : vector<8x64xf32>
    %264 = arith.negf %263 : vector<8x64xf32>
    %265 = math.exp %264 : vector<8x64xf32>
    %cst_68 = arith.constant 1.000000e+00 : f32
    %266 = vector.broadcast %cst_68 : f32 to vector<8x64xf32>
    %267 = arith.addf %266, %265 : vector<8x64xf32>
    %268 = arith.divf %266, %267 : vector<8x64xf32>
    %269 = vector.extract_strided_slice %268 {offsets = [0, 0], sizes = [8, 32], strides = [1, 1]} : vector<8x64xf32> to vector<8x32xf32>
    %270 = vector.extract_strided_slice %268 {offsets = [0, 32], sizes = [8, 32], strides = [1, 1]} : vector<8x64xf32> to vector<8x32xf32>
    %271 = vector.extract_strided_slice %225 {offsets = [1, 0, 0], sizes = [1, 8, 32], strides = [1, 1, 1]} : vector<5x8x32xf32> to vector<1x8x32xf32>
    %272 = vector.shape_cast %271 : vector<1x8x32xf32> to vector<8x32xf32>
    %273 = arith.mulf %269, %260 : vector<8x32xf32>
    %274 = arith.addf %272, %273 : vector<8x32xf32>
    %275 = math.tanh %274 : vector<8x32xf32>
    %cst_69 = arith.constant 1.000000e+00 : f32
    %276 = vector.broadcast %cst_69 : f32 to vector<8x32xf32>
    %277 = arith.subf %276, %270 : vector<8x32xf32>
    %278 = arith.mulf %277, %275 : vector<8x32xf32>
    %279 = arith.mulf %270, %254 : vector<8x32xf32>
    %280 = arith.addf %278, %279 : vector<8x32xf32>
    %cst_70 = arith.constant dense<0.000000e+00> : vector<8x64xf32>
    %281 = tpu.matmul %280, %209, %cst_70 {dimension_numbers = #tpu.dot_dimension_numbers<[1], [0], [0], [1], [0, 0, 1, 1], [], []>} : vector<8x32xf32>, vector<32x64xf32>, vector<8x64xf32> -> vector<8x64xf32>
    %282 = vector.broadcast %211 : vector<1x64xf32> to vector<8x64xf32>
    %283 = arith.addf %281, %282 : vector<8x64xf32>
    %cst_71 = arith.constant dense<0.000000e+00> : vector<8x32xf32>
    %284 = tpu.matmul %280, %210, %cst_71 {dimension_numbers = #tpu.dot_dimension_numbers<[1], [0], [0], [1], [0, 0, 1, 1], [], []>} : vector<8x32xf32>, vector<32x32xf32>, vector<8x32xf32> -> vector<8x32xf32>
    %285 = vector.broadcast %212 : vector<1x32xf32> to vector<8x32xf32>
    %286 = arith.addf %284, %285 : vector<8x32xf32>
    %287 = vector.extract_strided_slice %224 {offsets = [2, 0, 0], sizes = [1, 8, 64], strides = [1, 1, 1]} : vector<5x8x64xf32> to vector<1x8x64xf32>
    %288 = vector.shape_cast %287 : vector<1x8x64xf32> to vector<8x64xf32>
    %289 = arith.addf %288, %283 : vector<8x64xf32>
    %290 = arith.negf %289 : vector<8x64xf32>
    %291 = math.exp %290 : vector<8x64xf32>
    %cst_72 = arith.constant 1.000000e+00 : f32
    %292 = vector.broadcast %cst_72 : f32 to vector<8x64xf32>
    %293 = arith.addf %292, %291 : vector<8x64xf32>
    %294 = arith.divf %292, %293 : vector<8x64xf32>
    %295 = vector.extract_strided_slice %294 {offsets = [0, 0], sizes = [8, 32], strides = [1, 1]} : vector<8x64xf32> to vector<8x32xf32>
    %296 = vector.extract_strided_slice %294 {offsets = [0, 32], sizes = [8, 32], strides = [1, 1]} : vector<8x64xf32> to vector<8x32xf32>
    %297 = vector.extract_strided_slice %225 {offsets = [2, 0, 0], sizes = [1, 8, 32], strides = [1, 1, 1]} : vector<5x8x32xf32> to vector<1x8x32xf32>
    %298 = vector.shape_cast %297 : vector<1x8x32xf32> to vector<8x32xf32>
    %299 = arith.mulf %295, %286 : vector<8x32xf32>
    %300 = arith.addf %298, %299 : vector<8x32xf32>
    %301 = math.tanh %300 : vector<8x32xf32>
    %cst_73 = arith.constant 1.000000e+00 : f32
    %302 = vector.broadcast %cst_73 : f32 to vector<8x32xf32>
    %303 = arith.subf %302, %296 : vector<8x32xf32>
    %304 = arith.mulf %303, %301 : vector<8x32xf32>
    %305 = arith.mulf %296, %280 : vector<8x32xf32>
    %306 = arith.addf %304, %305 : vector<8x32xf32>
    %cst_74 = arith.constant dense<0.000000e+00> : vector<8x64xf32>
    %307 = tpu.matmul %306, %209, %cst_74 {dimension_numbers = #tpu.dot_dimension_numbers<[1], [0], [0], [1], [0, 0, 1, 1], [], []>} : vector<8x32xf32>, vector<32x64xf32>, vector<8x64xf32> -> vector<8x64xf32>
    %308 = vector.broadcast %211 : vector<1x64xf32> to vector<8x64xf32>
    %309 = arith.addf %307, %308 : vector<8x64xf32>
    %cst_75 = arith.constant dense<0.000000e+00> : vector<8x32xf32>
    %310 = tpu.matmul %306, %210, %cst_75 {dimension_numbers = #tpu.dot_dimension_numbers<[1], [0], [0], [1], [0, 0, 1, 1], [], []>} : vector<8x32xf32>, vector<32x32xf32>, vector<8x32xf32> -> vector<8x32xf32>
    %311 = vector.broadcast %212 : vector<1x32xf32> to vector<8x32xf32>
    %312 = arith.addf %310, %311 : vector<8x32xf32>
    %313 = vector.extract_strided_slice %224 {offsets = [3, 0, 0], sizes = [1, 8, 64], strides = [1, 1, 1]} : vector<5x8x64xf32> to vector<1x8x64xf32>
    %314 = vector.shape_cast %313 : vector<1x8x64xf32> to vector<8x64xf32>
    %315 = arith.addf %314, %309 : vector<8x64xf32>
    %316 = arith.negf %315 : vector<8x64xf32>
    %317 = math.exp %316 : vector<8x64xf32>
    %cst_76 = arith.constant 1.000000e+00 : f32
    %318 = vector.broadcast %cst_76 : f32 to vector<8x64xf32>
    %319 = arith.addf %318, %317 : vector<8x64xf32>
    %320 = arith.divf %318, %319 : vector<8x64xf32>
    %321 = vector.extract_strided_slice %320 {offsets = [0, 0], sizes = [8, 32], strides = [1, 1]} : vector<8x64xf32> to vector<8x32xf32>
    %322 = vector.extract_strided_slice %320 {offsets = [0, 32], sizes = [8, 32], strides = [1, 1]} : vector<8x64xf32> to vector<8x32xf32>
    %323 = vector.extract_strided_slice %225 {offsets = [3, 0, 0], sizes = [1, 8, 32], strides = [1, 1, 1]} : vector<5x8x32xf32> to vector<1x8x32xf32>
    %324 = vector.shape_cast %323 : vector<1x8x32xf32> to vector<8x32xf32>
    %325 = arith.mulf %321, %312 : vector<8x32xf32>
    %326 = arith.addf %324, %325 : vector<8x32xf32>
    %327 = math.tanh %326 : vector<8x32xf32>
    %cst_77 = arith.constant 1.000000e+00 : f32
    %328 = vector.broadcast %cst_77 : f32 to vector<8x32xf32>
    %329 = arith.subf %328, %322 : vector<8x32xf32>
    %330 = arith.mulf %329, %327 : vector<8x32xf32>
    %331 = arith.mulf %322, %306 : vector<8x32xf32>
    %332 = arith.addf %330, %331 : vector<8x32xf32>
    %cst_78 = arith.constant dense<0.000000e+00> : vector<8x64xf32>
    %333 = tpu.matmul %332, %209, %cst_78 {dimension_numbers = #tpu.dot_dimension_numbers<[1], [0], [0], [1], [0, 0, 1, 1], [], []>} : vector<8x32xf32>, vector<32x64xf32>, vector<8x64xf32> -> vector<8x64xf32>
    %334 = vector.broadcast %211 : vector<1x64xf32> to vector<8x64xf32>
    %335 = arith.addf %333, %334 : vector<8x64xf32>
    %cst_79 = arith.constant dense<0.000000e+00> : vector<8x32xf32>
    %336 = tpu.matmul %332, %210, %cst_79 {dimension_numbers = #tpu.dot_dimension_numbers<[1], [0], [0], [1], [0, 0, 1, 1], [], []>} : vector<8x32xf32>, vector<32x32xf32>, vector<8x32xf32> -> vector<8x32xf32>
    %337 = vector.broadcast %212 : vector<1x32xf32> to vector<8x32xf32>
    %338 = arith.addf %336, %337 : vector<8x32xf32>
    %339 = vector.extract_strided_slice %224 {offsets = [4, 0, 0], sizes = [1, 8, 64], strides = [1, 1, 1]} : vector<5x8x64xf32> to vector<1x8x64xf32>
    %340 = vector.shape_cast %339 : vector<1x8x64xf32> to vector<8x64xf32>
    %341 = arith.addf %340, %335 : vector<8x64xf32>
    %342 = arith.negf %341 : vector<8x64xf32>
    %343 = math.exp %342 : vector<8x64xf32>
    %cst_80 = arith.constant 1.000000e+00 : f32
    %344 = vector.broadcast %cst_80 : f32 to vector<8x64xf32>
    %345 = arith.addf %344, %343 : vector<8x64xf32>
    %346 = arith.divf %344, %345 : vector<8x64xf32>
    %347 = vector.extract_strided_slice %346 {offsets = [0, 0], sizes = [8, 32], strides = [1, 1]} : vector<8x64xf32> to vector<8x32xf32>
    %348 = vector.extract_strided_slice %346 {offsets = [0, 32], sizes = [8, 32], strides = [1, 1]} : vector<8x64xf32> to vector<8x32xf32>
    %349 = vector.extract_strided_slice %225 {offsets = [4, 0, 0], sizes = [1, 8, 32], strides = [1, 1, 1]} : vector<5x8x32xf32> to vector<1x8x32xf32>
    %350 = vector.shape_cast %349 : vector<1x8x32xf32> to vector<8x32xf32>
    %351 = arith.mulf %347, %338 : vector<8x32xf32>
    %352 = arith.addf %350, %351 : vector<8x32xf32>
    %353 = math.tanh %352 : vector<8x32xf32>
    %cst_81 = arith.constant 1.000000e+00 : f32
    %354 = vector.broadcast %cst_81 : f32 to vector<8x32xf32>
    %355 = arith.subf %354, %348 : vector<8x32xf32>
    %356 = arith.mulf %355, %353 : vector<8x32xf32>
    %357 = arith.mulf %348, %332 : vector<8x32xf32>
    %358 = arith.addf %356, %357 : vector<8x32xf32>
    %359 = vector.shape_cast %358 : vector<8x32xf32> to vector<2x4x32xf32>
    %360 = vector.shape_cast %254 : vector<8x32xf32> to vector<1x8x32xf32>
    %361 = vector.shape_cast %280 : vector<8x32xf32> to vector<1x8x32xf32>
    %362 = vector.shape_cast %306 : vector<8x32xf32> to vector<1x8x32xf32>
    %363 = vector.shape_cast %332 : vector<8x32xf32> to vector<1x8x32xf32>
    %364 = vector.shape_cast %358 : vector<8x32xf32> to vector<1x8x32xf32>
    %365 = tpu.concatenate %360, %361, %362, %363, %364 in 0 : vector<1x8x32xf32>, vector<1x8x32xf32>, vector<1x8x32xf32>, vector<1x8x32xf32>, vector<1x8x32xf32> -> vector<5x8x32xf32>
    %366 = vector.shape_cast %196 : vector<2x4x32xf32> to vector<2x1x4x32xf32>
    %367 = vector.shape_cast %359 : vector<2x4x32xf32> to vector<2x1x4x32xf32>
    %368 = tpu.concatenate %366, %367 in 1 : vector<2x1x4x32xf32>, vector<2x1x4x32xf32> -> vector<2x2x4x32xf32>
    %c0_82 = arith.constant 0 : index
    %c0_83 = arith.constant 0 : index
    %c0_84 = arith.constant 0 : index
    %c0_85 = arith.constant 0 : index
    %369 = vector.load %arg22[%c0_82, %c0_83, %c0_84, %c0_85] : memref<2x2x4x32xf32, #tpu.memory_space<vmem>>, vector<2x2x4x32xf32>
    tpu.vector_store %arg22[%c0_82, %c0_83, %c0_84, %c0_85], %368 {strides = array<i32>} : memref<2x2x4x32xf32, #tpu.memory_space<vmem>>, vector<2x2x4x32xf32>,
    %370 = vector.shape_cast %365 : vector<5x8x32xf32> to vector<40x32xf32>
    %371 = arith.index_cast %arg0 : i32 to index
    %c0_86 = arith.constant 0 : index
    %c0_87 = arith.constant 0 : index
    %372 = vector.load %arg17[%371, %c0_86, %c0_87] : memref<3x32x24xf32, #tpu.memory_space<vmem>>, vector<1x32x24xf32>
    %373 = vector.shape_cast %372 : vector<1x32x24xf32> to vector<32x24xf32>
    %374 = arith.index_cast %arg0 : i32 to index
    %c0_88 = arith.constant 0 : index
    %c0_89 = arith.constant 0 : index
    %375 = vector.load %arg18[%374, %c0_88, %c0_89] : memref<3x1x24xf32, #tpu.memory_space<vmem>>, vector<1x1x24xf32>
    %376 = vector.shape_cast %375 : vector<1x1x24xf32> to vector<1x24xf32>
    %cst_90 = arith.constant dense<0.000000e+00> : vector<40x24xf32>
    %377 = tpu.matmul %370, %373, %cst_90 {dimension_numbers = #tpu.dot_dimension_numbers<[1], [0], [0], [1], [0, 0, 1, 1], [], []>} : vector<40x32xf32>, vector<32x24xf32>, vector<40x24xf32> -> vector<40x24xf32>
    %378 = vector.broadcast %376 : vector<1x24xf32> to vector<40x24xf32>
    %379 = arith.addf %377, %378 : vector<40x24xf32>
    %cst_91 = arith.constant 0.000000e+00 : f32
    %380 = vector.broadcast %cst_91 : f32 to vector<40x24xf32>
    %381 = arith.cmpf oge, %379, %380 : vector<40x24xf32>
    %cst_92 = arith.constant 0.00999999977 : f32
    %382 = vector.broadcast %cst_92 : f32 to vector<40x24xf32>
    %383 = arith.mulf %382, %379 : vector<40x24xf32>
    %384 = arith.select %381, %379, %383 : vector<40x24xi1>, vector<40x24xf32>
    %385 = arith.index_cast %arg0 : i32 to index
    %c0_93 = arith.constant 0 : index
    %c0_94 = arith.constant 0 : index
    %386 = vector.load %arg19[%385, %c0_93, %c0_94] : memref<3x24x8xf32, #tpu.memory_space<vmem>>, vector<1x24x8xf32>
    %387 = vector.shape_cast %386 : vector<1x24x8xf32> to vector<24x8xf32>
    %388 = arith.index_cast %arg0 : i32 to index
    %c0_95 = arith.constant 0 : index
    %c0_96 = arith.constant 0 : index
    %389 = vector.load %arg20[%388, %c0_95, %c0_96] : memref<3x1x8xf32, #tpu.memory_space<vmem>>, vector<1x1x8xf32>
    %390 = vector.shape_cast %389 : vector<1x1x8xf32> to vector<1x8xf32>
    %cst_97 = arith.constant dense<0.000000e+00> : vector<40x8xf32>
    %391 = tpu.matmul %384, %387, %cst_97 {dimension_numbers = #tpu.dot_dimension_numbers<[1], [0], [0], [1], [0, 0, 1, 1], [], []>} : vector<40x24xf32>, vector<24x8xf32>, vector<40x8xf32> -> vector<40x8xf32>
    %392 = vector.broadcast %390 : vector<1x8xf32> to vector<40x8xf32>
    %393 = arith.addf %391, %392 : vector<40x8xf32>
    %394 = vector.shape_cast %393 : vector<40x8xf32> to vector<5x2x4x8xf32>
    %395 = vector.extract_strided_slice %394 {offsets = [0, 0, 0, 0], sizes = [5, 1, 4, 8], strides = [1, 1, 1, 1]} : vector<5x2x4x8xf32> to vector<5x1x4x8xf32>
    %396 = vector.shape_cast %395 : vector<5x1x4x8xf32> to vector<5x4x8xf32>
    %c0_98 = arith.constant 0 : index
    %c0_99 = arith.constant 0 : index
    %c0_100 = arith.constant 0 : index
    %c0_101 = arith.constant 0 : index
    %397 = vector.load %arg21[%c0_98, %c0_99, %c0_100, %c0_101] : memref<2x5x4x8xf32, #tpu.memory_space<vmem>>, vector<1x5x4x8xf32>
    %398 = vector.shape_cast %397 : vector<1x5x4x8xf32> to vector<5x4x8xf32>
    %399 = vector.shape_cast %396 : vector<5x4x8xf32> to vector<1x5x4x8xf32>
    tpu.vector_store %arg21[%c0_98, %c0_99, %c0_100, %c0_101], %399 {strides = array<i32>} : memref<2x5x4x8xf32, #tpu.memory_space<vmem>>, vector<1x5x4x8xf32>,
    %400 = vector.extract_strided_slice %394 {offsets = [0, 1, 0, 0], sizes = [5, 1, 4, 8], strides = [1, 1, 1, 1]} : vector<5x2x4x8xf32> to vector<5x1x4x8xf32>
    %401 = vector.shape_cast %400 : vector<5x1x4x8xf32> to vector<5x4x8xf32>
    %c1 = arith.constant 1 : index
    %c0_102 = arith.constant 0 : index
    %c0_103 = arith.constant 0 : index
    %c0_104 = arith.constant 0 : index
    %402 = vector.load %arg21[%c1, %c0_102, %c0_103, %c0_104] : memref<2x5x4x8xf32, #tpu.memory_space<vmem>>, vector<1x5x4x8xf32>
    %403 = vector.shape_cast %402 : vector<1x5x4x8xf32> to vector<5x4x8xf32>
    %404 = vector.shape_cast %401 : vector<5x4x8xf32> to vector<1x5x4x8xf32>
    tpu.vector_store %arg21[%c1, %c0_102, %c0_103, %c0_104], %404 {strides = array<i32>} : memref<2x5x4x8xf32, #tpu.memory_space<vmem>>, vector<1x5x4x8xf32>,
    return
  }
  func.func @transform_0(%arg0: i32) -> (i32, i32, i32) {
    %c0_i32 = arith.constant 0 : i32
    %c0_i32_0 = arith.constant 0 : i32
    %c0_i32_1 = arith.constant 0 : i32
    %c0_i32_2 = arith.constant 0 : i32
    return %c0_i32, %c0_i32_0, %c0_i32_1 : i32, i32, i32
  }
  func.func @transform_1(%arg0: i32) -> (i32, i32, i32, i32) {
    %c0_i32 = arith.constant 0 : i32
    %c0_i32_0 = arith.constant 0 : i32
    %c0_i32_1 = arith.constant 0 : i32
    %c0_i32_2 = arith.constant 0 : i32
    return %arg0, %c0_i32, %c0_i32_0, %c0_i32_1 : i32, i32, i32, i32
  }
  func.func @transform_2(%arg0: i32) -> (i32, i32, i32) {
    %c0_i32 = arith.constant 0 : i32
    %c0_i32_0 = arith.constant 0 : i32
    %c0_i32_1 = arith.constant 0 : i32
    %c0_i32_2 = arith.constant 0 : i32
    return %c0_i32, %c0_i32_0, %c0_i32_1 : i32, i32, i32
  }
  func.func @transform_3(%arg0: i32) -> (i32, i32, i32) {
    %c0_i32 = arith.constant 0 : i32
    %c0_i32_0 = arith.constant 0 : i32
    %c0_i32_1 = arith.constant 0 : i32
    %c0_i32_2 = arith.constant 0 : i32
    return %c0_i32, %c0_i32_0, %c0_i32_1 : i32, i32, i32
  }
  func.func @transform_4(%arg0: i32) -> (i32, i32, i32) {
    %c0_i32 = arith.constant 0 : i32
    %c0_i32_0 = arith.constant 0 : i32
    %c0_i32_1 = arith.constant 0 : i32
    %c0_i32_2 = arith.constant 0 : i32
    return %c0_i32, %c0_i32_0, %c0_i32_1 : i32, i32, i32
  }
  func.func @transform_5(%arg0: i32) -> (i32, i32, i32) {
    %c0_i32 = arith.constant 0 : i32
    %c0_i32_0 = arith.constant 0 : i32
    %c0_i32_1 = arith.constant 0 : i32
    %c0_i32_2 = arith.constant 0 : i32
    return %c0_i32, %c0_i32_0, %c0_i32_1 : i32, i32, i32
  }
  func.func @transform_6(%arg0: i32) -> (i32, i32, i32) {
    %c0_i32 = arith.constant 0 : i32
    %c0_i32_0 = arith.constant 0 : i32
    %c0_i32_1 = arith.constant 0 : i32
    %c0_i32_2 = arith.constant 0 : i32
    return %c0_i32, %c0_i32_0, %c0_i32_1 : i32, i32, i32
  }
  func.func @transform_7(%arg0: i32) -> (i32, i32, i32) {
    %c0_i32 = arith.constant 0 : i32
    %c0_i32_0 = arith.constant 0 : i32
    %c0_i32_1 = arith.constant 0 : i32
    %c0_i32_2 = arith.constant 0 : i32
    return %c0_i32, %c0_i32_0, %c0_i32_1 : i32, i32, i32
  }
  func.func @transform_8(%arg0: i32) -> (i32, i32, i32) {
    %c0_i32 = arith.constant 0 : i32
    %c0_i32_0 = arith.constant 0 : i32
    %c0_i32_1 = arith.constant 0 : i32
    %c0_i32_2 = arith.constant 0 : i32
    return %c0_i32, %c0_i32_0, %c0_i32_1 : i32, i32, i32
  }
  func.func @transform_9(%arg0: i32) -> (i32, i32, i32) {
    %c0_i32 = arith.constant 0 : i32
    %c0_i32_0 = arith.constant 0 : i32
    %c0_i32_1 = arith.constant 0 : i32
    %c0_i32_2 = arith.constant 0 : i32
    return %c0_i32, %c0_i32_0, %c0_i32_1 : i32, i32, i32
  }
  func.func @transform_10(%arg0: i32) -> (i32, i32, i32) {
    %c0_i32 = arith.constant 0 : i32
    %c0_i32_0 = arith.constant 0 : i32
    %c0_i32_1 = arith.constant 0 : i32
    %c0_i32_2 = arith.constant 0 : i32
    return %c0_i32, %c0_i32_0, %c0_i32_1 : i32, i32, i32
  }
  func.func @transform_11(%arg0: i32) -> (i32, i32, i32) {
    %c0_i32 = arith.constant 0 : i32
    %c0_i32_0 = arith.constant 0 : i32
    %c0_i32_1 = arith.constant 0 : i32
    %c0_i32_2 = arith.constant 0 : i32
    return %c0_i32, %c0_i32_0, %c0_i32_1 : i32, i32, i32
  }
  func.func @transform_12(%arg0: i32) -> (i32, i32, i32) {
    %c0_i32 = arith.constant 0 : i32
    %c0_i32_0 = arith.constant 0 : i32
    %c0_i32_1 = arith.constant 0 : i32
    %c0_i32_2 = arith.constant 0 : i32
    return %c0_i32, %c0_i32_0, %c0_i32_1 : i32, i32, i32
  }
  func.func @transform_13(%arg0: i32) -> (i32, i32, i32) {
    %c0_i32 = arith.constant 0 : i32
    %c0_i32_0 = arith.constant 0 : i32
    %c0_i32_1 = arith.constant 0 : i32
    %c0_i32_2 = arith.constant 0 : i32
    return %c0_i32, %c0_i32_0, %c0_i32_1 : i32, i32, i32
  }
  func.func @transform_14(%arg0: i32) -> (i32, i32, i32) {
    %c0_i32 = arith.constant 0 : i32
    %c0_i32_0 = arith.constant 0 : i32
    %c0_i32_1 = arith.constant 0 : i32
    %c0_i32_2 = arith.constant 0 : i32
    return %c0_i32, %c0_i32_0, %c0_i32_1 : i32, i32, i32
  }
  func.func @transform_15(%arg0: i32) -> (i32, i32, i32) {
    %c0_i32 = arith.constant 0 : i32
    %c0_i32_0 = arith.constant 0 : i32
    %c0_i32_1 = arith.constant 0 : i32
    %c0_i32_2 = arith.constant 0 : i32
    return %c0_i32, %c0_i32_0, %c0_i32_1 : i32, i32, i32
  }
  func.func @transform_16(%arg0: i32) -> (i32, i32, i32) {
    %c0_i32 = arith.constant 0 : i32
    %c0_i32_0 = arith.constant 0 : i32
    %c0_i32_1 = arith.constant 0 : i32
    %c0_i32_2 = arith.constant 0 : i32
    return %c0_i32, %c0_i32_0, %c0_i32_1 : i32, i32, i32
  }
  func.func @transform_17(%arg0: i32) -> (i32, i32, i32) {
    %c0_i32 = arith.constant 0 : i32
    %c0_i32_0 = arith.constant 0 : i32
    %c0_i32_1 = arith.constant 0 : i32
    %c0_i32_2 = arith.constant 0 : i32
    return %c0_i32, %c0_i32_0, %c0_i32_1 : i32, i32, i32
  }
  func.func @transform_18(%arg0: i32) -> (i32, i32, i32) {
    %c0_i32 = arith.constant 0 : i32
    %c0_i32_0 = arith.constant 0 : i32
    %c0_i32_1 = arith.constant 0 : i32
    %c0_i32_2 = arith.constant 0 : i32
    return %c0_i32, %c0_i32_0, %c0_i32_1 : i32, i32, i32
  }
  func.func @transform_19(%arg0: i32) -> (i32, i32, i32) {
    %c0_i32 = arith.constant 0 : i32
    %c0_i32_0 = arith.constant 0 : i32
    %c0_i32_1 = arith.constant 0 : i32
    %c0_i32_2 = arith.constant 0 : i32
    return %c0_i32, %c0_i32_0, %c0_i32_1 : i32, i32, i32
  }
  func.func @transform_20(%arg0: i32) -> (i32, i32, i32, i32) {
    %c0_i32 = arith.constant 0 : i32
    %c0_i32_0 = arith.constant 0 : i32
    %c0_i32_1 = arith.constant 0 : i32
    %c0_i32_2 = arith.constant 0 : i32
    return %arg0, %c0_i32, %c0_i32_0, %c0_i32_1 : i32, i32, i32, i32
  }
  func.func @transform_21(%arg0: i32) -> (i32, i32, i32, i32) {
    %c0_i32 = arith.constant 0 : i32
    %c0_i32_0 = arith.constant 0 : i32
    %c0_i32_1 = arith.constant 0 : i32
    %c0_i32_2 = arith.constant 0 : i32
    return %arg0, %c0_i32, %c0_i32_0, %c0_i32_1 : i32, i32, i32, i32
  }
}

</mosaic_0001>

<llo_original>
// kernel: uncertainty_network_forward.1
$region0: #{uncertainty_network_forward.1}
  #allocation0 [shape = 'u32[]', space=smem, size = 0x4, offset = 0x4, fixed_abs, tag = 'smem constant byte address 0x4 - core index']
  #allocation1 [shape = 'u32[72,128]{1,0:T(1,128)}', space=vmem, size = 0x9000, scoped, tag = 'internal scratch']
  %s0 = inlined_call_operand.hbm [shape: f32[5,4,6], index: 0, kind: input, shape index: {}]
  %s1 = inlined_call_operand.hbm [shape: f32[6,2,4,32], index: 1, kind: input, shape index: {}]
  %s2 = inlined_call_operand.hbm [shape: f32[3,6,24], index: 2, kind: input, shape index: {}]
  %s3 = inlined_call_operand.hbm [shape: f32[3,1,24], index: 3, kind: input, shape index: {}]
  %s4 = inlined_call_operand.hbm [shape: f32[3,24,24], index: 4, kind: input, shape index: {}]
  %s5 = inlined_call_operand.vmem [shape: f32[3,1,24], index: 5, kind: input, shape index: {}]
  %s6 = inlined_call_operand.vmem [shape: f32[3,24,16], index: 6, kind: input, shape index: {}]
  %s7 = inlined_call_operand.hbm [shape: f32[3,1,16], index: 7, kind: input, shape index: {}]
  %s8 = inlined_call_operand.hbm [shape: f32[3,16,96], index: 8, kind: input, shape index: {}]
  %s9 = inlined_call_operand.vmem [shape: f32[3,32,96], index: 9, kind: input, shape index: {}]
  %s10 = inlined_call_operand.vmem [shape: f32[3,1,96], index: 10, kind: input, shape index: {}]
  %s11 = inlined_call_operand.vmem [shape: f32[3,1,96], index: 11, kind: input, shape index: {}]
  %s12 = inlined_call_operand.vmem [shape: f32[3,32,96], index: 12, kind: input, shape index: {}]
  %s13 = inlined_call_operand.vmem [shape: f32[3,32,96], index: 13, kind: input, shape index: {}]
  %s14 = inlined_call_operand.hbm [shape: f32[3,1,96], index: 14, kind: input, shape index: {}]
  %s15 = inlined_call_operand.vmem [shape: f32[3,1,96], index: 15, kind: input, shape index: {}]
  %s16 = inlined_call_operand.vmem [shape: f32[3,32,24], index: 16, kind: input, shape index: {}]
  %s17 = inlined_call_operand.hbm [shape: f32[3,1,24], index: 17, kind: input, shape index: {}]
  %s18 = inlined_call_operand.vmem [shape: f32[3,24,8], index: 18, kind: input, shape index: {}]
  %s19 = inlined_call_operand.hbm [shape: f32[3,1,8], index: 19, kind: input, shape index: {}]
  %s20 = inlined_call_operand.hbm [shape: f32[6,5,4,8], index: 20, kind: output, shape index: {0}]
  %s21 = inlined_call_operand.hbm [shape: f32[6,2,4,32], index: 21, kind: output, shape index: {1}]
  %22 = xla_tuple %s20, %s21
  %s23 = sld [smem:[#allocation0]]
  $region161: #{uncertainty_network_forward.1} parent=0
    _
  %s25 = ssub.s32 1, %s23
  %s26 = scalar_select 0, %s25, %s23
  $region1: #{uncertainty_network_forward.1} parent=0
    #allocation2 [shape = 'u8[10240]{0}', space=vmem, size = 0x2800, scoped, tag = 'input window, operand 0, single buffered']
    #allocation3 [shape = 's32[2]{0}', space=sflag, size = 0x8, scoped, tag = 'scoped memory for uncertainty_network_forward.1']
    #allocation4 [shape = 's32[2]{0}', space=sflag, size = 0x8, scoped, tag = 'scoped memory for uncertainty_network_forward.1']
    #allocation5 [shape = 'u8[16384]{0}', space=vmem, size = 0x4000, scoped, tag = 'input window, operand 1']
    #allocation6 [shape = 's32[2]{0}', space=sflag, size = 0x8, scoped, tag = 'scoped memory for uncertainty_network_forward.1']
    #allocation7 [shape = 'u8[12288]{0}', space=vmem, size = 0x3000, scoped, tag = 'input window, operand 2, single buffered']
    #allocation8 [shape = 'u8[1536]{0}', space=vmem, size = 0x800, scoped, tag = 'input window, operand 3, single buffered']
    #allocation9 [shape = 's32[1]{0}', space=sflag, size = 0x4, scoped, tag = 'scoped memory for uncertainty_network_forward.1']
    #allocation10 [shape = 'u8[36864]{0}', space=vmem, size = 0x9000, scoped, tag = 'input window, operand 4, single buffered']
    #allocation11 [shape = 'u8[1536]{0}', space=vmem, size = 0x800, scoped, tag = 'input window, operand 7, single buffered']
    #allocation12 [shape = 's32[1]{0}', space=sflag, size = 0x4, scoped, tag = 'scoped memory for uncertainty_network_forward.1']
    #allocation13 [shape = 'u8[24576]{0}', space=vmem, size = 0x6000, scoped, tag = 'input window, operand 8, single buffered']
    #allocation14 [shape = 'u8[1536]{0}', space=vmem, size = 0x800, scoped, tag = 'input window, operand 14, single buffered']
    #allocation15 [shape = 's32[1]{0}', space=sflag, size = 0x4, scoped, tag = 'scoped memory for uncertainty_network_forward.1']
    #allocation16 [shape = 'u8[1536]{0}', space=vmem, size = 0x800, scoped, tag = 'input window, operand 17, single buffered']
    #allocation17 [shape = 'u8[1536]{0}', space=vmem, size = 0x800, scoped, tag = 'input window, operand 19, single buffered']
    #allocation18 [shape = 's32[1]{0}', space=sflag, size = 0x4, scoped, tag = 'scoped memory for uncertainty_network_forward.1']
    #allocation19 [shape = 'u8[40960]{0}', space=vmem, size = 0xa000, scoped, tag = 'output window, operand 0']
    #allocation20 [shape = 'u8[16384]{0}', space=vmem, size = 0x4000, scoped, tag = 'output window, operand 1']
    #allocation21 [shape = 's32[2]{0}', space=sflag, size = 0x8, scoped, tag = 'scoped memory for uncertainty_network_forward.1']
    %27 = vsyncpa [#allocation3], 0
    %28 = vsyncpa [#allocation6], 0
    %s29 = scalar_lea.sflag [#allocation6], 1
    %30 = vsyncpa %s29, 0
    %31 = vsyncpa [#allocation9], 0
    %32 = vsyncpa [#allocation12], 0
    %33 = vsyncpa [#allocation15], 0
    %34 = vsyncpa [#allocation18], 0
    %35 = vsyncpa [#allocation4], 0
    %s36 = scalar_lea.sflag [#allocation4], 1
    %37 = vsyncpa %s36, 0
    %38 = vsyncpa [#allocation21], 0
    %s39 = scalar_lea.sflag [#allocation21], 1
    %40 = vsyncpa %s39, 0
    loop: start=0, step=1, limit=5
    $region2: #{uncertainty_network_forward.1} parent=1 // loop_pre_header
      _
    $region3: #{uncertainty_network_forward.1} parent=1 // loop_header
      %s42 = sphi 0, %s46
      %p43 = scmp.ge.s32.totalorder %s42, 5
      %s50 = sphi 0, %s50
      %s52 = sphi 0, %s50
      %s53 = sphi 0, %s52
      %s67 = sphi 0, %s53
      %s73 = sphi 0, %s75
      %s76 = sphi 0, %s73
      %s77 = sphi 0, %s76
      %s93 = sphi 0, %s77
      %s97 = sphi 0, %s97
      %s99 = sphi 0, %s97
      %s100 = sphi 0, %s99
      %s114 = sphi 0, %s100
      %s118 = sphi 0, %s118
      %s120 = sphi 0, %s118
      %s121 = sphi 0, %s120
      %s135 = sphi 0, %s121
      %s139 = sphi 0, %s139
      %s141 = sphi 0, %s139
      %s142 = sphi 0, %s141
      %s156 = sphi 0, %s142
      %s160 = sphi 0, %s160
      %s162 = sphi 0, %s160
      %s163 = sphi 0, %s162
      %s177 = sphi 0, %s163
      %s181 = sphi 0, %s181
      %s183 = sphi 0, %s181
      %s184 = sphi 0, %s183
      %s198 = sphi 0, %s184
      %s202 = sphi 0, %s202
      %s204 = sphi 0, %s202
      %s205 = sphi 0, %s204
      %s219 = sphi 0, %s205
      %s223 = sphi 0, %s223
      %s225 = sphi 0, %s223
      %s226 = sphi 0, %s225
      %s240 = sphi 0, %s226
      %s244 = sphi 0, %s244
      %s246 = sphi 0, %s244
      %s247 = sphi 0, %s246
      %s261 = sphi 0, %s247
      %s265 = sphi 0, %s265
      %s267 = sphi 0, %s265
      %s268 = sphi 0, %s267
      %s282 = sphi 0, %s268
      %s286 = sphi 0, %s286
      %s288 = sphi 0, %s286
      %s289 = sphi 0, %s288
      %s303 = sphi 0, %s289
      %s307 = sphi 0, %s307
      %s309 = sphi 0, %s307
      %s310 = sphi 0, %s309
      %s324 = sphi 0, %s310
      %s328 = sphi 0, %s328
      %s330 = sphi 0, %s328
      %s331 = sphi 0, %s330
      %s345 = sphi 0, %s331
      %s349 = sphi 0, %s349
      %s351 = sphi 0, %s349
      %s352 = sphi 0, %s351
      %s366 = sphi 0, %s352
      %s370 = sphi 0, %s370
      %s372 = sphi 0, %s370
      %s373 = sphi 0, %s372
      %s387 = sphi 0, %s373
      %s391 = sphi 0, %s391
      %s393 = sphi 0, %s391
      %s394 = sphi 0, %s393
      %s408 = sphi 0, %s394
      %s412 = sphi 0, %s412
      %s414 = sphi 0, %s412
      %s415 = sphi 0, %s414
      %s429 = sphi 0, %s415
      %s433 = sphi 0, %s433
      %s435 = sphi 0, %s433
      %s436 = sphi 0, %s435
      %s450 = sphi 0, %s436
      %s454 = sphi 0, %s454
      %s456 = sphi 0, %s454
      %s457 = sphi 0, %s456
      %s471 = sphi 0, %s457
      %s477 = sphi 0, %s479
      %s480 = sphi 0, %s477
      %s481 = sphi 0, %s480
      %s497 = sphi 0, %s481
      %s503 = sphi 0, %s505
      %s506 = sphi 0, %s503
      %s507 = sphi 0, %s506
      %s523 = sphi 0, %s507
    $region4: #{uncertainty_network_forward.1} parent=1 // loop_header_branch
      %45 = sbr.rel (%p43) target = $region8
    $region5: #{uncertainty_network_forward.1} parent=1 // loop_body
      %s47 = ssub.s32 %s42, 1
      %s48 = ssub.s32 %s42, 2
      %s49 = sadd.s32 %s42, 1
      %s51 = sadd.s32 %s50, 1
      %p54 = scmp.eq.s32.totalorder %s42, 2
      %p55 = scmp.ne.s32.totalorder %s50, %s52
      %p56 = scmp.eq.s32.totalorder %s42, 0
      %p57 = por %p55, %p56
      %p58 = scmp.ne.s32.totalorder %s50, %s52
      %p59 = scmp.eq.s32.totalorder %s47, 2
      %p60 = por %p58, %p59
      %p61 = scmp.ne.s32.totalorder %s52, %s53
      %p62 = scmp.eq.s32.totalorder %s47, 0
      %p63 = por %p61, %p62
      %p64 = scmp.ne.s32.totalorder %s52, %s53
      %p65 = scmp.eq.s32.totalorder %s48, 2
      %p66 = por %p64, %p65
      %p68 = scmp.ne.s32.totalorder %s53, %s67
      %p69 = scmp.eq.s32.totalorder %s48, 0
      %p70 = por %p68, %p69
      %s71 = ssub.s32 %s42, %s49
      %p72 = scmp.eq.s32.totalorder %s71, 0
      %s74 = sadd.s32 %s73, 1
      %s75 = scalar_select %p72, %s73, %s74
      %p78 = pneg %p72
      %p79 = scmp.eq.s32.totalorder %s42, 2
      %p80 = por %p78, %p79
      %p81 = scmp.ne.s32.totalorder %s73, %s76
      %p82 = scmp.eq.s32.totalorder %s42, 0
      %p83 = por %p81, %p82
      %p84 = scmp.ne.s32.totalorder %s73, %s76
      %p85 = scmp.eq.s32.totalorder %s47, 2
      %p86 = por %p84, %p85
      %p87 = scmp.ne.s32.totalorder %s76, %s77
      %p88 = scmp.eq.s32.totalorder %s47, 0
      %p89 = por %p87, %p88
      %p90 = scmp.ne.s32.totalorder %s76, %s77
      %p91 = scmp.eq.s32.totalorder %s48, 2
      %p92 = por %p90, %p91
      %p94 = scmp.ne.s32.totalorder %s77, %s93
      %p95 = scmp.eq.s32.totalorder %s48, 0
      %p96 = por %p94, %p95
      %s98 = sadd.s32 %s97, 1
      %p101 = scmp.eq.s32.totalorder %s42, 2
      %p102 = scmp.ne.s32.totalorder %s97, %s99
      %p103 = scmp.eq.s32.totalorder %s42, 0
      %p104 = por %p102, %p103
      %p105 = scmp.ne.s32.totalorder %s97, %s99
      %p106 = scmp.eq.s32.totalorder %s47, 2
      %p107 = por %p105, %p106
      %p108 = scmp.ne.s32.totalorder %s99, %s100
      %p109 = scmp.eq.s32.totalorder %s47, 0
      %p110 = por %p108, %p109
      %p111 = scmp.ne.s32.totalorder %s99, %s100
      %p112 = scmp.eq.s32.totalorder %s48, 2
      %p113 = por %p111, %p112
      %p115 = scmp.ne.s32.totalorder %s100, %s114
      %p116 = scmp.eq.s32.totalorder %s48, 0
      %p117 = por %p115, %p116
      %s119 = sadd.s32 %s118, 1
      %p122 = scmp.eq.s32.totalorder %s42, 2
      %p123 = scmp.ne.s32.totalorder %s118, %s120
      %p124 = scmp.eq.s32.totalorder %s42, 0
      %p125 = por %p123, %p124
      %p126 = scmp.ne.s32.totalorder %s118, %s120
      %p127 = scmp.eq.s32.totalorder %s47, 2
      %p128 = por %p126, %p127
      %p129 = scmp.ne.s32.totalorder %s120, %s121
      %p130 = scmp.eq.s32.totalorder %s47, 0
      %p131 = por %p129, %p130
      %p132 = scmp.ne.s32.totalorder %s120, %s121
      %p133 = scmp.eq.s32.totalorder %s48, 2
      %p134 = por %p132, %p133
      %p136 = scmp.ne.s32.totalorder %s121, %s135
      %p137 = scmp.eq.s32.totalorder %s48, 0
      %p138 = por %p136, %p137
      %s140 = sadd.s32 %s139, 1
      %p143 = scmp.eq.s32.totalorder %s42, 2
      %p144 = scmp.ne.s32.totalorder %s139, %s141
      %p145 = scmp.eq.s32.totalorder %s42, 0
      %p146 = por %p144, %p145
      %p147 = scmp.ne.s32.totalorder %s139, %s141
      %p148 = scmp.eq.s32.totalorder %s47, 2
      %p149 = por %p147, %p148
      %p150 = scmp.ne.s32.totalorder %s141, %s142
      %p151 = scmp.eq.s32.totalorder %s47, 0
      %p152 = por %p150, %p151
      %p153 = scmp.ne.s32.totalorder %s141, %s142
      %p154 = scmp.eq.s32.totalorder %s48, 2
      %p155 = por %p153, %p154
      %p157 = scmp.ne.s32.totalorder %s142, %s156
      %p158 = scmp.eq.s32.totalorder %s48, 0
      %p159 = por %p157, %p158
      %s161 = sadd.s32 %s160, 1
      %p164 = scmp.eq.s32.totalorder %s42, 2
      %p165 = scmp.ne.s32.totalorder %s160, %s162
      %p166 = scmp.eq.s32.totalorder %s42, 0
      %p167 = por %p165, %p166
      %p168 = scmp.ne.s32.totalorder %s160, %s162
      %p169 = scmp.eq.s32.totalorder %s47, 2
      %p170 = por %p168, %p169
      %p171 = scmp.ne.s32.totalorder %s162, %s163
      %p172 = scmp.eq.s32.totalorder %s47, 0
      %p173 = por %p171, %p172
      %p174 = scmp.ne.s32.totalorder %s162, %s163
      %p175 = scmp.eq.s32.totalorder %s48, 2
      %p176 = por %p174, %p175
      %p178 = scmp.ne.s32.totalorder %s163, %s177
      %p179 = scmp.eq.s32.totalorder %s48, 0
      %p180 = por %p178, %p179
      %s182 = sadd.s32 %s181, 1
      %p185 = scmp.eq.s32.totalorder %s42, 2
      %p186 = scmp.ne.s32.totalorder %s181, %s183
      %p187 = scmp.eq.s32.totalorder %s42, 0
      %p188 = por %p186, %p187
      %p189 = scmp.ne.s32.totalorder %s181, %s183
      %p190 = scmp.eq.s32.totalorder %s47, 2
      %p191 = por %p189, %p190
      %p192 = scmp.ne.s32.totalorder %s183, %s184
      %p193 = scmp.eq.s32.totalorder %s47, 0
      %p194 = por %p192, %p193
      %p195 = scmp.ne.s32.totalorder %s183, %s184
      %p196 = scmp.eq.s32.totalorder %s48, 2
      %p197 = por %p195, %p196
      %p199 = scmp.ne.s32.totalorder %s184, %s198
      %p200 = scmp.eq.s32.totalorder %s48, 0
      %p201 = por %p199, %p200
      %s203 = sadd.s32 %s202, 1
      %p206 = scmp.eq.s32.totalorder %s42, 2
      %p207 = scmp.ne.s32.totalorder %s202, %s204
      %p208 = scmp.eq.s32.totalorder %s42, 0
      %p209 = por %p207, %p208
      %p210 = scmp.ne.s32.totalorder %s202, %s204
      %p211 = scmp.eq.s32.totalorder %s47, 2
      %p212 = por %p210, %p211
      %p213 = scmp.ne.s32.totalorder %s204, %s205
      %p214 = scmp.eq.s32.totalorder %s47, 0
      %p215 = por %p213, %p214
      %p216 = scmp.ne.s32.totalorder %s204, %s205
      %p217 = scmp.eq.s32.totalorder %s48, 2
      %p218 = por %p216, %p217
      %p220 = scmp.ne.s32.totalorder %s205, %s219
      %p221 = scmp.eq.s32.totalorder %s48, 0
      %p222 = por %p220, %p221
      %s224 = sadd.s32 %s223, 1
      %p227 = scmp.eq.s32.totalorder %s42, 2
      %p228 = scmp.ne.s32.totalorder %s223, %s225
      %p229 = scmp.eq.s32.totalorder %s42, 0
      %p230 = por %p228, %p229
      %p231 = scmp.ne.s32.totalorder %s223, %s225
      %p232 = scmp.eq.s32.totalorder %s47, 2
      %p233 = por %p231, %p232
      %p234 = scmp.ne.s32.totalorder %s225, %s226
      %p235 = scmp.eq.s32.totalorder %s47, 0
      %p236 = por %p234, %p235
      %p237 = scmp.ne.s32.totalorder %s225, %s226
      %p238 = scmp.eq.s32.totalorder %s48, 2
      %p239 = por %p237, %p238
      %p241 = scmp.ne.s32.totalorder %s226, %s240
      %p242 = scmp.eq.s32.totalorder %s48, 0
      %p243 = por %p241, %p242
      %s245 = sadd.s32 %s244, 1
      %p248 = scmp.eq.s32.totalorder %s42, 2
      %p249 = scmp.ne.s32.totalorder %s244, %s246
      %p250 = scmp.eq.s32.totalorder %s42, 0
      %p251 = por %p249, %p250
      %p252 = scmp.ne.s32.totalorder %s244, %s246
      %p253 = scmp.eq.s32.totalorder %s47, 2
      %p254 = por %p252, %p253
      %p255 = scmp.ne.s32.totalorder %s246, %s247
      %p256 = scmp.eq.s32.totalorder %s47, 0
      %p257 = por %p255, %p256
      %p258 = scmp.ne.s32.totalorder %s246, %s247
      %p259 = scmp.eq.s32.totalorder %s48, 2
      %p260 = por %p258, %p259
      %p262 = scmp.ne.s32.totalorder %s247, %s261
      %p263 = scmp.eq.s32.totalorder %s48, 0
      %p264 = por %p262, %p263
      %s266 = sadd.s32 %s265, 1
      %p269 = scmp.eq.s32.totalorder %s42, 2
      %p270 = scmp.ne.s32.totalorder %s265, %s267
      %p271 = scmp.eq.s32.totalorder %s42, 0
      %p272 = por %p270, %p271
      %p273 = scmp.ne.s32.totalorder %s265, %s267
      %p274 = scmp.eq.s32.totalorder %s47, 2
      %p275 = por %p273, %p274
      %p276 = scmp.ne.s32.totalorder %s267, %s268
      %p277 = scmp.eq.s32.totalorder %s47, 0
      %p278 = por %p276, %p277
      %p279 = scmp.ne.s32.totalorder %s267, %s268
      %p280 = scmp.eq.s32.totalorder %s48, 2
      %p281 = por %p279, %p280
      %p283 = scmp.ne.s32.totalorder %s268, %s282
      %p284 = scmp.eq.s32.totalorder %s48, 0
      %p285 = por %p283, %p284
      %s287 = sadd.s32 %s286, 1
      %p290 = scmp.eq.s32.totalorder %s42, 2
      %p291 = scmp.ne.s32.totalorder %s286, %s288
      %p292 = scmp.eq.s32.totalorder %s42, 0
      %p293 = por %p291, %p292
      %p294 = scmp.ne.s32.totalorder %s286, %s288
      %p295 = scmp.eq.s32.totalorder %s47, 2
      %p296 = por %p294, %p295
      %p297 = scmp.ne.s32.totalorder %s288, %s289
      %p298 = scmp.eq.s32.totalorder %s47, 0
      %p299 = por %p297, %p298
      %p300 = scmp.ne.s32.totalorder %s288, %s289
      %p301 = scmp.eq.s32.totalorder %s48, 2
      %p302 = por %p300, %p301
      %p304 = scmp.ne.s32.totalorder %s289, %s303
      %p305 = scmp.eq.s32.totalorder %s48, 0
      %p306 = por %p304, %p305
      %s308 = sadd.s32 %s307, 1
      %p311 = scmp.eq.s32.totalorder %s42, 2
      %p312 = scmp.ne.s32.totalorder %s307, %s309
      %p313 = scmp.eq.s32.totalorder %s42, 0
      %p314 = por %p312, %p313
      %p315 = scmp.ne.s32.totalorder %s307, %s309
      %p316 = scmp.eq.s32.totalorder %s47, 2
      %p317 = por %p315, %p316
      %p318 = scmp.ne.s32.totalorder %s309, %s310
      %p319 = scmp.eq.s32.totalorder %s47, 0
      %p320 = por %p318, %p319
      %p321 = scmp.ne.s32.totalorder %s309, %s310
      %p322 = scmp.eq.s32.totalorder %s48, 2
      %p323 = por %p321, %p322
      %p325 = scmp.ne.s32.totalorder %s310, %s324
      %p326 = scmp.eq.s32.totalorder %s48, 0
      %p327 = por %p325, %p326
      %s329 = sadd.s32 %s328, 1
      %p332 = scmp.eq.s32.totalorder %s42, 2
      %p333 = scmp.ne.s32.totalorder %s328, %s330
      %p334 = scmp.eq.s32.totalorder %s42, 0
      %p335 = por %p333, %p334
      %p336 = scmp.ne.s32.totalorder %s328, %s330
      %p337 = scmp.eq.s32.totalorder %s47, 2
      %p338 = por %p336, %p337
      %p339 = scmp.ne.s32.totalorder %s330, %s331
      %p340 = scmp.eq.s32.totalorder %s47, 0
      %p341 = por %p339, %p340
      %p342 = scmp.ne.s32.totalorder %s330, %s331
      %p343 = scmp.eq.s32.totalorder %s48, 2
      %p344 = por %p342, %p343
      %p346 = scmp.ne.s32.totalorder %s331, %s345
      %p347 = scmp.eq.s32.totalorder %s48, 0
      %p348 = por %p346, %p347
      %s350 = sadd.s32 %s349, 1
      %p353 = scmp.eq.s32.totalorder %s42, 2
      %p354 = scmp.ne.s32.totalorder %s349, %s351
      %p355 = scmp.eq.s32.totalorder %s42, 0
      %p356 = por %p354, %p355
      %p357 = scmp.ne.s32.totalorder %s349, %s351
      %p358 = scmp.eq.s32.totalorder %s47, 2
      %p359 = por %p357, %p358
      %p360 = scmp.ne.s32.totalorder %s351, %s352
      %p361 = scmp.eq.s32.totalorder %s47, 0
      %p362 = por %p360, %p361
      %p363 = scmp.ne.s32.totalorder %s351, %s352
      %p364 = scmp.eq.s32.totalorder %s48, 2
      %p365 = por %p363, %p364
      %p367 = scmp.ne.s32.totalorder %s352, %s366
      %p368 = scmp.eq.s32.totalorder %s48, 0
      %p369 = por %p367, %p368
      %s371 = sadd.s32 %s370, 1
      %p374 = scmp.eq.s32.totalorder %s42, 2
      %p375 = scmp.ne.s32.totalorder %s370, %s372
      %p376 = scmp.eq.s32.totalorder %s42, 0
      %p377 = por %p375, %p376
      %p378 = scmp.ne.s32.totalorder %s370, %s372
      %p379 = scmp.eq.s32.totalorder %s47, 2
      %p380 = por %p378, %p379
      %p381 = scmp.ne.s32.totalorder %s372, %s373
      %p382 = scmp.eq.s32.totalorder %s47, 0
      %p383 = por %p381, %p382
      %p384 = scmp.ne.s32.totalorder %s372, %s373
      %p385 = scmp.eq.s32.totalorder %s48, 2
      %p386 = por %p384, %p385
      %p388 = scmp.ne.s32.totalorder %s373, %s387
      %p389 = scmp.eq.s32.totalorder %s48, 0
      %p390 = por %p388, %p389
      %s392 = sadd.s32 %s391, 1
      %p395 = scmp.eq.s32.totalorder %s42, 2
      %p396 = scmp.ne.s32.totalorder %s391, %s393
      %p397 = scmp.eq.s32.totalorder %s42, 0
      %p398 = por %p396, %p397
      %p399 = scmp.ne.s32.totalorder %s391, %s393
      %p400 = scmp.eq.s32.totalorder %s47, 2
      %p401 = por %p399, %p400
      %p402 = scmp.ne.s32.totalorder %s393, %s394
      %p403 = scmp.eq.s32.totalorder %s47, 0
      %p404 = por %p402, %p403
      %p405 = scmp.ne.s32.totalorder %s393, %s394
      %p406 = scmp.eq.s32.totalorder %s48, 2
      %p407 = por %p405, %p406
      %p409 = scmp.ne.s32.totalorder %s394, %s408
      %p410 = scmp.eq.s32.totalorder %s48, 0
      %p411 = por %p409, %p410
      %s413 = sadd.s32 %s412, 1
      %p416 = scmp.eq.s32.totalorder %s42, 2
      %p417 = scmp.ne.s32.totalorder %s412, %s414
      %p418 = scmp.eq.s32.totalorder %s42, 0
      %p419 = por %p417, %p418
      %p420 = scmp.ne.s32.totalorder %s412, %s414
      %p421 = scmp.eq.s32.totalorder %s47, 2
      %p422 = por %p420, %p421
      %p423 = scmp.ne.s32.totalorder %s414, %s415
      %p424 = scmp.eq.s32.totalorder %s47, 0
      %p425 = por %p423, %p424
      %p426 = scmp.ne.s32.totalorder %s414, %s415
      %p427 = scmp.eq.s32.totalorder %s48, 2
      %p428 = por %p426, %p427
      %p430 = scmp.ne.s32.totalorder %s415, %s429
      %p431 = scmp.eq.s32.totalorder %s48, 0
      %p432 = por %p430, %p431
      %s434 = sadd.s32 %s433, 1
      %p437 = scmp.eq.s32.totalorder %s42, 2
      %p438 = scmp.ne.s32.totalorder %s433, %s435
      %p439 = scmp.eq.s32.totalorder %s42, 0
      %p440 = por %p438, %p439
      %p441 = scmp.ne.s32.totalorder %s433, %s435
      %p442 = scmp.eq.s32.totalorder %s47, 2
      %p443 = por %p441, %p442
      %p444 = scmp.ne.s32.totalorder %s435, %s436
      %p445 = scmp.eq.s32.totalorder %s47, 0
      %p446 = por %p444, %p445
      %p447 = scmp.ne.s32.totalorder %s435, %s436
      %p448 = scmp.eq.s32.totalorder %s48, 2
      %p449 = por %p447, %p448
      %p451 = scmp.ne.s32.totalorder %s436, %s450
      %p452 = scmp.eq.s32.totalorder %s48, 0
      %p453 = por %p451, %p452
      %s455 = sadd.s32 %s454, 1
      %p458 = scmp.eq.s32.totalorder %s42, 2
      %p459 = scmp.ne.s32.totalorder %s454, %s456
      %p460 = scmp.eq.s32.totalorder %s42, 0
      %p461 = por %p459, %p460
      %p462 = scmp.ne.s32.totalorder %s454, %s456
      %p463 = scmp.eq.s32.totalorder %s47, 2
      %p464 = por %p462, %p463
      %p465 = scmp.ne.s32.totalorder %s456, %s457
      %p466 = scmp.eq.s32.totalorder %s47, 0
      %p467 = por %p465, %p466
      %p468 = scmp.ne.s32.totalorder %s456, %s457
      %p469 = scmp.eq.s32.totalorder %s48, 2
      %p470 = por %p468, %p469
      %p472 = scmp.ne.s32.totalorder %s457, %s471
      %p473 = scmp.eq.s32.totalorder %s48, 0
      %p474 = por %p472, %p473
      %s475 = ssub.s32 %s42, %s49
      %p476 = scmp.eq.s32.totalorder %s475, 0
      %s478 = sadd.s32 %s477, 1
      %s479 = scalar_select %p476, %s477, %s478
      %p482 = pneg %p476
      %p483 = scmp.eq.s32.totalorder %s42, 2
      %p484 = por %p482, %p483
      %p485 = scmp.ne.s32.totalorder %s477, %s480
      %p486 = scmp.eq.s32.totalorder %s42, 0
      %p487 = por %p485, %p486
      %p488 = scmp.ne.s32.totalorder %s477, %s480
      %p489 = scmp.eq.s32.totalorder %s47, 2
      %p490 = por %p488, %p489
      %p491 = scmp.ne.s32.totalorder %s480, %s481
      %p492 = scmp.eq.s32.totalorder %s47, 0
      %p493 = por %p491, %p492
      %p494 = scmp.ne.s32.totalorder %s480, %s481
      %p495 = scmp.eq.s32.totalorder %s48, 2
      %p496 = por %p494, %p495
      %p498 = scmp.ne.s32.totalorder %s481, %s497
      %p499 = scmp.eq.s32.totalorder %s48, 0
      %p500 = por %p498, %p499
      %s501 = ssub.s32 %s42, %s49
      %p502 = scmp.eq.s32.totalorder %s501, 0
      %s504 = sadd.s32 %s503, 1
      %s505 = scalar_select %p502, %s503, %s504
      %p508 = pneg %p502
      %p509 = scmp.eq.s32.totalorder %s42, 2
      %p510 = por %p508, %p509
      %p511 = scmp.ne.s32.totalorder %s503, %s506
      %p512 = scmp.eq.s32.totalorder %s42, 0
      %p513 = por %p511, %p512
      %p514 = scmp.ne.s32.totalorder %s503, %s506
      %p515 = scmp.eq.s32.totalorder %s47, 2
      %p516 = por %p514, %p515
      %p517 = scmp.ne.s32.totalorder %s506, %s507
      %p518 = scmp.eq.s32.totalorder %s47, 0
      %p519 = por %p517, %p518
      %p520 = scmp.ne.s32.totalorder %s506, %s507
      %p521 = scmp.eq.s32.totalorder %s48, 2
      %p522 = por %p520, %p521
      %p524 = scmp.ne.s32.totalorder %s507, %s523
      %p525 = scmp.eq.s32.totalorder %s48, 0
      %p526 = por %p524, %p525
      %p527 = scmp.le.s32.totalorder 1, %s42
      %p528 = scmp.lt.s32.totalorder %s42, 4
      %p529 = pnand %p527, %p528
      %p530 = pneg %p529
      // Predicated region
      $region9: #{uncertainty_network_forward.1} parent=5 // pred_check
        _
      $region10: #{uncertainty_network_forward.1} parent=5 // pred_check_branch
        %532 = sbr.rel (%p529) target = $region12
      $region11: #{uncertainty_network_forward.1} parent=5 // pred_region
        %s533 = ssub.s32 %s42, 1
        // Predicated region
        $region13: #{uncertainty_network_forward.1} parent=11 // pred_check
          %p534 = pneg %p63
        $region14: #{uncertainty_network_forward.1} parent=11 // pred_check_branch
          %536 = sbr.rel (%p534) target = $region16
        $region15: #{uncertainty_network_forward.1} parent=11 // pred_region
          %538 = vsyncadd [#allocation3], 0
          %s539 = sshll.u32 %s0, 4
          %s540 = int_to_ptr.hbm [resolvable:$true] %s539
          %s541 = sshll.u32 [#allocation2], 4
          %s542 = int_to_ptr.vmem [resolvable:$true] %s541
          %547 = dma.hbm_to_vmem [thread:$0]  %s540, 320, %s542, [#allocation3], 64, 64, 4
        $region16: #{uncertainty_network_forward.1} parent=11 // pred_fallthru
          _
        // Predicated region
        $region17: #{uncertainty_network_forward.1} parent=11 // pred_check
          %p548 = pneg %p110
        $region18: #{uncertainty_network_forward.1} parent=11 // pred_check_branch
          %550 = sbr.rel (%p548) target = $region20
        $region19: #{uncertainty_network_forward.1} parent=11 // pred_region
          %552 = vsyncadd [#allocation6], 0
          %s553 = sshll.u32 %s2, 4
          %s554 = int_to_ptr.hbm [resolvable:$true] %s553
          %s555 = sshll.u32 [#allocation7], 4
          %s556 = int_to_ptr.vmem [resolvable:$true] %s555
          %561 = dma.hbm_to_vmem [thread:$0]  %s554, 384, %s556, [#allocation6], 128, 128, 8
        $region20: #{uncertainty_network_forward.1} parent=11 // pred_fallthru
          _
        // Predicated region
        $region21: #{uncertainty_network_forward.1} parent=11 // pred_check
          %p562 = pneg %p131
        $region22: #{uncertainty_network_forward.1} parent=11 // pred_check_branch
          %564 = sbr.rel (%p562) target = $region24
        $region23: #{uncertainty_network_forward.1} parent=11 // pred_region
          %566 = vsyncadd [#allocation9], 0
          %s567 = sshll.u32 %s3, 4
          %s568 = int_to_ptr.hbm [resolvable:$true] %s567
          %s569 = sshll.u32 [#allocation8], 4
          %s570 = int_to_ptr.vmem [resolvable:$true] %s569
          %575 = dma.hbm_to_vmem [thread:$0]  %s568, 48, %s570, [#allocation9], 16, 16, 1
        $region24: #{uncertainty_network_forward.1} parent=11 // pred_fallthru
          _
        // Predicated region
        $region25: #{uncertainty_network_forward.1} parent=11 // pred_check
          %p576 = pneg %p152
        $region26: #{uncertainty_network_forward.1} parent=11 // pred_check_branch
          %578 = sbr.rel (%p576) target = $region28
        $region27: #{uncertainty_network_forward.1} parent=11 // pred_region
          %580 = vsyncadd [#allocation9], 0
          %s581 = sshll.u32 %s4, 4
          %s582 = int_to_ptr.hbm [resolvable:$true] %s581
          %s583 = sshll.u32 [#allocation10], 4
          %s584 = int_to_ptr.vmem [resolvable:$true] %s583
          %589 = dma.hbm_to_vmem [thread:$0]  %s582, 1152, %s584, [#allocation9], 128, 128, 8
        $region28: #{uncertainty_network_forward.1} parent=11 // pred_fallthru
          _
        // Predicated region
        $region29: #{uncertainty_network_forward.1} parent=11 // pred_check
          %p590 = pneg %p173
        $region30: #{uncertainty_network_forward.1} parent=11 // pred_check_branch
          %592 = sbr.rel (%p590) target = $region32
        $region31: #{uncertainty_network_forward.1} parent=11 // pred_region
          _
        $region32: #{uncertainty_network_forward.1} parent=11 // pred_fallthru
          _
        // Predicated region
        $region33: #{uncertainty_network_forward.1} parent=11 // pred_check
          %p593 = pneg %p194
        $region34: #{uncertainty_network_forward.1} parent=11 // pred_check_branch
          %595 = sbr.rel (%p593) target = $region36
        $region35: #{uncertainty_network_forward.1} parent=11 // pred_region
          _
        $region36: #{uncertainty_network_forward.1} parent=11 // pred_fallthru
          _
        // Predicated region
        $region37: #{uncertainty_network_forward.1} parent=11 // pred_check
          %p596 = pneg %p215
        $region38: #{uncertainty_network_forward.1} parent=11 // pred_check_branch
          %598 = sbr.rel (%p596) target = $region40
        $region39: #{uncertainty_network_forward.1} parent=11 // pred_region
          %600 = vsyncadd [#allocation12], 0
          %s601 = sshll.u32 %s7, 4
          %s602 = int_to_ptr.hbm [resolvable:$true] %s601
          %s603 = sshll.u32 [#allocation11], 4
          %s604 = int_to_ptr.vmem [resolvable:$true] %s603
          %609 = dma.hbm_to_vmem [thread:$0]  %s602, 48, %s604, [#allocation12], 16, 16, 1
        $region40: #{uncertainty_network_forward.1} parent=11 // pred_fallthru
          _
        // Predicated region
        $region41: #{uncertainty_network_forward.1} parent=11 // pred_check
          %p610 = pneg %p236
        $region42: #{uncertainty_network_forward.1} parent=11 // pred_check_branch
          %612 = sbr.rel (%p610) target = $region44
        $region43: #{uncertainty_network_forward.1} parent=11 // pred_region
          %614 = vsyncadd [#allocation12], 0
          %s615 = sshll.u32 %s8, 4
          %s616 = int_to_ptr.hbm [resolvable:$true] %s615
          %s617 = sshll.u32 [#allocation13], 4
          %s618 = int_to_ptr.vmem [resolvable:$true] %s617
          %623 = dma.hbm_to_vmem [thread:$0]  %s616, 768, %s618, [#allocation12], 128, 128, 8
        $region44: #{uncertainty_network_forward.1} parent=11 // pred_fallthru
          _
        // Predicated region
        $region45: #{uncertainty_network_forward.1} parent=11 // pred_check
          %p624 = pneg %p257
        $region46: #{uncertainty_network_forward.1} parent=11 // pred_check_branch
          %626 = sbr.rel (%p624) target = $region48
        $region47: #{uncertainty_network_forward.1} parent=11 // pred_region
          _
        $region48: #{uncertainty_network_forward.1} parent=11 // pred_fallthru
          _
        // Predicated region
        $region49: #{uncertainty_network_forward.1} parent=11 // pred_check
          %p627 = pneg %p278
        $region50: #{uncertainty_network_forward.1} parent=11 // pred_check_branch
          %629 = sbr.rel (%p627) target = $region52
        $region51: #{uncertainty_network_forward.1} parent=11 // pred_region
          _
        $region52: #{uncertainty_network_forward.1} parent=11 // pred_fallthru
          _
        // Predicated region
        $region53: #{uncertainty_network_forward.1} parent=11 // pred_check
          %p630 = pneg %p299
        $region54: #{uncertainty_network_forward.1} parent=11 // pred_check_branch
          %632 = sbr.rel (%p630) target = $region56
        $region55: #{uncertainty_network_forward.1} parent=11 // pred_region
          _
        $region56: #{uncertainty_network_forward.1} parent=11 // pred_fallthru
          _
        // Predicated region
        $region57: #{uncertainty_network_forward.1} parent=11 // pred_check
          %p633 = pneg %p320
        $region58: #{uncertainty_network_forward.1} parent=11 // pred_check_branch
          %635 = sbr.rel (%p633) target = $region60
        $region59: #{uncertainty_network_forward.1} parent=11 // pred_region
          _
        $region60: #{uncertainty_network_forward.1} parent=11 // pred_fallthru
          _
        // Predicated region
        $region61: #{uncertainty_network_forward.1} parent=11 // pred_check
          %p636 = pneg %p341
        $region62: #{uncertainty_network_forward.1} parent=11 // pred_check_branch
          %638 = sbr.rel (%p636) target = $region64
        $region63: #{uncertainty_network_forward.1} parent=11 // pred_region
          _
        $region64: #{uncertainty_network_forward.1} parent=11 // pred_fallthru
          _
        // Predicated region
        $region65: #{uncertainty_network_forward.1} parent=11 // pred_check
          %p639 = pneg %p362
        $region66: #{uncertainty_network_forward.1} parent=11 // pred_check_branch
          %641 = sbr.rel (%p639) target = $region68
        $region67: #{uncertainty_network_forward.1} parent=11 // pred_region
          %643 = vsyncadd [#allocation15], 0
          %s644 = sshll.u32 %s14, 4
          %s645 = int_to_ptr.hbm [resolvable:$true] %s644
          %s646 = sshll.u32 [#allocation14], 4
          %s647 = int_to_ptr.vmem [resolvable:$true] %s646
          %652 = dma.hbm_to_vmem [thread:$0]  %s645, 48, %s647, [#allocation15], 16, 16, 1
        $region68: #{uncertainty_network_forward.1} parent=11 // pred_fallthru
          _
        // Predicated region
        $region69: #{uncertainty_network_forward.1} parent=11 // pred_check
          %p653 = pneg %p383
        $region70: #{uncertainty_network_forward.1} parent=11 // pred_check_branch
          %655 = sbr.rel (%p653) target = $region72
        $region71: #{uncertainty_network_forward.1} parent=11 // pred_region
          _
        $region72: #{uncertainty_network_forward.1} parent=11 // pred_fallthru
          _
        // Predicated region
        $region73: #{uncertainty_network_forward.1} parent=11 // pred_check
          %p656 = pneg %p404
        $region74: #{uncertainty_network_forward.1} parent=11 // pred_check_branch
          %658 = sbr.rel (%p656) target = $region76
        $region75: #{uncertainty_network_forward.1} parent=11 // pred_region
          _
        $region76: #{uncertainty_network_forward.1} parent=11 // pred_fallthru
          _
        // Predicated region
        $region77: #{uncertainty_network_forward.1} parent=11 // pred_check
          %p659 = pneg %p425
        $region78: #{uncertainty_network_forward.1} parent=11 // pred_check_branch
          %661 = sbr.rel (%p659) target = $region80
        $region79: #{uncertainty_network_forward.1} parent=11 // pred_region
          %663 = vsyncadd [#allocation15], 0
          %s664 = sshll.u32 %s17, 4
          %s665 = int_to_ptr.hbm [resolvable:$true] %s664
          %s666 = sshll.u32 [#allocation16], 4
          %s667 = int_to_ptr.vmem [resolvable:$true] %s666
          %672 = dma.hbm_to_vmem [thread:$0]  %s665, 48, %s667, [#allocation15], 16, 16, 1
        $region80: #{uncertainty_network_forward.1} parent=11 // pred_fallthru
          _
        // Predicated region
        $region81: #{uncertainty_network_forward.1} parent=11 // pred_check
          %p673 = pneg %p446
        $region82: #{uncertainty_network_forward.1} parent=11 // pred_check_branch
          %675 = sbr.rel (%p673) target = $region84
        $region83: #{uncertainty_network_forward.1} parent=11 // pred_region
          _
        $region84: #{uncertainty_network_forward.1} parent=11 // pred_fallthru
          _
        // Predicated region
        $region85: #{uncertainty_network_forward.1} parent=11 // pred_check
          %p676 = pneg %p467
        $region86: #{uncertainty_network_forward.1} parent=11 // pred_check_branch
          %678 = sbr.rel (%p676) target = $region88
        $region87: #{uncertainty_network_forward.1} parent=11 // pred_region
          %680 = vsyncadd [#allocation18], 0
          %s681 = sshll.u32 %s19, 4
          %s682 = int_to_ptr.hbm [resolvable:$true] %s681
          %s683 = sshll.u32 [#allocation17], 4
          %s684 = int_to_ptr.vmem [resolvable:$true] %s683
          %689 = dma.hbm_to_vmem [thread:$0]  %s682, 48, %s684, [#allocation18], 16, 16, 1
        $region88: #{uncertainty_network_forward.1} parent=11 // pred_fallthru
          _
      $region12: #{uncertainty_network_forward.1} parent=5 // pred_fallthru
        _
      %p690 = scmp.lt.s32.totalorder %s42, 3
      // Predicated region
      $region89: #{uncertainty_network_forward.1} parent=5 // pred_check
        %p691 = pneg %p690
      $region90: #{uncertainty_network_forward.1} parent=5 // pred_check_branch
        %693 = sbr.rel (%p691) target = $region92
      $region91: #{uncertainty_network_forward.1} parent=5 // pred_region
        // Predicated region
        $region93: #{uncertainty_network_forward.1} parent=91 // pred_check
          %p694 = pneg %p83
        $region94: #{uncertainty_network_forward.1} parent=91 // pred_check_branch
          %696 = sbr.rel (%p694) target = $region96
        $region95: #{uncertainty_network_forward.1} parent=91 // pred_region
          %s697 = sand.u32 %s42, 1
          %s698 = scalar_lea.sflag [#allocation6], %s697
          %s699 = sand.u32 %s73, 1
          %s700 = smul.addr %s699, 16
          %s701 = scalar_lea.vmem [#allocation5], %s700
          %s702 = smul.u32 2, %s42
          %704 = vsyncadd %s698, 0
          %s705 = smul.addr %s702, 2
          %s706 = smul.addr %s705, 4
          %s707 = scalar_lea.hbm %s1, %s706
          %s708 = sshll.u32 %s707, 4
          %s709 = int_to_ptr.hbm [resolvable:$true] %s708
          %s710 = sshll.u32 %s701, 4
          %s711 = int_to_ptr.vmem [resolvable:$true] %s710
          %716 = dma.hbm_to_vmem [thread:$0]  %s709, 256, %s711, %s698, 64, 64, 4
        $region96: #{uncertainty_network_forward.1} parent=91 // pred_fallthru
          _
      $region92: #{uncertainty_network_forward.1} parent=5 // pred_fallthru
        _
      %p717 = scmp.le.s32.totalorder 1, %s42
      %p718 = scmp.lt.s32.totalorder %s42, 4
      %p719 = pnand %p717, %p718
      %p720 = pneg %p719
      // Predicated region
      $region97: #{uncertainty_network_forward.1} parent=5 // pred_check
        _
      $region98: #{uncertainty_network_forward.1} parent=5 // pred_check_branch
        %722 = sbr.rel (%p719) target = $region100
      $region99: #{uncertainty_network_forward.1} parent=5 // pred_region
        %s723 = ssub.s32 %s42, 1
        // Predicated region
        $region101: #{uncertainty_network_forward.1} parent=99 // pred_check
          %p724 = pneg %p63
        $region102: #{uncertainty_network_forward.1} parent=99 // pred_check_branch
          %726 = sbr.rel (%p724) target = $region104
        $region103: #{uncertainty_network_forward.1} parent=99 // pred_region
          %728 = dma.done [#allocation3], 320
        $region104: #{uncertainty_network_forward.1} parent=99 // pred_fallthru
          _
        %s729 = sand.u32 %s47, 1
        %s730 = scalar_lea.sflag [#allocation6], %s729
        %s731 = sand.u32 %s76, 1
        %s732 = smul.addr %s731, 16
        %s733 = scalar_lea.vmem [#allocation5], %s732
        // Predicated region
        $region105: #{uncertainty_network_forward.1} parent=99 // pred_check
          %p734 = pneg %p89
        $region106: #{uncertainty_network_forward.1} parent=99 // pred_check_branch
          %736 = sbr.rel (%p734) target = $region108
        $region107: #{uncertainty_network_forward.1} parent=99 // pred_region
          %738 = dma.done %s730, 256
        $region108: #{uncertainty_network_forward.1} parent=99 // pred_fallthru
          _
        // Predicated region
        $region109: #{uncertainty_network_forward.1} parent=99 // pred_check
          %p739 = pneg %p110
        $region110: #{uncertainty_network_forward.1} parent=99 // pred_check_branch
          %741 = sbr.rel (%p739) target = $region112
        $region111: #{uncertainty_network_forward.1} parent=99 // pred_region
          %743 = dma.done [#allocation6], 384
        $region112: #{uncertainty_network_forward.1} parent=99 // pred_fallthru
          _
        // Predicated region
        $region113: #{uncertainty_network_forward.1} parent=99 // pred_check
          %p744 = pneg %p131
        $region114: #{uncertainty_network_forward.1} parent=99 // pred_check_branch
          %746 = sbr.rel (%p744) target = $region116
        $region115: #{uncertainty_network_forward.1} parent=99 // pred_region
          %748 = dma.done [#allocation9], 48
        $region116: #{uncertainty_network_forward.1} parent=99 // pred_fallthru
          _
        // Predicated region
        $region117: #{uncertainty_network_forward.1} parent=99 // pred_check
          %p749 = pneg %p152
        $region118: #{uncertainty_network_forward.1} parent=99 // pred_check_branch
          %751 = sbr.rel (%p749) target = $region120
        $region119: #{uncertainty_network_forward.1} parent=99 // pred_region
          %753 = dma.done [#allocation9], 1152
        $region120: #{uncertainty_network_forward.1} parent=99 // pred_fallthru
          _
        // Predicated region
        $region121: #{uncertainty_network_forward.1} parent=99 // pred_check
          %p754 = pneg %p215
        $region122: #{uncertainty_network_forward.1} parent=99 // pred_check_branch
          %756 = sbr.rel (%p754) target = $region124
        $region123: #{uncertainty_network_forward.1} parent=99 // pred_region
          %758 = dma.done [#allocation12], 48
        $region124: #{uncertainty_network_forward.1} parent=99 // pred_fallthru
          _
        // Predicated region
        $region125: #{uncertainty_network_forward.1} parent=99 // pred_check
          %p759 = pneg %p236
        $region126: #{uncertainty_network_forward.1} parent=99 // pred_check_branch
          %761 = sbr.rel (%p759) target = $region128
        $region127: #{uncertainty_network_forward.1} parent=99 // pred_region
          %763 = dma.done [#allocation12], 768
        $region128: #{uncertainty_network_forward.1} parent=99 // pred_fallthru
          _
        // Predicated region
        $region129: #{uncertainty_network_forward.1} parent=99 // pred_check
          %p764 = pneg %p362
        $region130: #{uncertainty_network_forward.1} parent=99 // pred_check_branch
          %766 = sbr.rel (%p764) target = $region132
        $region131: #{uncertainty_network_forward.1} parent=99 // pred_region
          %768 = dma.done [#allocation15], 48
        $region132: #{uncertainty_network_forward.1} parent=99 // pred_fallthru
          _
        // Predicated region
        $region133: #{uncertainty_network_forward.1} parent=99 // pred_check
          %p769 = pneg %p425
        $region134: #{uncertainty_network_forward.1} parent=99 // pred_check_branch
          %771 = sbr.rel (%p769) target = $region136
        $region135: #{uncertainty_network_forward.1} parent=99 // pred_region
          %773 = dma.done [#allocation15], 48
        $region136: #{uncertainty_network_forward.1} parent=99 // pred_fallthru
          _
        // Predicated region
        $region137: #{uncertainty_network_forward.1} parent=99 // pred_check
          %p774 = pneg %p467
        $region138: #{uncertainty_network_forward.1} parent=99 // pred_check_branch
          %776 = sbr.rel (%p774) target = $region140
        $region139: #{uncertainty_network_forward.1} parent=99 // pred_region
          %778 = dma.done [#allocation18], 48
        $region140: #{uncertainty_network_forward.1} parent=99 // pred_fallthru
          _
        %p779 = pneg %p63
        %p780 = pneg %p60
        %s781 = sand.u32 %s47, 1
        %s782 = scalar_lea.sflag [#allocation6], %s781
        %s783 = sand.u32 %s76, 1
        %s784 = smul.addr %s783, 16
        %s785 = scalar_lea.vmem [#allocation5], %s784
        %p786 = pneg %p89
        %p787 = pneg %p86
        %p788 = pneg %p110
        %p789 = pneg %p107
        %p790 = pneg %p131
        %p791 = pneg %p128
        %p792 = pneg %p152
        %p793 = pneg %p149
        %p794 = pneg %p173
        %p795 = pneg %p170
        %p796 = pneg %p194
        %p797 = pneg %p191
        %p798 = pneg %p215
        %p799 = pneg %p212
        %p800 = pneg %p236
        %p801 = pneg %p233
        %p802 = pneg %p257
        %p803 = pneg %p254
        %p804 = pneg %p278
        %p805 = pneg %p275
        %p806 = pneg %p299
        %p807 = pneg %p296
        %p808 = pneg %p320
        %p809 = pneg %p317
        %p810 = pneg %p341
        %p811 = pneg %p338
        %p812 = pneg %p362
        %p813 = pneg %p359
        %p814 = pneg %p383
        %p815 = pneg %p380
        %p816 = pneg %p404
        %p817 = pneg %p401
        %p818 = pneg %p425
        %p819 = pneg %p422
        %p820 = pneg %p446
        %p821 = pneg %p443
        %p822 = pneg %p467
        %p823 = pneg %p464
        %p824 = pneg %p493
        %p825 = pneg %p490
        %s826 = sand.u32 %s480, 1
        %s827 = scalar_lea.sflag [#allocation4], %s826
        %s828 = sand.u32 %s480, 1
        %s829 = smul.addr %s828, 40
        %s830 = scalar_lea.vmem [#allocation19], %s829
        %p831 = pneg %p519
        %p832 = pneg %p516
        %s833 = sand.u32 %s506, 1
        %s834 = scalar_lea.sflag [#allocation21], %s833
        %s835 = sand.u32 %s506, 1
        %s836 = smul.addr %s835, 16
        %s837 = scalar_lea.vmem [#allocation20], %s836
        %s838 = smul.u32 2, %s47
        %s839 = smul.u32 2, %s47
        %s840 = smul.u32 2, %s47
        %v841 = vld [vmem:[#allocation2] sm:$0xf]
        %v842 = vld [vmem:[#allocation2 + $0x4] sm:$0xf]
        %v843 = vld [vmem:[#allocation2 + $0x8] sm:$0xf]
        %v844 = vld [vmem:[#allocation2 + $0xc] sm:$0xf]
        %v845 = vld [vmem:[#allocation2 + $0x10] sm:$0xf]
        %s846 = smul.u32 %s47, 8
        %s847 = scalar_lea.vmem [#allocation7], %s846
        %v848 = vld [vmem:[%s847] sm:$0x3f]
        %s849 = scalar_lea.vmem [#allocation8], %s47
        %v850 = vld [vmem:[%s849] sm:$0x1]
        %v852 = vperm.slane %v850, 0
        %859 = vst [vmem:[#allocation1] ss:$2 sm:$0xff] %v841
        %s860 = scalar_lea.vmem [#allocation1], 1
        %861 = vst [vmem:[%s860] ss:$2 sm:$0xff] %v842
        %s862 = scalar_lea.vmem [#allocation1], 16
        %863 = vst [vmem:[%s862] ss:$2 sm:$0xff] %v843
        %s864 = scalar_lea.vmem [#allocation1], 17
        %865 = vst [vmem:[%s864] ss:$2 sm:$0xff] %v844
        %s866 = scalar_lea.vmem [#allocation1], 32
        %867 = vst [vmem:[%s866] ss:$2 sm:$0xff] %v845
        %v868 = vld.sshfl [vmem:[#allocation1] sm:$0xff pattern:$0x75316420]
        %v869 = vld.sshfl [vmem:[#allocation1 + $0x10] sm:$0xff pattern:$0x75316420]
        %v870 = vld.sshfl [vmem:[#allocation1 + $0x20] sm:$0xff pattern:$0x75316420]
        %vm871 = vcmask 48128
        %v872 = vsel %vm871, %v868, 0
        %v874 = vsel %vm871, %v869, 0
        %v876 = vsel %vm871, %v870, 0
        %vm878 = vcmask 1045504
        %v880 = vsel %vm878, %v848, 0
        %882 = vmatpush.msra.mxu0 0.0
        %883 = vmatpush.msra.mxu0 0.0
        %884 = vmatpush.msra.mxu0 0.0
        %885 = vmatpush.msra.mxu0 0.0
        %886 = vmatpush.msra.mxu0 0.0
        %887 = vmatpush.msra.mxu0 0.0
        %888 = vmatpush.msra.mxu0 0.0
        %889 = vmatpush.msra.mxu0 0.0
        %890 = vmatpush.msra.mxu0 0.0
        %891 = vmatpush.msra.mxu0 0.0
        %892 = vmatpush.msra.mxu0 0.0
        %893 = vmatpush.msra.mxu0 0.0
        %894 = vmatpush.msra.mxu0 0.0
        %895 = vmatpush.msra.mxu0 0.0
        %896 = vmatpush.msra.mxu0 0.0
        %897 = vmatpush.msra.mxu0 %v880
        %898 = vmatmul.f32.gmra.mxu0 %v872
        %v899 = vpop.f32.mrf.mxu0
        %v900 = vadd.f32 %v852, %v899
        %901 = vmatmul.f32.gmra.mxu0 %v874
        %v902 = vpop.f32.mrf.mxu0
        %v903 = vadd.f32 %v852, %v902
        %904 = vmatmul.f32.gmra.mxu0 %v876
        %v905 = vpop.f32.mrf.mxu0
        %v906 = vadd.f32 %v852, %v905
        %907 = vdwg.mxu0
        %vm908 = vcmp.ge.f32.partialorder %v900, 0.0
        %vm909 = vcmp.ge.f32.partialorder %v903, 0.0
        %vm910 = vcmp.ge.f32.partialorder %v906, 0.0
        %v911 = vmul.f32 %v900, 0.01
        %v912 = vmul.f32 %v903, 0.01
        %v913 = vmul.f32 %v906, 0.01
        %v914 = vsel %vm908, %v900, %v911
        %v915 = vsel %vm909, %v903, %v912
        %v916 = vsel %vm910, %v906, %v913
        %s917 = smul.u32 %s47, 24
        %s918 = scalar_lea.vmem [#allocation10], %s917
        %v919 = vld [vmem:[%s918] sm:$0xff]
        %v920 = vld [vmem:[%s918 + $0x8] sm:$0xff]
        %v921 = vld [vmem:[%s918 + $0x10] sm:$0xff]
        %s922 = scalar_lea.vmem %s5, %s47
        %v923 = vld [vmem:[%s922] sm:$0x1]
        %v925 = vperm.slane %v923, 0
        %vm927 = vcmask 195584
        %v929 = vsel %vm927, %v914, 0
        %v932 = vsel %vm927, %v915, 0
        %v935 = vsel %vm927, %v916, 0
        %937 = vmatpush.msra.mxu0 0.0
        %938 = vmatpush.msra.mxu0 0.0
        %939 = vmatpush.msra.mxu0 0.0
        %940 = vmatpush.msra.mxu0 0.0
        %941 = vmatpush.msra.mxu0 0.0
        %942 = vmatpush.msra.mxu0 0.0
        %943 = vmatpush.msra.mxu0 0.0
        %944 = vmatpush.msra.mxu0 0.0
        %945 = vmatpush.msra.mxu0 0.0
        %946 = vmatpush.msra.mxu0 0.0
        %947 = vmatpush.msra.mxu0 0.0
        %948 = vmatpush.msra.mxu0 0.0
        %949 = vmatpush.msra.mxu0 0.0
        %950 = vmatpush.msra.mxu0 %v921
        %951 = vmatpush.msra.mxu0 %v920
        %952 = vmatpush.msra.mxu0 %v919
        %953 = vmatmul.f32.gmra.mxu0 %v929
        %v954 = vpop.f32.mrf.mxu0
        %v955 = vadd.f32 %v925, %v954
        %956 = vmatmul.f32.gmra.mxu0 %v932
        %v957 = vpop.f32.mrf.mxu0
        %v958 = vadd.f32 %v925, %v957
        %959 = vmatmul.f32.gmra.mxu0 %v935
        %v960 = vpop.f32.mrf.mxu0
        %v961 = vadd.f32 %v925, %v960
        %962 = vdwg.mxu0
        %vm963 = vcmp.ge.f32.partialorder %v955, 0.0
        %vm964 = vcmp.ge.f32.partialorder %v958, 0.0
        %vm965 = vcmp.ge.f32.partialorder %v961, 0.0
        %v966 = vmul.f32 %v955, 0.01
        %v967 = vmul.f32 %v958, 0.01
        %v968 = vmul.f32 %v961, 0.01
        %v969 = vsel %vm963, %v955, %v966
        %v970 = vsel %vm964, %v958, %v967
        %v971 = vsel %vm965, %v961, %v968
        %s972 = scalar_lea.vmem %s6, %s917
        %v973 = vld [vmem:[%s972] sm:$0xff]
        %v974 = vld [vmem:[%s972 + $0x8] sm:$0xff]
        %v975 = vld [vmem:[%s972 + $0x10] sm:$0xff]
        %s976 = scalar_lea.vmem [#allocation11], %s47
        %v977 = vld [vmem:[%s976] sm:$0x1]
        %v979 = vperm.slane %v977, 0
        %v982 = vsel %vm927, %v969, 0
        %v985 = vsel %vm927, %v970, 0
        %v988 = vsel %vm927, %v971, 0
        %990 = vmatpush.msra.mxu0 0.0
        %991 = vmatpush.msra.mxu0 0.0
        %992 = vmatpush.msra.mxu0 0.0
        %993 = vmatpush.msra.mxu0 0.0
        %994 = vmatpush.msra.mxu0 0.0
        %995 = vmatpush.msra.mxu0 0.0
        %996 = vmatpush.msra.mxu0 0.0
        %997 = vmatpush.msra.mxu0 0.0
        %998 = vmatpush.msra.mxu0 0.0
        %999 = vmatpush.msra.mxu0 0.0
        %1000 = vmatpush.msra.mxu0 0.0
        %1001 = vmatpush.msra.mxu0 0.0
        %1002 = vmatpush.msra.mxu0 0.0
        %1003 = vmatpush.msra.mxu0 %v975
        %1004 = vmatpush.msra.mxu0 %v974
        %1005 = vmatpush.msra.mxu0 %v973
        %1006 = vmatmul.f32.gmra.mxu0 %v982
        %v1007 = vpop.f32.mrf.mxu0
        %v1008 = vadd.f32 %v979, %v1007
        %1009 = vmatmul.f32.gmra.mxu0 %v985
        %v1010 = vpop.f32.mrf.mxu0
        %v1011 = vadd.f32 %v979, %v1010
        %1012 = vmatmul.f32.gmra.mxu0 %v988
        %v1013 = vpop.f32.mrf.mxu0
        %v1014 = vadd.f32 %v979, %v1013
        %1015 = vdwg.mxu0
        %s1016 = smul.u32 %s47, 16
        %s1017 = scalar_lea.vmem [#allocation13], %s1016
        %v1018 = vld [vmem:[%s1017] sm:$0xff]
        %v1019 = vld [vmem:[%s1017 + $0x8] sm:$0xff]
        %s1020 = scalar_lea.vmem %s10, %s47
        %v1021 = vld [vmem:[%s1020] sm:$0x1]
        %v1023 = vperm.slane %v1021, 0
        %vm1025 = vcmask 130048
        %v1027 = vsel %vm1025, %v1008, 0
        %v1030 = vsel %vm1025, %v1011, 0
        %v1033 = vsel %vm1025, %v1014, 0
        %1035 = vmatpush.msra.mxu0 0.0
        %1036 = vmatpush.msra.mxu0 0.0
        %1037 = vmatpush.msra.mxu0 0.0
        %1038 = vmatpush.msra.mxu0 0.0
        %1039 = vmatpush.msra.mxu0 0.0
        %1040 = vmatpush.msra.mxu0 0.0
        %1041 = vmatpush.msra.mxu0 0.0
        %1042 = vmatpush.msra.mxu0 0.0
        %1043 = vmatpush.msra.mxu0 0.0
        %1044 = vmatpush.msra.mxu0 0.0
        %1045 = vmatpush.msra.mxu0 0.0
        %1046 = vmatpush.msra.mxu0 0.0
        %1047 = vmatpush.msra.mxu0 0.0
        %1048 = vmatpush.msra.mxu0 0.0
        %1049 = vmatpush.msra.mxu0 %v1019
        %1050 = vmatpush.msra.mxu0 %v1018
        %1051 = vmatmul.f32.gmra.mxu0 %v1027
        %v1052 = vpop.f32.mrf.mxu0
        %v1053 = vadd.f32 %v1023, %v1052
        %1054 = vmatmul.f32.gmra.mxu0 %v1030
        %v1055 = vpop.f32.mrf.mxu0
        %v1056 = vadd.f32 %v1023, %v1055
        %1057 = vmatmul.f32.gmra.mxu0 %v1033
        %v1058 = vpop.f32.mrf.mxu0
        %v1059 = vadd.f32 %v1023, %v1058
        %1060 = vdwg.mxu0
        %v1064 = vrot.slane %v1053, 4
        %v1065 = vrot.slane %v1056, 4
        %s1068 = scalar_lea.vmem [#allocation1], 1
        %1069 = vst [vmem:[%s1068] ss:$2 sm:$0xff] %v1053
        %v1070 = vld.sshfl [vmem:[#allocation1] sm:$0xff pattern:$0x75316420]
        %s1071 = scalar_lea.vmem [#allocation1], 17
        %1072 = vst [vmem:[%s1071] ss:$2 sm:$0xff] %v1064
        %v1073 = vld.sshfl [vmem:[#allocation1 + $0x10] sm:$0xff pattern:$0x75316420]
        %s1074 = scalar_lea.vmem [#allocation1], 33
        %1075 = vst [vmem:[%s1074] ss:$2 sm:$0xff] %v1056
        %v1076 = vld.sshfl [vmem:[#allocation1 + $0x20] sm:$0xff pattern:$0x75316420]
        %s1077 = scalar_lea.vmem [#allocation1], 49
        %1078 = vst [vmem:[%s1077] ss:$2 sm:$0xff] %v1065
        %v1079 = vld.sshfl [vmem:[#allocation1 + $0x30] sm:$0xff pattern:$0x75316420]
        %1080 = vst [vmem:[%s1068] ss:$2 sm:$0xff] %v1059
        %v1081 = vld.sshfl [vmem:[#allocation1] sm:$0xff pattern:$0x75316420]
        %vm1087 = vcmask 1043456
        %v1088 = vsel %vm1087, %v1053, %v1070
        %v1089 = vsel %vm1087, %v1064, %v1073
        %v1090 = vsel %vm1087, %v1056, %v1076
        %v1091 = vsel %vm1087, %v1065, %v1079
        %v1092 = vsel %vm1087, %v1059, %v1081
        %v1093 = vld [vmem:[%s733] sm:$0xf]
        %v1094 = vld [vmem:[%s733 + $0x4] sm:$0xf]
        %v1095 = vld [vmem:[%s733 + $0x8] sm:$0xf]
        %v1096 = vld [vmem:[%s733 + $0xc] sm:$0xf]
        %s1097 = smul.u32 %s47, 32
        %s1098 = scalar_lea.vmem %s9, %s1097
        %v1099 = vld [vmem:[%s1098] sm:$0xff]
        %v1100 = vld [vmem:[%s1098 + $0x8] sm:$0xff]
        %v1101 = vld [vmem:[%s1098 + $0x10] sm:$0xff]
        %v1102 = vld [vmem:[%s1098 + $0x18] sm:$0xff]
        %s1103 = scalar_lea.vmem %s11, %s47
        %v1104 = vld [vmem:[%s1103] sm:$0x1]
        %v1106 = vperm.slane %v1104, 0
        %1110 = vst [vmem:[#allocation1] ss:$2 sm:$0xff] %v1093
        %s1111 = scalar_lea.vmem [#allocation1], 1
        %1112 = vst [vmem:[%s1111] ss:$2 sm:$0xff] %v1095
        %v1113 = vld.sshfl [vmem:[#allocation1] sm:$0xff pattern:$0x75316420]
        %vm1114 = vcmask 261120
        %v1115 = vsel %vm1114, %v1113, 0
        %1117 = vmatpush.msra.mxu0 0.0
        %1118 = vmatpush.msra.mxu0 0.0
        %1119 = vmatpush.msra.mxu0 0.0
        %1120 = vmatpush.msra.mxu0 0.0
        %1121 = vmatpush.msra.mxu0 0.0
        %1122 = vmatpush.msra.mxu0 0.0
        %1123 = vmatpush.msra.mxu0 0.0
        %1124 = vmatpush.msra.mxu0 0.0
        %1125 = vmatpush.msra.mxu0 0.0
        %1126 = vmatpush.msra.mxu0 0.0
        %1127 = vmatpush.msra.mxu0 0.0
        %1128 = vmatpush.msra.mxu0 0.0
        %1129 = vmatpush.msra.mxu0 %v1102
        %1130 = vmatpush.msra.mxu0 %v1101
        %1131 = vmatpush.msra.mxu0 %v1100
        %1132 = vmatpush.msra.mxu0 %v1099
        %1133 = vmatmul.f32.gmra.mxu0 %v1115
        %v1134 = vpop.f32.mrf.mxu0
        %v1135 = vadd.f32 %v1106, %v1134
        %1136 = vdwg.mxu0
        %1137 = vst [vmem:[#allocation1] ss:$2 sm:$0xff] %v1093
        %s1138 = scalar_lea.vmem [#allocation1], 1
        %1139 = vst [vmem:[%s1138] ss:$2 sm:$0xff] %v1095
        %v1140 = vld.sshfl [vmem:[#allocation1] sm:$0xff pattern:$0x75316420]
        %1145 = vrot.lane.b32.xlu0 %v1099, 64
        %v1146 = vpop.permute.xlu0 %1145
        %1147 = vrot.lane.b32.xlu0 %v1100, 64
        %v1148 = vpop.permute.xlu0 %1147
        %1149 = vrot.lane.b32.xlu0 %v1101, 64
        %v1150 = vpop.permute.xlu0 %1149
        %1151 = vrot.lane.b32.xlu0 %v1102, 64
        %v1152 = vpop.permute.xlu0 %1151
        %1157 = vrot.lane.b32.xlu0 %v1106, 64
        %v1158 = vpop.permute.xlu0 %1157
        %v1160 = vsel %vm1114, %v1140, 0
        %1162 = vmatpush.msra.mxu0 0.0
        %1163 = vmatpush.msra.mxu0 0.0
        %1164 = vmatpush.msra.mxu0 0.0
        %1165 = vmatpush.msra.mxu0 0.0
        %1166 = vmatpush.msra.mxu0 0.0
        %1167 = vmatpush.msra.mxu0 0.0
        %1168 = vmatpush.msra.mxu0 0.0
        %1169 = vmatpush.msra.mxu0 0.0
        %1170 = vmatpush.msra.mxu0 0.0
        %1171 = vmatpush.msra.mxu0 0.0
        %1172 = vmatpush.msra.mxu0 0.0
        %1173 = vmatpush.msra.mxu0 0.0
        %1174 = vmatpush.msra.mxu0 %v1152
        %1175 = vmatpush.msra.mxu0 %v1150
        %1176 = vmatpush.msra.mxu0 %v1148
        %1177 = vmatpush.msra.mxu0 %v1146
        %1178 = vmatmul.f32.gmra.mxu0 %v1160
        %v1179 = vpop.f32.mrf.mxu0
        %v1180 = vadd.f32 %v1158, %v1179
        %1181 = vdwg.mxu0
        %v1182 = vadd.f32 %v1088, %v1135
        %v1183 = vxor.u32 %v1182, 2147483648
        %v1184 = vmul.f32 %v1183, 1.442695
        %v1185 = vpow.pop %v1184
        %v1186 = vadd.f32 %v1185, 1.0
        %v1187 = vrcp.pop %v1186
        %v1188 = vmul.f32 %v1186, %v1187
        %v1189 = vsub.f32 1.0, %v1188
        %v1190 = vmul.f32 %v1187, %v1189
        %v1191 = vadd.f32 %v1187, %v1190
        %vm1192 = vweird.f32 %v1186
        %vm1193 = vweird.f32 %v1187
        %vm1194 = vmor %vm1192, %vm1193
        %v1195 = vsel %vm1194, %v1187, %v1191
        %v1196 = vand.u32 2147483647, %v1186
        %vm1197 = vcmp.eq.f32.partialorder %v1196, 8.507059e+37
        %v1198 = vand.u32 %v1186, 2147483648
        %v1199 = vor.u32 1.1754944e-38, %v1198
        %v1200 = vsel %vm1197, %v1199, %v1195
        %v1201 = vmul.f32 1.0, %v1200
        %v1202 = vmul.f32 %v1201, %v1180
        %1204 = vrot.lane.b32.xlu0 %v1202, 64
        %v1205 = vpop.permute.xlu0 %1204
        %v1207 = vadd.f32 %v1088, %v1205
        %v1208 = vtanh.pop %v1207
        %v1209 = vsub.f32 1.0, %v1201
        %1211 = vrot.lane.b32.xlu0 %v1208, 96
        %v1212 = vpop.permute.xlu0 %1211
        %v1214 = vmul.f32 %v1209, %v1212
        %1215 = vst [vmem:[#allocation1] ss:$2 sm:$0xff] %v1093
        %s1216 = scalar_lea.vmem [#allocation1], 1
        %1217 = vst [vmem:[%s1216] ss:$2 sm:$0xff] %v1095
        %v1218 = vld.sshfl [vmem:[#allocation1] sm:$0xff pattern:$0x75316420]
        %1219 = vrot.lane.b32.xlu0 %v1218, 32
        %v1220 = vpop.permute.xlu0 %1219
        %v1222 = vmul.f32 %v1201, %v1220
        %v1223 = vadd.f32 %v1214, %v1222
        %1225 = vrot.lane.b32.xlu0 %v1223, 96
        %v1226 = vpop.permute.xlu0 %1225
        %v1227 = vsel %vm1114, %v1226, 0
        %1229 = vmatpush.msra.mxu0 0.0
        %1230 = vmatpush.msra.mxu0 0.0
        %1231 = vmatpush.msra.mxu0 0.0
        %1232 = vmatpush.msra.mxu0 0.0
        %1233 = vmatpush.msra.mxu0 0.0
        %1234 = vmatpush.msra.mxu0 0.0
        %1235 = vmatpush.msra.mxu0 0.0
        %1236 = vmatpush.msra.mxu0 0.0
        %1237 = vmatpush.msra.mxu0 0.0
        %1238 = vmatpush.msra.mxu0 0.0
        %1239 = vmatpush.msra.mxu0 0.0
        %1240 = vmatpush.msra.mxu0 0.0
        %1241 = vmatpush.msra.mxu0 %v1102
        %1242 = vmatpush.msra.mxu0 %v1101
        %1243 = vmatpush.msra.mxu0 %v1100
        %1244 = vmatpush.msra.mxu0 %v1099
        %1245 = vmatmul.f32.gmra.mxu0 %v1227
        %v1246 = vpop.f32.mrf.mxu0
        %v1247 = vadd.f32 %v1106, %v1246
        %1248 = vdwg.mxu0
        %1249 = vmatpush.msra.mxu0 0.0
        %1250 = vmatpush.msra.mxu0 0.0
        %1251 = vmatpush.msra.mxu0 0.0
        %1252 = vmatpush.msra.mxu0 0.0
        %1253 = vmatpush.msra.mxu0 0.0
        %1254 = vmatpush.msra.mxu0 0.0
        %1255 = vmatpush.msra.mxu0 0.0
        %1256 = vmatpush.msra.mxu0 0.0
        %1257 = vmatpush.msra.mxu0 0.0
        %1258 = vmatpush.msra.mxu0 0.0
        %1259 = vmatpush.msra.mxu0 0.0
        %1260 = vmatpush.msra.mxu0 0.0
        %1261 = vmatpush.msra.mxu0 %v1152
        %1262 = vmatpush.msra.mxu0 %v1150
        %1263 = vmatpush.msra.mxu0 %v1148
        %1264 = vmatpush.msra.mxu0 %v1146
        %1265 = vmatmul.f32.gmra.mxu0 %v1227
        %v1266 = vpop.f32.mrf.mxu0
        %v1267 = vadd.f32 %v1158, %v1266
        %1268 = vdwg.mxu0
        %v1269 = vadd.f32 %v1089, %v1247
        %v1270 = vxor.u32 %v1269, 2147483648
        %v1271 = vmul.f32 %v1270, 1.442695
        %v1272 = vpow.pop %v1271
        %v1273 = vadd.f32 %v1272, 1.0
        %v1274 = vrcp.pop %v1273
        %v1275 = vmul.f32 %v1273, %v1274
        %v1276 = vsub.f32 1.0, %v1275
        %v1277 = vmul.f32 %v1274, %v1276
        %v1278 = vadd.f32 %v1274, %v1277
        %vm1279 = vweird.f32 %v1273
        %vm1280 = vweird.f32 %v1274
        %vm1281 = vmor %vm1279, %vm1280
        %v1282 = vsel %vm1281, %v1274, %v1278
        %v1283 = vand.u32 2147483647, %v1273
        %vm1284 = vcmp.eq.f32.partialorder %v1283, 8.507059e+37
        %v1285 = vand.u32 %v1273, 2147483648
        %v1286 = vor.u32 1.1754944e-38, %v1285
        %v1287 = vsel %vm1284, %v1286, %v1282
        %v1288 = vmul.f32 1.0, %v1287
        %v1289 = vmul.f32 %v1288, %v1267
        %1291 = vrot.lane.b32.xlu0 %v1289, 64
        %v1292 = vpop.permute.xlu0 %1291
        %v1294 = vadd.f32 %v1089, %v1292
        %v1295 = vtanh.pop %v1294
        %v1296 = vsub.f32 1.0, %v1288
        %1298 = vrot.lane.b32.xlu0 %v1295, 96
        %v1299 = vpop.permute.xlu0 %1298
        %v1301 = vmul.f32 %v1296, %v1299
        %v1302 = vmul.f32 %v1288, %v1223
        %v1303 = vadd.f32 %v1301, %v1302
        %1305 = vrot.lane.b32.xlu0 %v1303, 96
        %v1306 = vpop.permute.xlu0 %1305
        %v1307 = vsel %vm1114, %v1306, 0
        %1309 = vmatpush.msra.mxu0 0.0
        %1310 = vmatpush.msra.mxu0 0.0
        %1311 = vmatpush.msra.mxu0 0.0
        %1312 = vmatpush.msra.mxu0 0.0
        %1313 = vmatpush.msra.mxu0 0.0
        %1314 = vmatpush.msra.mxu0 0.0
        %1315 = vmatpush.msra.mxu0 0.0
        %1316 = vmatpush.msra.mxu0 0.0
        %1317 = vmatpush.msra.mxu0 0.0
        %1318 = vmatpush.msra.mxu0 0.0
        %1319 = vmatpush.msra.mxu0 0.0
        %1320 = vmatpush.msra.mxu0 0.0
        %1321 = vmatpush.msra.mxu0 %v1102
        %1322 = vmatpush.msra.mxu0 %v1101
        %1323 = vmatpush.msra.mxu0 %v1100
        %1324 = vmatpush.msra.mxu0 %v1099
        %1325 = vmatmul.f32.gmra.mxu0 %v1307
        %v1326 = vpop.f32.mrf.mxu0
        %v1327 = vadd.f32 %v1106, %v1326
        %1328 = vdwg.mxu0
        %1329 = vmatpush.msra.mxu0 0.0
        %1330 = vmatpush.msra.mxu0 0.0
        %1331 = vmatpush.msra.mxu0 0.0
        %1332 = vmatpush.msra.mxu0 0.0
        %1333 = vmatpush.msra.mxu0 0.0
        %1334 = vmatpush.msra.mxu0 0.0
        %1335 = vmatpush.msra.mxu0 0.0
        %1336 = vmatpush.msra.mxu0 0.0
        %1337 = vmatpush.msra.mxu0 0.0
        %1338 = vmatpush.msra.mxu0 0.0
        %1339 = vmatpush.msra.mxu0 0.0
        %1340 = vmatpush.msra.mxu0 0.0
        %1341 = vmatpush.msra.mxu0 %v1152
        %1342 = vmatpush.msra.mxu0 %v1150
        %1343 = vmatpush.msra.mxu0 %v1148
        %1344 = vmatpush.msra.mxu0 %v1146
        %1345 = vmatmul.f32.gmra.mxu0 %v1307
        %v1346 = vpop.f32.mrf.mxu0
        %v1347 = vadd.f32 %v1158, %v1346
        %1348 = vdwg.mxu0
        %v1349 = vadd.f32 %v1090, %v1327
        %v1350 = vxor.u32 %v1349, 2147483648
        %v1351 = vmul.f32 %v1350, 1.442695
        %v1352 = vpow.pop %v1351
        %v1353 = vadd.f32 %v1352, 1.0
        %v1354 = vrcp.pop %v1353
        %v1355 = vmul.f32 %v1353, %v1354
        %v1356 = vsub.f32 1.0, %v1355
        %v1357 = vmul.f32 %v1354, %v1356
        %v1358 = vadd.f32 %v1354, %v1357
        %vm1359 = vweird.f32 %v1353
        %vm1360 = vweird.f32 %v1354
        %vm1361 = vmor %vm1359, %vm1360
        %v1362 = vsel %vm1361, %v1354, %v1358
        %v1363 = vand.u32 2147483647, %v1353
        %vm1364 = vcmp.eq.f32.partialorder %v1363, 8.507059e+37
        %v1365 = vand.u32 %v1353, 2147483648
        %v1366 = vor.u32 1.1754944e-38, %v1365
        %v1367 = vsel %vm1364, %v1366, %v1362
        %v1368 = vmul.f32 1.0, %v1367
        %v1369 = vmul.f32 %v1368, %v1347
        %1371 = vrot.lane.b32.xlu0 %v1369, 64
        %v1372 = vpop.permute.xlu0 %1371
        %v1374 = vadd.f32 %v1090, %v1372
        %v1375 = vtanh.pop %v1374
        %v1376 = vsub.f32 1.0, %v1368
        %1378 = vrot.lane.b32.xlu0 %v1375, 96
        %v1379 = vpop.permute.xlu0 %1378
        %v1381 = vmul.f32 %v1376, %v1379
        %v1382 = vmul.f32 %v1368, %v1303
        %v1383 = vadd.f32 %v1381, %v1382
        %1385 = vrot.lane.b32.xlu0 %v1383, 96
        %v1386 = vpop.permute.xlu0 %1385
        %v1387 = vsel %vm1114, %v1386, 0
        %1389 = vmatpush.msra.mxu0 0.0
        %1390 = vmatpush.msra.mxu0 0.0
        %1391 = vmatpush.msra.mxu0 0.0
        %1392 = vmatpush.msra.mxu0 0.0
        %1393 = vmatpush.msra.mxu0 0.0
        %1394 = vmatpush.msra.mxu0 0.0
        %1395 = vmatpush.msra.mxu0 0.0
        %1396 = vmatpush.msra.mxu0 0.0
        %1397 = vmatpush.msra.mxu0 0.0
        %1398 = vmatpush.msra.mxu0 0.0
        %1399 = vmatpush.msra.mxu0 0.0
        %1400 = vmatpush.msra.mxu0 0.0
        %1401 = vmatpush.msra.mxu0 %v1102
        %1402 = vmatpush.msra.mxu0 %v1101
        %1403 = vmatpush.msra.mxu0 %v1100
        %1404 = vmatpush.msra.mxu0 %v1099
        %1405 = vmatmul.f32.gmra.mxu0 %v1387
        %v1406 = vpop.f32.mrf.mxu0
        %v1407 = vadd.f32 %v1106, %v1406
        %1408 = vdwg.mxu0
        %1409 = vmatpush.msra.mxu0 0.0
        %1410 = vmatpush.msra.mxu0 0.0
        %1411 = vmatpush.msra.mxu0 0.0
        %1412 = vmatpush.msra.mxu0 0.0
        %1413 = vmatpush.msra.mxu0 0.0
        %1414 = vmatpush.msra.mxu0 0.0
        %1415 = vmatpush.msra.mxu0 0.0
        %1416 = vmatpush.msra.mxu0 0.0
        %1417 = vmatpush.msra.mxu0 0.0
        %1418 = vmatpush.msra.mxu0 0.0
        %1419 = vmatpush.msra.mxu0 0.0
        %1420 = vmatpush.msra.mxu0 0.0
        %1421 = vmatpush.msra.mxu0 %v1152
        %1422 = vmatpush.msra.mxu0 %v1150
        %1423 = vmatpush.msra.mxu0 %v1148
        %1424 = vmatpush.msra.mxu0 %v1146
        %1425 = vmatmul.f32.gmra.mxu0 %v1387
        %v1426 = vpop.f32.mrf.mxu0
        %v1427 = vadd.f32 %v1158, %v1426
        %1428 = vdwg.mxu0
        %v1429 = vadd.f32 %v1091, %v1407
        %v1430 = vxor.u32 %v1429, 2147483648
        %v1431 = vmul.f32 %v1430, 1.442695
        %v1432 = vpow.pop %v1431
        %v1433 = vadd.f32 %v1432, 1.0
        %v1434 = vrcp.pop %v1433
        %v1435 = vmul.f32 %v1433, %v1434
        %v1436 = vsub.f32 1.0, %v1435
        %v1437 = vmul.f32 %v1434, %v1436
        %v1438 = vadd.f32 %v1434, %v1437
        %vm1439 = vweird.f32 %v1433
        %vm1440 = vweird.f32 %v1434
        %vm1441 = vmor %vm1439, %vm1440
        %v1442 = vsel %vm1441, %v1434, %v1438
        %v1443 = vand.u32 2147483647, %v1433
        %vm1444 = vcmp.eq.f32.partialorder %v1443, 8.507059e+37
        %v1445 = vand.u32 %v1433, 2147483648
        %v1446 = vor.u32 1.1754944e-38, %v1445
        %v1447 = vsel %vm1444, %v1446, %v1442
        %v1448 = vmul.f32 1.0, %v1447
        %v1449 = vmul.f32 %v1448, %v1427
        %1451 = vrot.lane.b32.xlu0 %v1449, 64
        %v1452 = vpop.permute.xlu0 %1451
        %v1454 = vadd.f32 %v1091, %v1452
        %v1455 = vtanh.pop %v1454
        %v1456 = vsub.f32 1.0, %v1448
        %1458 = vrot.lane.b32.xlu0 %v1455, 96
        %v1459 = vpop.permute.xlu0 %1458
        %v1461 = vmul.f32 %v1456, %v1459
        %v1462 = vmul.f32 %v1448, %v1383
        %v1463 = vadd.f32 %v1461, %v1462
        %1465 = vrot.lane.b32.xlu0 %v1463, 96
        %v1466 = vpop.permute.xlu0 %1465
        %v1467 = vsel %vm1114, %v1466, 0
        %1469 = vmatpush.msra.mxu0 0.0
        %1470 = vmatpush.msra.mxu0 0.0
        %1471 = vmatpush.msra.mxu0 0.0
        %1472 = vmatpush.msra.mxu0 0.0
        %1473 = vmatpush.msra.mxu0 0.0
        %1474 = vmatpush.msra.mxu0 0.0
        %1475 = vmatpush.msra.mxu0 0.0
        %1476 = vmatpush.msra.mxu0 0.0
        %1477 = vmatpush.msra.mxu0 0.0
        %1478 = vmatpush.msra.mxu0 0.0
        %1479 = vmatpush.msra.mxu0 0.0
        %1480 = vmatpush.msra.mxu0 0.0
        %1481 = vmatpush.msra.mxu0 %v1102
        %1482 = vmatpush.msra.mxu0 %v1101
        %1483 = vmatpush.msra.mxu0 %v1100
        %1484 = vmatpush.msra.mxu0 %v1099
        %1485 = vmatmul.f32.gmra.mxu0 %v1467
        %v1486 = vpop.f32.mrf.mxu0
        %v1487 = vadd.f32 %v1106, %v1486
        %1488 = vdwg.mxu0
        %1489 = vmatpush.msra.mxu0 0.0
        %1490 = vmatpush.msra.mxu0 0.0
        %1491 = vmatpush.msra.mxu0 0.0
        %1492 = vmatpush.msra.mxu0 0.0
        %1493 = vmatpush.msra.mxu0 0.0
        %1494 = vmatpush.msra.mxu0 0.0
        %1495 = vmatpush.msra.mxu0 0.0
        %1496 = vmatpush.msra.mxu0 0.0
        %1497 = vmatpush.msra.mxu0 0.0
        %1498 = vmatpush.msra.mxu0 0.0
        %1499 = vmatpush.msra.mxu0 0.0
        %1500 = vmatpush.msra.mxu0 0.0
        %1501 = vmatpush.msra.mxu0 %v1152
        %1502 = vmatpush.msra.mxu0 %v1150
        %1503 = vmatpush.msra.mxu0 %v1148
        %1504 = vmatpush.msra.mxu0 %v1146
        %1505 = vmatmul.f32.gmra.mxu0 %v1467
        %v1506 = vpop.f32.mrf.mxu0
        %v1507 = vadd.f32 %v1158, %v1506
        %1508 = vdwg.mxu0
        %v1509 = vadd.f32 %v1092, %v1487
        %v1510 = vxor.u32 %v1509, 2147483648
        %v1511 = vmul.f32 %v1510, 1.442695
        %v1512 = vpow.pop %v1511
        %v1513 = vadd.f32 %v1512, 1.0
        %v1514 = vrcp.pop %v1513
        %v1515 = vmul.f32 %v1513, %v1514
        %v1516 = vsub.f32 1.0, %v1515
        %v1517 = vmul.f32 %v1514, %v1516
        %v1518 = vadd.f32 %v1514, %v1517
        %vm1519 = vweird.f32 %v1513
        %vm1520 = vweird.f32 %v1514
        %vm1521 = vmor %vm1519, %vm1520
        %v1522 = vsel %vm1521, %v1514, %v1518
        %v1523 = vand.u32 2147483647, %v1513
        %vm1524 = vcmp.eq.f32.partialorder %v1523, 8.507059e+37
        %v1525 = vand.u32 %v1513, 2147483648
        %v1526 = vor.u32 1.1754944e-38, %v1525
        %v1527 = vsel %vm1524, %v1526, %v1522
        %v1528 = vmul.f32 1.0, %v1527
        %v1529 = vmul.f32 %v1528, %v1507
        %1531 = vrot.lane.b32.xlu0 %v1529, 64
        %v1532 = vpop.permute.xlu0 %1531
        %v1534 = vadd.f32 %v1092, %v1532
        %v1535 = vtanh.pop %v1534
        %v1536 = vsub.f32 1.0, %v1528
        %1538 = vrot.lane.b32.xlu0 %v1535, 96
        %v1539 = vpop.permute.xlu0 %1538
        %v1541 = vmul.f32 %v1536, %v1539
        %v1542 = vmul.f32 %v1528, %v1463
        %v1543 = vadd.f32 %v1541, %v1542
        %s1544 = scalar_lea.vmem %s13, %s1097
        %v1545 = vld [vmem:[%s1544] sm:$0xff]
        %v1546 = vld [vmem:[%s1544 + $0x8] sm:$0xff]
        %v1547 = vld [vmem:[%s1544 + $0x10] sm:$0xff]
        %v1548 = vld [vmem:[%s1544 + $0x18] sm:$0xff]
        %s1549 = scalar_lea.vmem %s15, %s47
        %v1550 = vld [vmem:[%s1549] sm:$0x1]
        %s1551 = scalar_lea.vmem %s12, %s1097
        %v1552 = vld [vmem:[%s1551] sm:$0xff]
        %v1553 = vld [vmem:[%s1551 + $0x8] sm:$0xff]
        %v1554 = vld [vmem:[%s1551 + $0x10] sm:$0xff]
        %v1555 = vld [vmem:[%s1551 + $0x18] sm:$0xff]
        %s1556 = scalar_lea.vmem [#allocation14], %s47
        %v1557 = vld [vmem:[%s1556] sm:$0x1]
        %v1559 = vperm.slane %v1557, 0
        %1562 = vrot.lane.b32.xlu0 %v1543, 96
        %v1563 = vpop.permute.xlu0 %1562
        %v1564 = vsel %vm1114, %v1563, 0
        %1566 = vmatpush.msra.mxu0 0.0
        %1567 = vmatpush.msra.mxu0 0.0
        %1568 = vmatpush.msra.mxu0 0.0
        %1569 = vmatpush.msra.mxu0 0.0
        %1570 = vmatpush.msra.mxu0 0.0
        %1571 = vmatpush.msra.mxu0 0.0
        %1572 = vmatpush.msra.mxu0 0.0
        %1573 = vmatpush.msra.mxu0 0.0
        %1574 = vmatpush.msra.mxu0 0.0
        %1575 = vmatpush.msra.mxu0 0.0
        %1576 = vmatpush.msra.mxu0 0.0
        %1577 = vmatpush.msra.mxu0 0.0
        %1578 = vmatpush.msra.mxu0 %v1555
        %1579 = vmatpush.msra.mxu0 %v1554
        %1580 = vmatpush.msra.mxu0 %v1553
        %1581 = vmatpush.msra.mxu0 %v1552
        %1582 = vmatmul.f32.gmra.mxu0 %v1227
        %v1583 = vpop.f32.mrf.mxu0
        %v1584 = vadd.f32 %v1559, %v1583
        %1585 = vmatmul.f32.gmra.mxu0 %v1307
        %v1586 = vpop.f32.mrf.mxu0
        %v1587 = vadd.f32 %v1559, %v1586
        %1588 = vmatmul.f32.gmra.mxu0 %v1387
        %v1589 = vpop.f32.mrf.mxu0
        %v1590 = vadd.f32 %v1559, %v1589
        %1591 = vmatmul.f32.gmra.mxu0 %v1467
        %v1592 = vpop.f32.mrf.mxu0
        %v1593 = vadd.f32 %v1559, %v1592
        %1594 = vmatmul.f32.gmra.mxu0 %v1564
        %v1595 = vpop.f32.mrf.mxu0
        %v1596 = vadd.f32 %v1559, %v1595
        %1597 = vdwg.mxu0
        %v1599 = vperm.slane %v1550, 0
        %1603 = vst [vmem:[#allocation1] ss:$2 sm:$0xff] %v1094
        %s1604 = scalar_lea.vmem [#allocation1], 1
        %1605 = vst [vmem:[%s1604] ss:$2 sm:$0xff] %v1096
        %v1606 = vld.sshfl [vmem:[#allocation1] sm:$0xff pattern:$0x75316420]
        %v1607 = vsel %vm1114, %v1606, 0
        %1609 = vmatpush.msra.mxu0 0.0
        %1610 = vmatpush.msra.mxu0 0.0
        %1611 = vmatpush.msra.mxu0 0.0
        %1612 = vmatpush.msra.mxu0 0.0
        %1613 = vmatpush.msra.mxu0 0.0
        %1614 = vmatpush.msra.mxu0 0.0
        %1615 = vmatpush.msra.mxu0 0.0
        %1616 = vmatpush.msra.mxu0 0.0
        %1617 = vmatpush.msra.mxu0 0.0
        %1618 = vmatpush.msra.mxu0 0.0
        %1619 = vmatpush.msra.mxu0 0.0
        %1620 = vmatpush.msra.mxu0 0.0
        %1621 = vmatpush.msra.mxu0 %v1548
        %1622 = vmatpush.msra.mxu0 %v1547
        %1623 = vmatpush.msra.mxu0 %v1546
        %1624 = vmatpush.msra.mxu0 %v1545
        %1625 = vmatmul.f32.gmra.mxu0 %v1607
        %v1626 = vpop.f32.mrf.mxu0
        %v1627 = vadd.f32 %v1599, %v1626
        %1628 = vdwg.mxu0
        %1629 = vst [vmem:[#allocation1] ss:$2 sm:$0xff] %v1094
        %s1630 = scalar_lea.vmem [#allocation1], 1
        %1631 = vst [vmem:[%s1630] ss:$2 sm:$0xff] %v1096
        %v1632 = vld.sshfl [vmem:[#allocation1] sm:$0xff pattern:$0x75316420]
        %1637 = vrot.lane.b32.xlu0 %v1545, 64
        %v1638 = vpop.permute.xlu0 %1637
        %1639 = vrot.lane.b32.xlu0 %v1546, 64
        %v1640 = vpop.permute.xlu0 %1639
        %1641 = vrot.lane.b32.xlu0 %v1547, 64
        %v1642 = vpop.permute.xlu0 %1641
        %1643 = vrot.lane.b32.xlu0 %v1548, 64
        %v1644 = vpop.permute.xlu0 %1643
        %1649 = vrot.lane.b32.xlu0 %v1599, 64
        %v1650 = vpop.permute.xlu0 %1649
        %v1652 = vsel %vm1114, %v1632, 0
        %1654 = vmatpush.msra.mxu0 0.0
        %1655 = vmatpush.msra.mxu0 0.0
        %1656 = vmatpush.msra.mxu0 0.0
        %1657 = vmatpush.msra.mxu0 0.0
        %1658 = vmatpush.msra.mxu0 0.0
        %1659 = vmatpush.msra.mxu0 0.0
        %1660 = vmatpush.msra.mxu0 0.0
        %1661 = vmatpush.msra.mxu0 0.0
        %1662 = vmatpush.msra.mxu0 0.0
        %1663 = vmatpush.msra.mxu0 0.0
        %1664 = vmatpush.msra.mxu0 0.0
        %1665 = vmatpush.msra.mxu0 0.0
        %1666 = vmatpush.msra.mxu0 %v1644
        %1667 = vmatpush.msra.mxu0 %v1642
        %1668 = vmatpush.msra.mxu0 %v1640
        %1669 = vmatpush.msra.mxu0 %v1638
        %1670 = vmatmul.f32.gmra.mxu0 %v1652
        %v1671 = vpop.f32.mrf.mxu0
        %v1672 = vadd.f32 %v1650, %v1671
        %1673 = vdwg.mxu0
        %v1674 = vadd.f32 %v1584, %v1627
        %v1675 = vxor.u32 %v1674, 2147483648
        %v1676 = vmul.f32 %v1675, 1.442695
        %v1677 = vpow.pop %v1676
        %v1678 = vadd.f32 %v1677, 1.0
        %v1679 = vrcp.pop %v1678
        %v1680 = vmul.f32 %v1678, %v1679
        %v1681 = vsub.f32 1.0, %v1680
        %v1682 = vmul.f32 %v1679, %v1681
        %v1683 = vadd.f32 %v1679, %v1682
        %vm1684 = vweird.f32 %v1678
        %vm1685 = vweird.f32 %v1679
        %vm1686 = vmor %vm1684, %vm1685
        %v1687 = vsel %vm1686, %v1679, %v1683
        %v1688 = vand.u32 2147483647, %v1678
        %vm1689 = vcmp.eq.f32.partialorder %v1688, 8.507059e+37
        %v1690 = vand.u32 %v1678, 2147483648
        %v1691 = vor.u32 1.1754944e-38, %v1690
        %v1692 = vsel %vm1689, %v1691, %v1687
        %v1693 = vmul.f32 1.0, %v1692
        %v1694 = vmul.f32 %v1693, %v1672
        %1696 = vrot.lane.b32.xlu0 %v1694, 64
        %v1697 = vpop.permute.xlu0 %1696
        %v1699 = vadd.f32 %v1584, %v1697
        %v1700 = vtanh.pop %v1699
        %v1701 = vsub.f32 1.0, %v1693
        %1703 = vrot.lane.b32.xlu0 %v1700, 96
        %v1704 = vpop.permute.xlu0 %1703
        %v1706 = vmul.f32 %v1701, %v1704
        %1707 = vst [vmem:[#allocation1] ss:$2 sm:$0xff] %v1094
        %s1708 = scalar_lea.vmem [#allocation1], 1
        %1709 = vst [vmem:[%s1708] ss:$2 sm:$0xff] %v1096
        %v1710 = vld.sshfl [vmem:[#allocation1] sm:$0xff pattern:$0x75316420]
        %1711 = vrot.lane.b32.xlu0 %v1710, 32
        %v1712 = vpop.permute.xlu0 %1711
        %v1714 = vmul.f32 %v1693, %v1712
        %v1715 = vadd.f32 %v1706, %v1714
        %1717 = vrot.lane.b32.xlu0 %v1715, 96
        %v1718 = vpop.permute.xlu0 %1717
        %v1719 = vsel %vm1114, %v1718, 0
        %1721 = vmatpush.msra.mxu0 0.0
        %1722 = vmatpush.msra.mxu0 0.0
        %1723 = vmatpush.msra.mxu0 0.0
        %1724 = vmatpush.msra.mxu0 0.0
        %1725 = vmatpush.msra.mxu0 0.0
        %1726 = vmatpush.msra.mxu0 0.0
        %1727 = vmatpush.msra.mxu0 0.0
        %1728 = vmatpush.msra.mxu0 0.0
        %1729 = vmatpush.msra.mxu0 0.0
        %1730 = vmatpush.msra.mxu0 0.0
        %1731 = vmatpush.msra.mxu0 0.0
        %1732 = vmatpush.msra.mxu0 0.0
        %1733 = vmatpush.msra.mxu0 %v1548
        %1734 = vmatpush.msra.mxu0 %v1547
        %1735 = vmatpush.msra.mxu0 %v1546
        %1736 = vmatpush.msra.mxu0 %v1545
        %1737 = vmatmul.f32.gmra.mxu0 %v1719
        %v1738 = vpop.f32.mrf.mxu0
        %v1739 = vadd.f32 %v1599, %v1738
        %1740 = vdwg.mxu0
        %1741 = vmatpush.msra.mxu0 0.0
        %1742 = vmatpush.msra.mxu0 0.0
        %1743 = vmatpush.msra.mxu0 0.0
        %1744 = vmatpush.msra.mxu0 0.0
        %1745 = vmatpush.msra.mxu0 0.0
        %1746 = vmatpush.msra.mxu0 0.0
        %1747 = vmatpush.msra.mxu0 0.0
        %1748 = vmatpush.msra.mxu0 0.0
        %1749 = vmatpush.msra.mxu0 0.0
        %1750 = vmatpush.msra.mxu0 0.0
        %1751 = vmatpush.msra.mxu0 0.0
        %1752 = vmatpush.msra.mxu0 0.0
        %1753 = vmatpush.msra.mxu0 %v1644
        %1754 = vmatpush.msra.mxu0 %v1642
        %1755 = vmatpush.msra.mxu0 %v1640
        %1756 = vmatpush.msra.mxu0 %v1638
        %1757 = vmatmul.f32.gmra.mxu0 %v1719
        %v1758 = vpop.f32.mrf.mxu0
        %v1759 = vadd.f32 %v1650, %v1758
        %1760 = vdwg.mxu0
        %v1761 = vadd.f32 %v1587, %v1739
        %v1762 = vxor.u32 %v1761, 2147483648
        %v1763 = vmul.f32 %v1762, 1.442695
        %v1764 = vpow.pop %v1763
        %v1765 = vadd.f32 %v1764, 1.0
        %v1766 = vrcp.pop %v1765
        %v1767 = vmul.f32 %v1765, %v1766
        %v1768 = vsub.f32 1.0, %v1767
        %v1769 = vmul.f32 %v1766, %v1768
        %v1770 = vadd.f32 %v1766, %v1769
        %vm1771 = vweird.f32 %v1765
        %vm1772 = vweird.f32 %v1766
        %vm1773 = vmor %vm1771, %vm1772
        %v1774 = vsel %vm1773, %v1766, %v1770
        %v1775 = vand.u32 2147483647, %v1765
        %vm1776 = vcmp.eq.f32.partialorder %v1775, 8.507059e+37
        %v1777 = vand.u32 %v1765, 2147483648
        %v1778 = vor.u32 1.1754944e-38, %v1777
        %v1779 = vsel %vm1776, %v1778, %v1774
        %v1780 = vmul.f32 1.0, %v1779
        %v1781 = vmul.f32 %v1780, %v1759
        %1783 = vrot.lane.b32.xlu0 %v1781, 64
        %v1784 = vpop.permute.xlu0 %1783
        %v1786 = vadd.f32 %v1587, %v1784
        %v1787 = vtanh.pop %v1786
        %v1788 = vsub.f32 1.0, %v1780
        %1790 = vrot.lane.b32.xlu0 %v1787, 96
        %v1791 = vpop.permute.xlu0 %1790
        %v1793 = vmul.f32 %v1788, %v1791
        %v1794 = vmul.f32 %v1780, %v1715
        %v1795 = vadd.f32 %v1793, %v1794
        %1797 = vrot.lane.b32.xlu0 %v1795, 96
        %v1798 = vpop.permute.xlu0 %1797
        %v1799 = vsel %vm1114, %v1798, 0
        %1801 = vmatpush.msra.mxu0 0.0
        %1802 = vmatpush.msra.mxu0 0.0
        %1803 = vmatpush.msra.mxu0 0.0
        %1804 = vmatpush.msra.mxu0 0.0
        %1805 = vmatpush.msra.mxu0 0.0
        %1806 = vmatpush.msra.mxu0 0.0
        %1807 = vmatpush.msra.mxu0 0.0
        %1808 = vmatpush.msra.mxu0 0.0
        %1809 = vmatpush.msra.mxu0 0.0
        %1810 = vmatpush.msra.mxu0 0.0
        %1811 = vmatpush.msra.mxu0 0.0
        %1812 = vmatpush.msra.mxu0 0.0
        %1813 = vmatpush.msra.mxu0 %v1548
        %1814 = vmatpush.msra.mxu0 %v1547
        %1815 = vmatpush.msra.mxu0 %v1546
        %1816 = vmatpush.msra.mxu0 %v1545
        %1817 = vmatmul.f32.gmra.mxu0 %v1799
        %v1818 = vpop.f32.mrf.mxu0
        %v1819 = vadd.f32 %v1599, %v1818
        %1820 = vdwg.mxu0
        %1821 = vmatpush.msra.mxu0 0.0
        %1822 = vmatpush.msra.mxu0 0.0
        %1823 = vmatpush.msra.mxu0 0.0
        %1824 = vmatpush.msra.mxu0 0.0
        %1825 = vmatpush.msra.mxu0 0.0
        %1826 = vmatpush.msra.mxu0 0.0
        %1827 = vmatpush.msra.mxu0 0.0
        %1828 = vmatpush.msra.mxu0 0.0
        %1829 = vmatpush.msra.mxu0 0.0
        %1830 = vmatpush.msra.mxu0 0.0
        %1831 = vmatpush.msra.mxu0 0.0
        %1832 = vmatpush.msra.mxu0 0.0
        %1833 = vmatpush.msra.mxu0 %v1644
        %1834 = vmatpush.msra.mxu0 %v1642
        %1835 = vmatpush.msra.mxu0 %v1640
        %1836 = vmatpush.msra.mxu0 %v1638
        %1837 = vmatmul.f32.gmra.mxu0 %v1799
        %v1838 = vpop.f32.mrf.mxu0
        %v1839 = vadd.f32 %v1650, %v1838
        %1840 = vdwg.mxu0
        %v1841 = vadd.f32 %v1590, %v1819
        %v1842 = vxor.u32 %v1841, 2147483648
        %v1843 = vmul.f32 %v1842, 1.442695
        %v1844 = vpow.pop %v1843
        %v1845 = vadd.f32 %v1844, 1.0
        %v1846 = vrcp.pop %v1845
        %v1847 = vmul.f32 %v1845, %v1846
        %v1848 = vsub.f32 1.0, %v1847
        %v1849 = vmul.f32 %v1846, %v1848
        %v1850 = vadd.f32 %v1846, %v1849
        %vm1851 = vweird.f32 %v1845
        %vm1852 = vweird.f32 %v1846
        %vm1853 = vmor %vm1851, %vm1852
        %v1854 = vsel %vm1853, %v1846, %v1850
        %v1855 = vand.u32 2147483647, %v1845
        %vm1856 = vcmp.eq.f32.partialorder %v1855, 8.507059e+37
        %v1857 = vand.u32 %v1845, 2147483648
        %v1858 = vor.u32 1.1754944e-38, %v1857
        %v1859 = vsel %vm1856, %v1858, %v1854
        %v1860 = vmul.f32 1.0, %v1859
        %v1861 = vmul.f32 %v1860, %v1839
        %1863 = vrot.lane.b32.xlu0 %v1861, 64
        %v1864 = vpop.permute.xlu0 %1863
        %v1866 = vadd.f32 %v1590, %v1864
        %v1867 = vtanh.pop %v1866
        %v1868 = vsub.f32 1.0, %v1860
        %1870 = vrot.lane.b32.xlu0 %v1867, 96
        %v1871 = vpop.permute.xlu0 %1870
        %v1873 = vmul.f32 %v1868, %v1871
        %v1874 = vmul.f32 %v1860, %v1795
        %v1875 = vadd.f32 %v1873, %v1874
        %1877 = vrot.lane.b32.xlu0 %v1875, 96
        %v1878 = vpop.permute.xlu0 %1877
        %v1879 = vsel %vm1114, %v1878, 0
        %1881 = vmatpush.msra.mxu0 0.0
        %1882 = vmatpush.msra.mxu0 0.0
        %1883 = vmatpush.msra.mxu0 0.0
        %1884 = vmatpush.msra.mxu0 0.0
        %1885 = vmatpush.msra.mxu0 0.0
        %1886 = vmatpush.msra.mxu0 0.0
        %1887 = vmatpush.msra.mxu0 0.0
        %1888 = vmatpush.msra.mxu0 0.0
        %1889 = vmatpush.msra.mxu0 0.0
        %1890 = vmatpush.msra.mxu0 0.0
        %1891 = vmatpush.msra.mxu0 0.0
        %1892 = vmatpush.msra.mxu0 0.0
        %1893 = vmatpush.msra.mxu0 %v1548
        %1894 = vmatpush.msra.mxu0 %v1547
        %1895 = vmatpush.msra.mxu0 %v1546
        %1896 = vmatpush.msra.mxu0 %v1545
        %1897 = vmatmul.f32.gmra.mxu0 %v1879
        %v1898 = vpop.f32.mrf.mxu0
        %v1899 = vadd.f32 %v1599, %v1898
        %1900 = vdwg.mxu0
        %1901 = vmatpush.msra.mxu0 0.0
        %1902 = vmatpush.msra.mxu0 0.0
        %1903 = vmatpush.msra.mxu0 0.0
        %1904 = vmatpush.msra.mxu0 0.0
        %1905 = vmatpush.msra.mxu0 0.0
        %1906 = vmatpush.msra.mxu0 0.0
        %1907 = vmatpush.msra.mxu0 0.0
        %1908 = vmatpush.msra.mxu0 0.0
        %1909 = vmatpush.msra.mxu0 0.0
        %1910 = vmatpush.msra.mxu0 0.0
        %1911 = vmatpush.msra.mxu0 0.0
        %1912 = vmatpush.msra.mxu0 0.0
        %1913 = vmatpush.msra.mxu0 %v1644
        %1914 = vmatpush.msra.mxu0 %v1642
        %1915 = vmatpush.msra.mxu0 %v1640
        %1916 = vmatpush.msra.mxu0 %v1638
        %1917 = vmatmul.f32.gmra.mxu0 %v1879
        %v1918 = vpop.f32.mrf.mxu0
        %v1919 = vadd.f32 %v1650, %v1918
        %1920 = vdwg.mxu0
        %v1921 = vadd.f32 %v1593, %v1899
        %v1922 = vxor.u32 %v1921, 2147483648
        %v1923 = vmul.f32 %v1922, 1.442695
        %v1924 = vpow.pop %v1923
        %v1925 = vadd.f32 %v1924, 1.0
        %v1926 = vrcp.pop %v1925
        %v1927 = vmul.f32 %v1925, %v1926
        %v1928 = vsub.f32 1.0, %v1927
        %v1929 = vmul.f32 %v1926, %v1928
        %v1930 = vadd.f32 %v1926, %v1929
        %vm1931 = vweird.f32 %v1925
        %vm1932 = vweird.f32 %v1926
        %vm1933 = vmor %vm1931, %vm1932
        %v1934 = vsel %vm1933, %v1926, %v1930
        %v1935 = vand.u32 2147483647, %v1925
        %vm1936 = vcmp.eq.f32.partialorder %v1935, 8.507059e+37
        %v1937 = vand.u32 %v1925, 2147483648
        %v1938 = vor.u32 1.1754944e-38, %v1937
        %v1939 = vsel %vm1936, %v1938, %v1934
        %v1940 = vmul.f32 1.0, %v1939
        %v1941 = vmul.f32 %v1940, %v1919
        %1943 = vrot.lane.b32.xlu0 %v1941, 64
        %v1944 = vpop.permute.xlu0 %1943
        %v1946 = vadd.f32 %v1593, %v1944
        %v1947 = vtanh.pop %v1946
        %v1948 = vsub.f32 1.0, %v1940
        %1950 = vrot.lane.b32.xlu0 %v1947, 96
        %v1951 = vpop.permute.xlu0 %1950
        %v1953 = vmul.f32 %v1948, %v1951
        %v1954 = vmul.f32 %v1940, %v1875
        %v1955 = vadd.f32 %v1953, %v1954
        %1957 = vrot.lane.b32.xlu0 %v1955, 96
        %v1958 = vpop.permute.xlu0 %1957
        %v1959 = vsel %vm1114, %v1958, 0
        %1961 = vmatpush.msra.mxu0 0.0
        %1962 = vmatpush.msra.mxu0 0.0
        %1963 = vmatpush.msra.mxu0 0.0
        %1964 = vmatpush.msra.mxu0 0.0
        %1965 = vmatpush.msra.mxu0 0.0
        %1966 = vmatpush.msra.mxu0 0.0
        %1967 = vmatpush.msra.mxu0 0.0
        %1968 = vmatpush.msra.mxu0 0.0
        %1969 = vmatpush.msra.mxu0 0.0
        %1970 = vmatpush.msra.mxu0 0.0
        %1971 = vmatpush.msra.mxu0 0.0
        %1972 = vmatpush.msra.mxu0 0.0
        %1973 = vmatpush.msra.mxu0 %v1548
        %1974 = vmatpush.msra.mxu0 %v1547
        %1975 = vmatpush.msra.mxu0 %v1546
        %1976 = vmatpush.msra.mxu0 %v1545
        %1977 = vmatmul.f32.gmra.mxu0 %v1959
        %v1978 = vpop.f32.mrf.mxu0
        %v1979 = vadd.f32 %v1599, %v1978
        %1980 = vdwg.mxu0
        %1981 = vmatpush.msra.mxu0 0.0
        %1982 = vmatpush.msra.mxu0 0.0
        %1983 = vmatpush.msra.mxu0 0.0
        %1984 = vmatpush.msra.mxu0 0.0
        %1985 = vmatpush.msra.mxu0 0.0
        %1986 = vmatpush.msra.mxu0 0.0
        %1987 = vmatpush.msra.mxu0 0.0
        %1988 = vmatpush.msra.mxu0 0.0
        %1989 = vmatpush.msra.mxu0 0.0
        %1990 = vmatpush.msra.mxu0 0.0
        %1991 = vmatpush.msra.mxu0 0.0
        %1992 = vmatpush.msra.mxu0 0.0
        %1993 = vmatpush.msra.mxu0 %v1644
        %1994 = vmatpush.msra.mxu0 %v1642
        %1995 = vmatpush.msra.mxu0 %v1640
        %1996 = vmatpush.msra.mxu0 %v1638
        %1997 = vmatmul.f32.gmra.mxu0 %v1959
        %v1998 = vpop.f32.mrf.mxu0
        %v1999 = vadd.f32 %v1650, %v1998
        %2000 = vdwg.mxu0
        %v2001 = vadd.f32 %v1596, %v1979
        %v2002 = vxor.u32 %v2001, 2147483648
        %v2003 = vmul.f32 %v2002, 1.442695
        %v2004 = vpow.pop %v2003
        %v2005 = vadd.f32 %v2004, 1.0
        %v2006 = vrcp.pop %v2005
        %v2007 = vmul.f32 %v2005, %v2006
        %v2008 = vsub.f32 1.0, %v2007
        %v2009 = vmul.f32 %v2006, %v2008
        %v2010 = vadd.f32 %v2006, %v2009
        %vm2011 = vweird.f32 %v2005
        %vm2012 = vweird.f32 %v2006
        %vm2013 = vmor %vm2011, %vm2012
        %v2014 = vsel %vm2013, %v2006, %v2010
        %v2015 = vand.u32 2147483647, %v2005
        %vm2016 = vcmp.eq.f32.partialorder %v2015, 8.507059e+37
        %v2017 = vand.u32 %v2005, 2147483648
        %v2018 = vor.u32 1.1754944e-38, %v2017
        %v2019 = vsel %vm2016, %v2018, %v2014
        %v2020 = vmul.f32 1.0, %v2019
        %v2021 = vmul.f32 %v2020, %v1999
        %2023 = vrot.lane.b32.xlu0 %v2021, 64
        %v2024 = vpop.permute.xlu0 %2023
        %v2026 = vadd.f32 %v1596, %v2024
        %v2027 = vtanh.pop %v2026
        %v2028 = vsub.f32 1.0, %v2020
        %2030 = vrot.lane.b32.xlu0 %v2027, 96
        %v2031 = vpop.permute.xlu0 %2030
        %v2033 = vmul.f32 %v2028, %v2031
        %v2034 = vmul.f32 %v2020, %v1955
        %v2035 = vadd.f32 %v2033, %v2034
        %v2036 = vrot.slane %v1543, 4
        %v2038 = vrot.slane %v2035, 4
        %2039 = vst [vmem:[#allocation1] ss:$2 sm:$0xff] %v1543
        %v2040 = vld.sshfl [vmem:[#allocation1] sm:$0xff pattern:$0x75316420]
        %s2041 = scalar_lea.vmem [#allocation1], 16
        %2042 = vst [vmem:[%s2041] ss:$2 sm:$0xff] %v2035
        %v2043 = vld.sshfl [vmem:[#allocation1 + $0x10] sm:$0xff pattern:$0x75316420]
        %s2044 = scalar_lea.vmem [#allocation1], 32
        %2045 = vst [vmem:[%s2044] ss:$2 sm:$0xff] %v2036
        %v2046 = vld.sshfl [vmem:[#allocation1 + $0x20] sm:$0xff pattern:$0x75316420]
        %s2047 = scalar_lea.vmem [#allocation1], 48
        %2048 = vst [vmem:[%s2047] ss:$2 sm:$0xff] %v2038
        %v2049 = vld.sshfl [vmem:[#allocation1 + $0x30] sm:$0xff pattern:$0x75316420]
        %2050 = vrot.lane.b32.xlu0 %v2040, 96
        %v2051 = vpop.permute.xlu0 %2050
        %2052 = vrot.lane.b32.xlu0 %v2043, 96
        %v2053 = vpop.permute.xlu0 %2052
        %2054 = vrot.lane.b32.xlu0 %v2046, 96
        %v2055 = vpop.permute.xlu0 %2054
        %2056 = vrot.lane.b32.xlu0 %v2049, 96
        %v2057 = vpop.permute.xlu0 %2056
        %vm2062 = vcmask 257024
        %2063 = vst.msk [vmem:[%s837] sm:$0xf] %vm2062, %v2051
        %2064 = vst.msk [vmem:[%s837 + $0x4] sm:$0xf] %vm2062, %v2053
        %2065 = vst.msk [vmem:[%s837 + $0x8] sm:$0xf] %vm2062, %v2055
        %2066 = vst.msk [vmem:[%s837 + $0xc] sm:$0xf] %vm2062, %v2057
        %s2067 = scalar_lea.vmem %s16, %s1097
        %v2068 = vld [vmem:[%s2067] sm:$0xff]
        %v2069 = vld [vmem:[%s2067 + $0x8] sm:$0xff]
        %v2070 = vld [vmem:[%s2067 + $0x10] sm:$0xff]
        %v2071 = vld [vmem:[%s2067 + $0x18] sm:$0xff]
        %s2072 = scalar_lea.vmem [#allocation16], %s47
        %v2073 = vld [vmem:[%s2072] sm:$0x1]
        %v2075 = vperm.slane %v2073, 0
        %2077 = vrot.lane.b32.xlu0 %v2035, 96
        %v2078 = vpop.permute.xlu0 %2077
        %v2079 = vsel %vm1114, %v2078, 0
        %2081 = vmatpush.msra.mxu0 0.0
        %2082 = vmatpush.msra.mxu0 0.0
        %2083 = vmatpush.msra.mxu0 0.0
        %2084 = vmatpush.msra.mxu0 0.0
        %2085 = vmatpush.msra.mxu0 0.0
        %2086 = vmatpush.msra.mxu0 0.0
        %2087 = vmatpush.msra.mxu0 0.0
        %2088 = vmatpush.msra.mxu0 0.0
        %2089 = vmatpush.msra.mxu0 0.0
        %2090 = vmatpush.msra.mxu0 0.0
        %2091 = vmatpush.msra.mxu0 0.0
        %2092 = vmatpush.msra.mxu0 0.0
        %2093 = vmatpush.msra.mxu0 %v2071
        %2094 = vmatpush.msra.mxu0 %v2070
        %2095 = vmatpush.msra.mxu0 %v2069
        %2096 = vmatpush.msra.mxu0 %v2068
        %2097 = vmatmul.f32.gmra.mxu0 %v1719
        %v2098 = vpop.f32.mrf.mxu0
        %v2099 = vadd.f32 %v2075, %v2098
        %2100 = vmatmul.f32.gmra.mxu0 %v1799
        %v2101 = vpop.f32.mrf.mxu0
        %v2102 = vadd.f32 %v2075, %v2101
        %2103 = vmatmul.f32.gmra.mxu0 %v1879
        %v2104 = vpop.f32.mrf.mxu0
        %v2105 = vadd.f32 %v2075, %v2104
        %2106 = vmatmul.f32.gmra.mxu0 %v1959
        %v2107 = vpop.f32.mrf.mxu0
        %v2108 = vadd.f32 %v2075, %v2107
        %2109 = vmatmul.f32.gmra.mxu0 %v2079
        %v2110 = vpop.f32.mrf.mxu0
        %v2111 = vadd.f32 %v2075, %v2110
        %2112 = vdwg.mxu0
        %vm2113 = vcmp.ge.f32.partialorder %v2099, 0.0
        %vm2114 = vcmp.ge.f32.partialorder %v2102, 0.0
        %vm2115 = vcmp.ge.f32.partialorder %v2105, 0.0
        %vm2116 = vcmp.ge.f32.partialorder %v2108, 0.0
        %vm2117 = vcmp.ge.f32.partialorder %v2111, 0.0
        %v2118 = vmul.f32 %v2099, 0.01
        %v2119 = vmul.f32 %v2102, 0.01
        %v2120 = vmul.f32 %v2105, 0.01
        %v2121 = vmul.f32 %v2108, 0.01
        %v2122 = vmul.f32 %v2111, 0.01
        %v2123 = vsel %vm2113, %v2099, %v2118
        %v2124 = vsel %vm2114, %v2102, %v2119
        %v2125 = vsel %vm2115, %v2105, %v2120
        %v2126 = vsel %vm2116, %v2108, %v2121
        %v2127 = vsel %vm2117, %v2111, %v2122
        %s2128 = scalar_lea.vmem %s18, %s917
        %v2129 = vld [vmem:[%s2128] sm:$0xff]
        %v2130 = vld [vmem:[%s2128 + $0x8] sm:$0xff]
        %v2131 = vld [vmem:[%s2128 + $0x10] sm:$0xff]
        %s2132 = scalar_lea.vmem [#allocation17], %s47
        %v2133 = vld [vmem:[%s2132] sm:$0x1]
        %v2135 = vperm.slane %v2133, 0
        %v2138 = vsel %vm927, %v2123, 0
        %v2141 = vsel %vm927, %v2124, 0
        %v2144 = vsel %vm927, %v2125, 0
        %v2147 = vsel %vm927, %v2126, 0
        %v2150 = vsel %vm927, %v2127, 0
        %2152 = vmatpush.msra.mxu0 0.0
        %2153 = vmatpush.msra.mxu0 0.0
        %2154 = vmatpush.msra.mxu0 0.0
        %2155 = vmatpush.msra.mxu0 0.0
        %2156 = vmatpush.msra.mxu0 0.0
        %2157 = vmatpush.msra.mxu0 0.0
        %2158 = vmatpush.msra.mxu0 0.0
        %2159 = vmatpush.msra.mxu0 0.0
        %2160 = vmatpush.msra.mxu0 0.0
        %2161 = vmatpush.msra.mxu0 0.0
        %2162 = vmatpush.msra.mxu0 0.0
        %2163 = vmatpush.msra.mxu0 0.0
        %2164 = vmatpush.msra.mxu0 0.0
        %2165 = vmatpush.msra.mxu0 %v2131
        %2166 = vmatpush.msra.mxu0 %v2130
        %2167 = vmatpush.msra.mxu0 %v2129
        %2168 = vmatmul.f32.gmra.mxu0 %v2138
        %v2169 = vpop.f32.mrf.mxu0
        %v2170 = vadd.f32 %v2135, %v2169
        %2171 = vmatmul.f32.gmra.mxu0 %v2141
        %v2172 = vpop.f32.mrf.mxu0
        %v2173 = vadd.f32 %v2135, %v2172
        %2174 = vmatmul.f32.gmra.mxu0 %v2144
        %v2175 = vpop.f32.mrf.mxu0
        %v2176 = vadd.f32 %v2135, %v2175
        %2177 = vmatmul.f32.gmra.mxu0 %v2147
        %v2178 = vpop.f32.mrf.mxu0
        %v2179 = vadd.f32 %v2135, %v2178
        %2180 = vmatmul.f32.gmra.mxu0 %v2150
        %v2181 = vpop.f32.mrf.mxu0
        %v2182 = vadd.f32 %v2135, %v2181
        %2183 = vdwg.mxu0
        %v2189 = vrot.slane %v2170, 4
        %v2190 = vrot.slane %v2173, 4
        %v2191 = vrot.slane %v2176, 4
        %v2192 = vrot.slane %v2179, 4
        %v2193 = vrot.slane %v2182, 4
        %vm2199 = vcmask 60416
        %2200 = vst.msk [vmem:[%s830] sm:$0xf] %vm2199, %v2170
        %2201 = vst.msk [vmem:[%s830 + $0x4] sm:$0xf] %vm2199, %v2173
        %2202 = vst.msk [vmem:[%s830 + $0x8] sm:$0xf] %vm2199, %v2176
        %2203 = vst.msk [vmem:[%s830 + $0xc] sm:$0xf] %vm2199, %v2179
        %2204 = vst.msk [vmem:[%s830 + $0x10] sm:$0xf] %vm2199, %v2182
        %s2205 = scalar_lea.vmem %s830, 20 [#allocation19]
        %2206 = vst.msk [vmem:[%s2205] sm:$0xf] %vm2199, %v2189
        %2207 = vst.msk [vmem:[%s2205 + $0x4] sm:$0xf] %vm2199, %v2190
        %2208 = vst.msk [vmem:[%s2205 + $0x8] sm:$0xf] %vm2199, %v2191
        %2209 = vst.msk [vmem:[%s2205 + $0xc] sm:$0xf] %vm2199, %v2192
        %2210 = vst.msk [vmem:[%s2205 + $0x10] sm:$0xf] %vm2199, %v2193
        %s2211 = sand.u32 %s480, 1
        %s2212 = scalar_lea.sflag [#allocation4], %s2211
        %s2213 = sand.u32 %s480, 1
        %s2214 = smul.addr %s2213, 40
        %s2215 = scalar_lea.vmem [#allocation19], %s2214
        %s2216 = sand.u32 %s506, 1
        %s2217 = scalar_lea.sflag [#allocation21], %s2216
        %s2218 = sand.u32 %s506, 1
        %s2219 = smul.addr %s2218, 16
        %s2220 = scalar_lea.vmem [#allocation20], %s2219
        // Predicated region
        $region141: #{uncertainty_network_forward.1} parent=99 // pred_check
          %p2221 = pneg %p490
        $region142: #{uncertainty_network_forward.1} parent=99 // pred_check_branch
          %2223 = sbr.rel (%p2221) target = $region144
        $region143: #{uncertainty_network_forward.1} parent=99 // pred_region
          %s2224 = smul.u32 2, %s47
          %2226 = vsyncadd %s2212, 0
          %s2227 = smul.addr %s2224, 5
          %s2228 = smul.addr %s2227, 4
          %s2229 = scalar_lea.hbm %s20, %s2228
          %s2230 = sshll.u32 %s2215, 4
          %s2231 = int_to_ptr.vmem [resolvable:$true] %s2230
          %s2232 = sshll.u32 %s2229, 4
          %s2233 = int_to_ptr.hbm [resolvable:$true] %s2232
          %2238 = dma.vmem_to_hbm [thread:$0]  %s2231, 640, %s2233, %s2212, 64, 64, 4
        $region144: #{uncertainty_network_forward.1} parent=99 // pred_fallthru
          _
        // Predicated region
        $region145: #{uncertainty_network_forward.1} parent=99 // pred_check
          %p2239 = pneg %p516
        $region146: #{uncertainty_network_forward.1} parent=99 // pred_check_branch
          %2241 = sbr.rel (%p2239) target = $region148
        $region147: #{uncertainty_network_forward.1} parent=99 // pred_region
          %s2242 = smul.u32 2, %s47
          %2244 = vsyncadd %s2217, 0
          %s2245 = smul.addr %s2242, 2
          %s2246 = smul.addr %s2245, 4
          %s2247 = scalar_lea.hbm %s21, %s2246
          %s2248 = sshll.u32 %s2220, 4
          %s2249 = int_to_ptr.vmem [resolvable:$true] %s2248
          %s2250 = sshll.u32 %s2247, 4
          %s2251 = int_to_ptr.hbm [resolvable:$true] %s2250
          %2256 = dma.vmem_to_hbm [thread:$0]  %s2249, 256, %s2251, %s2217, 64, 64, 4
        $region148: #{uncertainty_network_forward.1} parent=99 // pred_fallthru
          _
      $region100: #{uncertainty_network_forward.1} parent=5 // pred_fallthru
        _
      %p2257 = scmp.le.s32.totalorder 2, %s42
      // Predicated region
      $region149: #{uncertainty_network_forward.1} parent=5 // pred_check
        %p2258 = pneg %p2257
      $region150: #{uncertainty_network_forward.1} parent=5 // pred_check_branch
        %2260 = sbr.rel (%p2258) target = $region152
      $region151: #{uncertainty_network_forward.1} parent=5 // pred_region
        %s2261 = ssub.s32 %s42, 2
        // Predicated region
        $region153: #{uncertainty_network_forward.1} parent=151 // pred_check
          %p2262 = pneg %p496
        $region154: #{uncertainty_network_forward.1} parent=151 // pred_check_branch
          %2264 = sbr.rel (%p2262) target = $region156
        $region155: #{uncertainty_network_forward.1} parent=151 // pred_region
          %s2265 = sand.u32 %s481, 1
          %s2266 = scalar_lea.sflag [#allocation4], %s2265
          %s2267 = sand.u32 %s481, 1
          %s2268 = smul.addr %s2267, 40
          %s2269 = scalar_lea.vmem [#allocation19], %s2268
          %2271 = dma.done %s2266, 640
        $region156: #{uncertainty_network_forward.1} parent=151 // pred_fallthru
          _
        // Predicated region
        $region157: #{uncertainty_network_forward.1} parent=151 // pred_check
          %p2272 = pneg %p522
        $region158: #{uncertainty_network_forward.1} parent=151 // pred_check_branch
          %2274 = sbr.rel (%p2272) target = $region160
        $region159: #{uncertainty_network_forward.1} parent=151 // pred_region
          %s2275 = sand.u32 %s507, 1
          %s2276 = scalar_lea.sflag [#allocation21], %s2275
          %s2277 = sand.u32 %s507, 1
          %s2278 = smul.addr %s2277, 16
          %s2279 = scalar_lea.vmem [#allocation20], %s2278
          %2281 = dma.done %s2276, 256
        $region160: #{uncertainty_network_forward.1} parent=151 // pred_fallthru
          _
      $region152: #{uncertainty_network_forward.1} parent=5 // pred_fallthru
        _
    $region6: #{uncertainty_network_forward.1} parent=1 // loop_footer
      %s46 = sadd.s32 1, %s42
    $region7: #{uncertainty_network_forward.1} parent=1 // loop_footer_branch
      %41 = sbr.rel target = $region3
    $region8: #{uncertainty_network_forward.1} parent=1 // loop_exit
      _
    %2282 = vsyncpa [#allocation3], 1
    %s2283 = scalar_lea.sflag [#allocation3], 1
    %2284 = vsyncpa %s2283, 1
    %2285 = vsyncpa [#allocation6], 1
    %s2286 = scalar_lea.sflag [#allocation6], 1
    %2287 = vsyncpa %s2286, 1
    %2288 = vsyncpa [#allocation9], 1
    %2289 = vsyncpa [#allocation12], 1
    %2290 = vsyncpa [#allocation15], 1
    %2291 = vsyncpa [#allocation18], 1
    %2292 = vsyncpa [#allocation4], 1
    %s2293 = scalar_lea.sflag [#allocation4], 1
    %2294 = vsyncpa %s2293, 1
    %2295 = vsyncpa [#allocation21], 1
    %s2296 = scalar_lea.sflag [#allocation21], 1
    %2297 = vsyncpa %s2296, 1

</llo_original>
